<compile_context>
chip_gen: v5e
topology: v5e:2x2
jax: 0.10.0
libtpu: 0.0.40
codegen_flags: <defaults>
</compile_context>

<pallas_src>
import functools

import jax
import jax.numpy as jnp
from jax import lax
from jax.experimental import pallas as pl
from jax.experimental.pallas import tpu as pltpu

NHIDDEN = 128
EPS = 1e-5
# Above the 32 MiB default scoped limit (v6e) but safely under v7x's 64 MiB/TC.
VMEM_LIMIT_BYTES = 48 * 1024 * 1024


def _pick_row_tile(h, target=8):
    # Demo-sized default.  At real SPADE resolutions sweep 32-64 rows (subject
    # to VMEM: actv tile = (TH+2)*(W+2)*128 bf16 + f32 conv1 intermediate).
    th = min(target, h)
    while h % th:
        th -= 1
    return th


# ---------------------------------------------------------------------------
# Kernel 1: instance-norm statistics (single pass, tiled reduction over rows)
# ---------------------------------------------------------------------------
def _in_stats_kernel(x_ref, mean_ref, rstd_ref, sum_sc, sq_sc, *, inv_hw):
    t = pl.program_id(1)

    @pl.when(t == 0)
    def _():
        sum_sc[...] = jnp.zeros_like(sum_sc)
        sq_sc[...] = jnp.zeros_like(sq_sc)

    x = x_ref[0].astype(jnp.float32)                 # (TH, W, C)
    th, w, c = x.shape
    xf = x.reshape(th * w, c)
    sum_sc[...] += jnp.sum(xf, axis=0, keepdims=True)
    sq_sc[...] += jnp.sum(xf * xf, axis=0, keepdims=True)

    @pl.when(t == pl.num_programs(1) - 1)
    def _():
        mean = sum_sc[...] * inv_hw                                  # (1, C)
        var = jnp.maximum(sq_sc[...] * inv_hw - mean * mean, 0.0)    # biased
        mean_ref[...] = mean.reshape(1, 1, 1, -1)
        rstd_ref[...] = lax.rsqrt(var + EPS).reshape(1, 1, 1, -1)


def instance_norm_stats(x_nhwc, row_tile):
    n, h, w, c = x_nhwc.shape
    t = h // row_tile
    stat_shape = jax.ShapeDtypeStruct((n, 1, 1, c), jnp.float32)
    stat_spec = pl.BlockSpec((1, 1, 1, c), lambda i, j: (i, 0, 0, 0))
    kernel = functools.partial(_in_stats_kernel, inv_hw=1.0 / float(h * w))
    return pl.pallas_call(
        kernel,
        out_shape=(stat_shape, stat_shape),
        grid=(n, t),
        in_specs=[pl.BlockSpec((1, row_tile, w, c), lambda i, j: (i, j, 0, 0))],
        out_specs=(stat_spec, stat_spec),
        scratch_shapes=[pltpu.VMEM((1, c), jnp.float32),
                        pltpu.VMEM((1, c), jnp.float32)],
        compiler_params=pltpu.CompilerParams(
            dimension_semantics=("parallel", "arbitrary"),
            vmem_limit_bytes=VMEM_LIMIT_BYTES),
    )(x_nhwc)


# ---------------------------------------------------------------------------
# Kernel 2: fused mlp_shared -> mlp_gamma||mlp_beta -> normalize * gamma + beta
# ---------------------------------------------------------------------------
def _spade_fused_kernel(x_ref, pose_ref, mean_ref, rstd_ref,
                        w1_ref, b1_ref, w2_ref, b2_ref, o_ref, actv_sc,
                        *, TH, H, W, C, WP, KP):
    t = pl.program_id(1)
    m1 = (TH + 2) * WP

    # ---- conv1 (mlp_shared): one im2col matmul, bf16 x bf16 -> f32, + ReLU.
    p = pose_ref[0].reshape(m1, KP)                          # bf16 (m1, KP)
    a = jnp.dot(p, w1_ref[...], preferred_element_type=jnp.float32)
    a = jnp.maximum(a + b1_ref[...], 0.0).reshape(TH + 2, WP, NHIDDEN)

    # Zero halo positions outside the image: they implement the zero padding of
    # the gamma/beta conv and must not be relu(bias).
    row = t * TH - 1 + lax.broadcasted_iota(jnp.int32, (TH + 2, 1, 1), 0)
    col = lax.broadcasted_iota(jnp.int32, (1, WP, 1), 1) - 1
    valid = (row >= 0) & (row < H) & (col >= 0) & (col < W)
    # actv stays in VMEM (bf16 matmul operand) -- never written to HBM.
    actv_sc[...] = jnp.where(valid, a, 0.0).astype(jnp.bfloat16)

    # ---- conv2: mlp_gamma and mlp_beta fused along Cout (0.5 folded in).
    # 9 shifted K=128 matmuls; K=128 is already a full MXU contraction.
    acc = jnp.zeros((TH * W, 2 * C), jnp.float32)
    for dy in range(3):
        for dx in range(3):
            patch = actv_sc[dy:dy + TH, dx:dx + W, :].reshape(TH * W, NHIDDEN)
            acc = acc + jnp.dot(patch, w2_ref[dy * 3 + dx],
                                preferred_element_type=jnp.float32)
    gb = (acc + b2_ref[...]).reshape(TH, W, 2 * C)
    gamma = gb[..., :C]
    beta = gb[..., C:]

    # ---- instance-norm apply (f32 elementwise).
    xv = x_ref[0].astype(jnp.float32)                        # (TH, W, C)
    mean = mean_ref[...].reshape(1, C)
    rstd = rstd_ref[...].reshape(1, C)
    o_ref[0] = (xv - mean) * rstd * gamma + beta


def spade_fused(x_nhwc, pose_tiles, mean, rstd, w1, b1, w2, b2, row_tile):
    n, h, w, c = x_nhwc.shape
    t = h // row_tile
    wp = pose_tiles.shape[2]
    kp = pose_tiles.shape[3]
    kernel = functools.partial(_spade_fused_kernel,
                               TH=row_tile, H=h, W=w, C=c, WP=wp, KP=kp)
    return pl.pallas_call(
        kernel,
        out_shape=jax.ShapeDtypeStruct((n, h, w, c), jnp.float32),
        grid=(n, t),
        in_specs=[
            pl.BlockSpec((1, row_tile, w, c), lambda i, j: (i, j, 0, 0)),
            pl.BlockSpec((1, row_tile + 2, wp, kp),
                         lambda i, j: (i * t + j, 0, 0, 0)),
            pl.BlockSpec((1, 1, 1, c), lambda i, j: (i, 0, 0, 0)),
            pl.BlockSpec((1, 1, 1, c), lambda i, j: (i, 0, 0, 0)),
            pl.BlockSpec((kp, NHIDDEN), lambda i, j: (0, 0)),
            pl.BlockSpec((1, NHIDDEN), lambda i, j: (0, 0)),
            pl.BlockSpec((9, NHIDDEN, 2 * c), lambda i, j: (0, 0, 0)),
            pl.BlockSpec((1, 2 * c), lambda i, j: (0, 0)),
        ],
        out_specs=pl.BlockSpec((1, row_tile, w, c), lambda i, j: (i, j, 0, 0)),
        scratch_shapes=[pltpu.VMEM((row_tile + 2, wp, NHIDDEN), jnp.bfloat16)],
        compiler_params=pltpu.CompilerParams(
            # two parallel axes so Mosaic can shard across v7x's 2 TensorCores
            dimension_semantics=("parallel", "parallel"),
            vmem_limit_bytes=VMEM_LIMIT_BYTES),
    )(x_nhwc, pose_tiles, mean, rstd, w1, b1, w2, b2)


# ---------------------------------------------------------------------------
# Glue: PyTorch-exact bicubic resize as two dense matmuls (rides the MXU)
# ---------------------------------------------------------------------------
def _cubic_weight(d, a=-0.75):
    d = jnp.abs(d)
    w1 = ((a + 2.0) * d - (a + 3.0)) * d * d + 1.0
    w2 = (((d - 5.0) * d + 8.0) * d - 4.0) * a
    return jnp.where(d <= 1.0, w1, jnp.where(d < 2.0, w2, 0.0))


def _bicubic_matrix(in_size, out_size):
    """(out, in) resampling matrix == F.interpolate(mode='bicubic',
    align_corners=False), with border-clamped taps accumulated."""
    scale = in_size / out_size
    o = jnp.arange(out_size, dtype=jnp.float32)
    src = (o + 0.5) * scale - 0.5
    base = jnp.floor(src)
    frac = src - base
    base = base.astype(jnp.int32)
    idx = jnp.clip(jnp.stack([base - 1, base, base + 1, base + 2], 0),
                   0, in_size - 1)                                   # (4, out)
    wts = jnp.stack([_cubic_weight(1.0 + frac), _cubic_weight(frac),
                     _cubic_weight(1.0 - frac), _cubic_weight(2.0 - frac)], 0)
    rows = jnp.broadcast_to(jnp.arange(out_size)[None, :], (4, out_size))
    return jnp.zeros((out_size, in_size), jnp.float32).at[rows, idx].add(wts)


def bicubic_resize(pose_nhwc, out_h, out_w):
    _, in_h, in_w, _ = pose_nhwc.shape
    rh = _bicubic_matrix(in_h, out_h)
    rw = _bicubic_matrix(in_w, out_w)
    y = jnp.einsum('Hh,nhwc->nHwc', rh, pose_nhwc)
    return jnp.einsum('Ww,nhwc->nhWc', rw, y)


# ---------------------------------------------------------------------------
# Glue: im2col + overlapping row tiles for the pose path (lane-dense K)
# ---------------------------------------------------------------------------
def _pose_row_tiles(pose_up, row_tile, k_pad, wp):
    n, h, w, cin = pose_up.shape
    t = h // row_tile
    pp = jnp.pad(pose_up, ((0, 0), (2, 2), (2, 2), (0, 0)))
    # im2col over the zero-padded activation grid of size (h+2, w+2); position
    # (i, j) corresponds to activation pixel (i-1, j-1).
    patches = [pp[:, dy:dy + h + 2, dx:dx + w + 2, :]
               for dy in range(3) for dx in range(3)]
    col = jnp.concatenate(patches, axis=-1)             # (n, h+2, w+2, 9*cin)
    col = jnp.pad(col, ((0, 0), (0, 0), (0, wp - (w + 2)),
                        (0, k_pad - 9 * cin)))
    rid = (jnp.arange(t)[:, None] * row_tile
           + jnp.arange(row_tile + 2)[None, :])         # overlapping row tiles
    tiles = col[:, rid]                                 # (n, t, TH+2, wp, k_pad)
    return tiles.reshape(n * t, row_tile + 2, wp, k_pad).astype(jnp.bfloat16)


# ---------------------------------------------------------------------------
# Parameters (PyTorch Conv2d default init) and weight packing
# ---------------------------------------------------------------------------
def init_params(key, texture_nc, norm_nc):
    def conv_init(kw, kb, cin, cout):
        fan_in = cin * 9
        bound = 1.0 / jnp.sqrt(jnp.float32(fan_in))
        w = jax.random.uniform(kw, (3, 3, cin, cout), jnp.float32, -bound, bound)
        b = jax.random.uniform(kb, (cout,), jnp.float32, -bound, bound)
        return w, b

    ks = jax.random.split(key, 6)
    w_s, b_s = conv_init(ks[0], ks[1], texture_nc, NHIDDEN)
    w_g, b_g = conv_init(ks[2], ks[3], NHIDDEN, norm_nc)
    w_b, b_b = conv_init(ks[4], ks[5], NHIDDEN, norm_nc)
    return dict(w_shared=w_s, b_shared=b_s,
                w_gamma=w_g, b_gamma=b_g, w_beta=w_b, b_beta=b_b)


def _prepare_weights(params, k_pad):
    cin = params["w_shared"].shape[2]
    norm_nc = params["w_gamma"].shape[3]
    w1 = params["w_shared"].reshape(9 * cin, NHIDDEN)
    w1 = jnp.pad(w1, ((0, k_pad - 9 * cin), (0, 0))).astype(jnp.bfloat16)
    b1 = params["b_shared"].reshape(1, NHIDDEN).astype(jnp.float32)
    # mlp_gamma / mlp_beta fused along Cout; module's 0.5 scale folded in
    # (power-of-two scale -> exact in bf16).
    w2 = jnp.concatenate([params["w_gamma"], params["w_beta"]], axis=-1) * 0.5
    w2 = w2.reshape(9, NHIDDEN, 2 * norm_nc).astype(jnp.bfloat16)
    b2 = (jnp.concatenate([params["b_gamma"], params["b_beta"]]) * 0.5
          ).reshape(1, 2 * norm_nc).astype(jnp.float32)
    return w1, b1, w2, b2


# ---------------------------------------------------------------------------
# SPADE forward (norm_type='instance')
# ---------------------------------------------------------------------------
def spade_forward(x_nchw, pose_nchw, params, row_tile=None):
    # TODO(synk): only norm_type='instance' is implemented; 'batch'/'syncbatch'
    # (cross-sample / cross-device running stats) are not.
    x = jnp.transpose(x_nchw, (0, 2, 3, 1)).astype(jnp.float32)   # NCHW -> NHWC
    pose = jnp.transpose(pose_nchw, (0, 2, 3, 1)).astype(jnp.float32)
    n, h, w, c = x.shape
    cin = pose.shape[-1]

    if row_tile is None:
        row_tile = _pick_row_tile(h)
    k_pad = max(32, ((9 * cin + 7) // 8) * 8)        # im2col K padded (27 -> 32)
    wp = ((w + 2 + 7) // 8) * 8                      # padded actv width (sublane-aligned)

    mean, rstd = instance_norm_stats(x, row_tile)
    pose_up = bicubic_resize(pose, h, w)             # F.interpolate (bicubic)
    pose_tiles = _pose_row_tiles(pose_up, row_tile, k_pad, wp)
    w1, b1, w2, b2 = _prepare_weights(params, k_pad)
    out = spade_fused(x, pose_tiles, mean, rstd, w1, b1, w2, b2, row_tile)
    return jnp.transpose(out, (0, 3, 1, 2))          # back to NCHW


if __name__ == "__main__":
    key = jax.random.PRNGKey(0)
    N, norm_nc, texture_nc = 2, 4, 3
    H = W = 16
    Hp = Wp = 8

    kx, kp, kw = jax.random.split(key, 3)
    x_nchw = jax.random.normal(kx, (N, norm_nc, H, W), jnp.float32)
    pose_nchw = jax.random.normal(kp, (N, texture_nc, Hp, Wp), jnp.float32)
    params = init_params(kw, texture_nc, norm_nc)

    out = jax.jit(spade_forward)(x_nchw, pose_nchw, params)
    out = jax.block_until_ready(out)
    assert out.shape == (N, norm_nc, H, W), out.shape
    assert out.dtype == jnp.float32
    print("KERNEL_OK")
</pallas_src>

<mosaic_0001>
module attributes {stable_mosaic.version = 11 : i64} {
  func.func @_in_stats_kernel(%arg0: i32, %arg1: i32, %arg2: memref<1x8x16x4xf32, #tpu.memory_space<vmem>>, %arg3: memref<1x1x1x4xf32, #tpu.memory_space<vmem>>, %arg4: memref<1x1x1x4xf32, #tpu.memory_space<vmem>>, %arg5: memref<1x4xf32, #tpu.memory_space<vmem>>, %arg6: memref<1x4xf32, #tpu.memory_space<vmem>>) attributes {dimension_semantics = [#tpu.dimension_semantics<parallel>, #tpu.dimension_semantics<arbitrary>], iteration_bounds = array<i64: 2, 2>, scalar_prefetch = 0 : i64, scratch_operands = 2 : i64, tpu.core_type = #tpu.core_type<tc>, window_params = [{transform_indices = @transform_0, window_bounds = array<i64: 1, 8, 16, 4>}, {transform_indices = @transform_1, window_bounds = array<i64: 1, 1, 1, 4>}, {transform_indices = @transform_2, window_bounds = array<i64: 1, 1, 1, 4>}]} {
    %c0_i32 = arith.constant 0 : i32
    %0 = arith.cmpi eq, %arg1, %c0_i32 : i32
    %1 = arith.extui %0 : i1 to i32
    %c0_i32_0 = arith.constant 0 : i32
    %2 = arith.cmpi ne, %1, %c0_i32_0 : i32
    scf.if %2 {
      %cst_14 = arith.constant 0.000000e+00 : f32
      %20 = vector.broadcast %cst_14 : f32 to vector<1x4xf32>
      %c0_15 = arith.constant 0 : index
      %c0_16 = arith.constant 0 : index
      %21 = vector.load %arg5[%c0_15, %c0_16] : memref<1x4xf32, #tpu.memory_space<vmem>>, vector<1x4xf32>
      tpu.vector_store %arg5[%c0_15, %c0_16], %20 {strides = array<i32>} : memref<1x4xf32, #tpu.memory_space<vmem>>, vector<1x4xf32>,
      %cst_17 = arith.constant 0.000000e+00 : f32
      %22 = vector.broadcast %cst_17 : f32 to vector<1x4xf32>
      %c0_18 = arith.constant 0 : index
      %c0_19 = arith.constant 0 : index
      %23 = vector.load %arg6[%c0_18, %c0_19] : memref<1x4xf32, #tpu.memory_space<vmem>>, vector<1x4xf32>
      tpu.vector_store %arg6[%c0_18, %c0_19], %22 {strides = array<i32>} : memref<1x4xf32, #tpu.memory_space<vmem>>, vector<1x4xf32>,
    } else {
    }
    %c0 = arith.constant 0 : index
    %c0_1 = arith.constant 0 : index
    %c0_2 = arith.constant 0 : index
    %c0_3 = arith.constant 0 : index
    %3 = vector.load %arg2[%c0, %c0_1, %c0_2, %c0_3] : memref<1x8x16x4xf32, #tpu.memory_space<vmem>>, vector<1x8x16x4xf32>
    %4 = vector.shape_cast %3 : vector<1x8x16x4xf32> to vector<8x16x4xf32>
    %5 = vector.shape_cast %4 : vector<8x16x4xf32> to vector<128x4xf32>
    %c0_4 = arith.constant 0 : index
    %c0_5 = arith.constant 0 : index
    %6 = vector.load %arg5[%c0_4, %c0_5] : memref<1x4xf32, #tpu.memory_space<vmem>>, vector<1x4xf32>
    %cst = arith.constant dense<0.000000e+00> : vector<4xf32>
    %7 = vector.multi_reduction <add>, %5, %cst [0] : vector<128x4xf32> to vector<4xf32>
    %8 = vector.shape_cast %7 : vector<4xf32> to vector<1x4xf32>
    %9 = arith.addf %6, %8 : vector<1x4xf32>
    %c0_6 = arith.constant 0 : index
    %c0_7 = arith.constant 0 : index
    %10 = vector.load %arg5[%c0_6, %c0_7] : memref<1x4xf32, #tpu.memory_space<vmem>>, vector<1x4xf32>
    tpu.vector_store %arg5[%c0_6, %c0_7], %9 {strides = array<i32>} : memref<1x4xf32, #tpu.memory_space<vmem>>, vector<1x4xf32>,
    %c0_8 = arith.constant 0 : index
    %c0_9 = arith.constant 0 : index
    %11 = vector.load %arg6[%c0_8, %c0_9] : memref<1x4xf32, #tpu.memory_space<vmem>>, vector<1x4xf32>
    %12 = arith.mulf %5, %5 : vector<128x4xf32>
    %cst_10 = arith.constant dense<0.000000e+00> : vector<4xf32>
    %13 = vector.multi_reduction <add>, %12, %cst_10 [0] : vector<128x4xf32> to vector<4xf32>
    %14 = vector.shape_cast %13 : vector<4xf32> to vector<1x4xf32>
    %15 = arith.addf %11, %14 : vector<1x4xf32>
    %c0_11 = arith.constant 0 : index
    %c0_12 = arith.constant 0 : index
    %16 = vector.load %arg6[%c0_11, %c0_12] : memref<1x4xf32, #tpu.memory_space<vmem>>, vector<1x4xf32>
    tpu.vector_store %arg6[%c0_11, %c0_12], %15 {strides = array<i32>} : memref<1x4xf32, #tpu.memory_space<vmem>>, vector<1x4xf32>,
    %c1_i32 = arith.constant 1 : i32
    %17 = arith.cmpi eq, %arg1, %c1_i32 : i32
    %18 = arith.extui %17 : i1 to i32
    %c0_i32_13 = arith.constant 0 : i32
    %19 = arith.cmpi ne, %18, %c0_i32_13 : i32
    scf.if %19 {
      %c0_14 = arith.constant 0 : index
      %c0_15 = arith.constant 0 : index
      %20 = vector.load %arg5[%c0_14, %c0_15] : memref<1x4xf32, #tpu.memory_space<vmem>>, vector<1x4xf32>
      %cst_16 = arith.constant 3.906250e-03 : f32
      %21 = vector.broadcast %cst_16 : f32 to vector<1x4xf32>
      %22 = arith.mulf %20, %21 : vector<1x4xf32>
      %c0_17 = arith.constant 0 : index
      %c0_18 = arith.constant 0 : index
      %23 = vector.load %arg6[%c0_17, %c0_18] : memref<1x4xf32, #tpu.memory_space<vmem>>, vector<1x4xf32>
      %cst_19 = arith.constant 3.906250e-03 : f32
      %24 = vector.broadcast %cst_19 : f32 to vector<1x4xf32>
      %25 = arith.mulf %23, %24 : vector<1x4xf32>
      %26 = arith.mulf %22, %22 : vector<1x4xf32>
      %27 = arith.subf %25, %26 : vector<1x4xf32>
      %cst_20 = arith.constant 0.000000e+00 : f32
      %28 = vector.broadcast %cst_20 : f32 to vector<1x4xf32>
      %29 = arith.maximumf %27, %28 : vector<1x4xf32>
      %30 = vector.shape_cast %22 : vector<1x4xf32> to vector<1x1x1x4xf32>
      %c0_21 = arith.constant 0 : index
      %c0_22 = arith.constant 0 : index
      %c0_23 = arith.constant 0 : index
      %c0_24 = arith.constant 0 : index
      %31 = vector.load %arg3[%c0_21, %c0_22, %c0_23, %c0_24] : memref<1x1x1x4xf32, #tpu.memory_space<vmem>>, vector<1x1x1x4xf32>
      tpu.vector_store %arg3[%c0_21, %c0_22, %c0_23, %c0_24], %30 {strides = array<i32>} : memref<1x1x1x4xf32, #tpu.memory_space<vmem>>, vector<1x1x1x4xf32>,
      %cst_25 = arith.constant 9.99999974E-6 : f32
      %32 = vector.broadcast %cst_25 : f32 to vector<1x4xf32>
      %33 = arith.addf %29, %32 : vector<1x4xf32>
      %34 = math.rsqrt %33 : vector<1x4xf32>
      %35 = vector.shape_cast %34 : vector<1x4xf32> to vector<1x1x1x4xf32>
      %c0_26 = arith.constant 0 : index
      %c0_27 = arith.constant 0 : index
      %c0_28 = arith.constant 0 : index
      %c0_29 = arith.constant 0 : index
      %36 = vector.load %arg4[%c0_26, %c0_27, %c0_28, %c0_29] : memref<1x1x1x4xf32, #tpu.memory_space<vmem>>, vector<1x1x1x4xf32>
      tpu.vector_store %arg4[%c0_26, %c0_27, %c0_28, %c0_29], %35 {strides = array<i32>} : memref<1x1x1x4xf32, #tpu.memory_space<vmem>>, vector<1x1x1x4xf32>,
    } else {
    }
    return
  }
  func.func @transform_0(%arg0: i32, %arg1: i32) -> (i32, i32, i32, i32) {
    %c0_i32 = arith.constant 0 : i32
    %c0_i32_0 = arith.constant 0 : i32
    %c0_i32_1 = arith.constant 0 : i32
    return %arg0, %arg1, %c0_i32, %c0_i32_0 : i32, i32, i32, i32
  }
  func.func @transform_1(%arg0: i32, %arg1: i32) -> (i32, i32, i32, i32) {
    %c0_i32 = arith.constant 0 : i32
    %c0_i32_0 = arith.constant 0 : i32
    %c0_i32_1 = arith.constant 0 : i32
    %c0_i32_2 = arith.constant 0 : i32
    return %arg0, %c0_i32, %c0_i32_0, %c0_i32_1 : i32, i32, i32, i32
  }
  func.func @transform_2(%arg0: i32, %arg1: i32) -> (i32, i32, i32, i32) {
    %c0_i32 = arith.constant 0 : i32
    %c0_i32_0 = arith.constant 0 : i32
    %c0_i32_1 = arith.constant 0 : i32
    %c0_i32_2 = arith.constant 0 : i32
    return %arg0, %c0_i32, %c0_i32_0, %c0_i32_1 : i32, i32, i32, i32
  }
}

module attributes {stable_mosaic.version = 11 : i64} {
  func.func @_spade_fused_kernel(%arg0: i32, %arg1: i32, %arg2: memref<1x8x16x4xf32, #tpu.memory_space<vmem>>, %arg3: memref<1x10x24x32xbf16, #tpu.memory_space<vmem>>, %arg4: memref<1x1x1x4xf32, #tpu.memory_space<vmem>>, %arg5: memref<1x1x1x4xf32, #tpu.memory_space<vmem>>, %arg6: memref<32x128xbf16, #tpu.memory_space<vmem>>, %arg7: memref<1x128xf32, #tpu.memory_space<vmem>>, %arg8: memref<9x128x8xbf16, #tpu.memory_space<vmem>>, %arg9: memref<1x8xf32, #tpu.memory_space<vmem>>, %arg10: memref<1x8x16x4xf32, #tpu.memory_space<vmem>>, %arg11: memref<10x24x128xbf16, #tpu.memory_space<vmem>>) attributes {dimension_semantics = [#tpu.dimension_semantics<parallel>, #tpu.dimension_semantics<parallel>], iteration_bounds = array<i64: 2, 2>, scalar_prefetch = 0 : i64, scratch_operands = 1 : i64, tpu.core_type = #tpu.core_type<tc>, window_params = [{transform_indices = @transform_0, window_bounds = array<i64: 1, 8, 16, 4>}, {transform_indices = @transform_1, window_bounds = array<i64: 1, 10, 24, 32>}, {transform_indices = @transform_2, window_bounds = array<i64: 1, 1, 1, 4>}, {transform_indices = @transform_3, window_bounds = array<i64: 1, 1, 1, 4>}, {pipeline_mode = #tpu.pipeline_mode<synchronous>, transform_indices = @transform_4, window_bounds = array<i64: 32, 128>}, {pipeline_mode = #tpu.pipeline_mode<synchronous>, transform_indices = @transform_5, window_bounds = array<i64: 1, 128>}, {pipeline_mode = #tpu.pipeline_mode<synchronous>, transform_indices = @transform_6, window_bounds = array<i64: 9, 128, 8>}, {pipeline_mode = #tpu.pipeline_mode<synchronous>, transform_indices = @transform_7, window_bounds = array<i64: 1, 8>}, {transform_indices = @transform_8, window_bounds = array<i64: 1, 8, 16, 4>}]} {
    %c0 = arith.constant 0 : index
    %c0_0 = arith.constant 0 : index
    %c0_1 = arith.constant 0 : index
    %c0_2 = arith.constant 0 : index
    %0 = vector.load %arg3[%c0, %c0_0, %c0_1, %c0_2] : memref<1x10x24x32xbf16, #tpu.memory_space<vmem>>, vector<1x10x24x32xbf16>
    %1 = vector.shape_cast %0 : vector<1x10x24x32xbf16> to vector<10x24x32xbf16>
    %2 = vector.shape_cast %1 : vector<10x24x32xbf16> to vector<240x32xbf16>
    %c0_3 = arith.constant 0 : index
    %c0_4 = arith.constant 0 : index
    %3 = vector.load %arg6[%c0_3, %c0_4] : memref<32x128xbf16, #tpu.memory_space<vmem>>, vector<32x128xbf16>
    %cst = arith.constant dense<0.000000e+00> : vector<240x128xf32>
    %4 = tpu.matmul %2, %3, %cst {dimension_numbers = #tpu.dot_dimension_numbers<[1], [0], [0], [1], [0, 0, 1, 1], [], []>} : vector<240x32xbf16>, vector<32x128xbf16>, vector<240x128xf32> -> vector<240x128xf32>
    %c0_5 = arith.constant 0 : index
    %c0_6 = arith.constant 0 : index
    %5 = vector.load %arg7[%c0_5, %c0_6] : memref<1x128xf32, #tpu.memory_space<vmem>>, vector<1x128xf32>
    %6 = vector.broadcast %5 : vector<1x128xf32> to vector<240x128xf32>
    %7 = arith.addf %4, %6 : vector<240x128xf32>
    %cst_7 = arith.constant 0.000000e+00 : f32
    %8 = vector.broadcast %cst_7 : f32 to vector<240x128xf32>
    %9 = arith.maximumf %7, %8 : vector<240x128xf32>
    %10 = vector.shape_cast %9 : vector<240x128xf32> to vector<10x24x128xf32>
    %c8_i32 = arith.constant 8 : i32
    %11 = arith.muli %arg1, %c8_i32 : i32
    %c1_i32 = arith.constant 1 : i32
    %12 = arith.subi %11, %c1_i32 : i32
    %13 = tpu.iota {dimensions = array<i32: 0>} : vector<10x1x1xi32>
    %14 = vector.broadcast %12 : i32 to vector<10x1x1xi32>
    %15 = arith.addi %14, %13 : vector<10x1x1xi32>
    %16 = tpu.iota {dimensions = array<i32: 1>} : vector<1x24x1xi32>
    %c1_i32_8 = arith.constant 1 : i32
    %17 = vector.broadcast %c1_i32_8 : i32 to vector<1x24x1xi32>
    %18 = arith.subi %16, %17 : vector<1x24x1xi32>
    %c0_i32 = arith.constant 0 : i32
    %19 = vector.broadcast %c0_i32 : i32 to vector<10x1x1xi32>
    %20 = arith.cmpi sge, %15, %19 : vector<10x1x1xi32>
    %c16_i32 = arith.constant 16 : i32
    %21 = vector.broadcast %c16_i32 : i32 to vector<10x1x1xi32>
    %22 = arith.cmpi slt, %15, %21 : vector<10x1x1xi32>
    %23 = arith.andi %20, %22 : vector<10x1x1xi1>
    %c0_i32_9 = arith.constant 0 : i32
    %24 = vector.broadcast %c0_i32_9 : i32 to vector<1x24x1xi32>
    %25 = arith.cmpi sge, %18, %24 : vector<1x24x1xi32>
    %26 = vector.broadcast %23 : vector<10x1x1xi1> to vector<10x24x1xi1>
    %27 = vector.broadcast %25 : vector<1x24x1xi1> to vector<10x24x1xi1>
    %28 = arith.andi %26, %27 : vector<10x24x1xi1>
    %c16_i32_10 = arith.constant 16 : i32
    %29 = vector.broadcast %c16_i32_10 : i32 to vector<1x24x1xi32>
    %30 = arith.cmpi slt, %18, %29 : vector<1x24x1xi32>
    %31 = vector.broadcast %30 : vector<1x24x1xi1> to vector<10x24x1xi1>
    %32 = arith.andi %28, %31 : vector<10x24x1xi1>
    %cst_11 = arith.constant 0.000000e+00 : f32
    %33 = vector.shape_cast %32 : vector<10x24x1xi1> to vector<10x24x1xi1>
    %34 = vector.broadcast %33 : vector<10x24x1xi1> to vector<10x24x128xi1>
    %35 = vector.broadcast %cst_11 : f32 to vector<10x24x128xf32>
    %36 = arith.select %34, %10, %35 : vector<10x24x128xi1>, vector<10x24x128xf32>
    %37 = arith.truncf %36 : vector<10x24x128xf32> to vector<10x24x128xbf16>
    %c0_12 = arith.constant 0 : index
    %c0_13 = arith.constant 0 : index
    %c0_14 = arith.constant 0 : index
    %38 = vector.load %arg11[%c0_12, %c0_13, %c0_14] : memref<10x24x128xbf16, #tpu.memory_space<vmem>>, vector<10x24x128xbf16>
    tpu.vector_store %arg11[%c0_12, %c0_13, %c0_14], %37 {strides = array<i32>} : memref<10x24x128xbf16, #tpu.memory_space<vmem>>, vector<10x24x128xbf16>,
    %cst_15 = arith.constant 0.000000e+00 : f32
    %39 = vector.broadcast %cst_15 : f32 to vector<128x8xf32>
    %c0_16 = arith.constant 0 : index
    %c0_17 = arith.constant 0 : index
    %c0_18 = arith.constant 0 : index
    %40 = vector.load %arg11[%c0_16, %c0_17, %c0_18] : memref<10x24x128xbf16, #tpu.memory_space<vmem>>, vector<8x16x128xbf16>
    %41 = vector.shape_cast %40 : vector<8x16x128xbf16> to vector<128x128xbf16>
    %c0_19 = arith.constant 0 : index
    %c0_20 = arith.constant 0 : index
    %c0_21 = arith.constant 0 : index
    %42 = vector.load %arg8[%c0_19, %c0_20, %c0_21] : memref<9x128x8xbf16, #tpu.memory_space<vmem>>, vector<1x128x8xbf16>
    %43 = vector.shape_cast %42 : vector<1x128x8xbf16> to vector<128x8xbf16>
    %cst_22 = arith.constant dense<0.000000e+00> : vector<128x8xf32>
    %44 = tpu.matmul %41, %43, %cst_22 {dimension_numbers = #tpu.dot_dimension_numbers<[1], [0], [0], [1], [0, 0, 1, 1], [], []>} : vector<128x128xbf16>, vector<128x8xbf16>, vector<128x8xf32> -> vector<128x8xf32>
    %45 = arith.addf %39, %44 : vector<128x8xf32>
    %c0_23 = arith.constant 0 : index
    %c1 = arith.constant 1 : index
    %c0_24 = arith.constant 0 : index
    %46 = vector.load %arg11[%c0_23, %c1, %c0_24] : memref<10x24x128xbf16, #tpu.memory_space<vmem>>, vector<8x16x128xbf16>
    %47 = vector.shape_cast %46 : vector<8x16x128xbf16> to vector<128x128xbf16>
    %c1_25 = arith.constant 1 : index
    %c0_26 = arith.constant 0 : index
    %c0_27 = arith.constant 0 : index
    %48 = vector.load %arg8[%c1_25, %c0_26, %c0_27] : memref<9x128x8xbf16, #tpu.memory_space<vmem>>, vector<1x128x8xbf16>
    %49 = vector.shape_cast %48 : vector<1x128x8xbf16> to vector<128x8xbf16>
    %cst_28 = arith.constant dense<0.000000e+00> : vector<128x8xf32>
    %50 = tpu.matmul %47, %49, %cst_28 {dimension_numbers = #tpu.dot_dimension_numbers<[1], [0], [0], [1], [0, 0, 1, 1], [], []>} : vector<128x128xbf16>, vector<128x8xbf16>, vector<128x8xf32> -> vector<128x8xf32>
    %51 = arith.addf %45, %50 : vector<128x8xf32>
    %c0_29 = arith.constant 0 : index
    %c2 = arith.constant 2 : index
    %c0_30 = arith.constant 0 : index
    %52 = vector.load %arg11[%c0_29, %c2, %c0_30] : memref<10x24x128xbf16, #tpu.memory_space<vmem>>, vector<8x16x128xbf16>
    %53 = vector.shape_cast %52 : vector<8x16x128xbf16> to vector<128x128xbf16>
    %c2_31 = arith.constant 2 : index
    %c0_32 = arith.constant 0 : index
    %c0_33 = arith.constant 0 : index
    %54 = vector.load %arg8[%c2_31, %c0_32, %c0_33] : memref<9x128x8xbf16, #tpu.memory_space<vmem>>, vector<1x128x8xbf16>
    %55 = vector.shape_cast %54 : vector<1x128x8xbf16> to vector<128x8xbf16>
    %cst_34 = arith.constant dense<0.000000e+00> : vector<128x8xf32>
    %56 = tpu.matmul %53, %55, %cst_34 {dimension_numbers = #tpu.dot_dimension_numbers<[1], [0], [0], [1], [0, 0, 1, 1], [], []>} : vector<128x128xbf16>, vector<128x8xbf16>, vector<128x8xf32> -> vector<128x8xf32>
    %57 = arith.addf %51, %56 : vector<128x8xf32>
    %c1_35 = arith.constant 1 : index
    %c0_36 = arith.constant 0 : index
    %c0_37 = arith.constant 0 : index
    %58 = vector.load %arg11[%c1_35, %c0_36, %c0_37] : memref<10x24x128xbf16, #tpu.memory_space<vmem>>, vector<8x16x128xbf16>
    %59 = vector.shape_cast %58 : vector<8x16x128xbf16> to vector<128x128xbf16>
    %c3 = arith.constant 3 : index
    %c0_38 = arith.constant 0 : index
    %c0_39 = arith.constant 0 : index
    %60 = vector.load %arg8[%c3, %c0_38, %c0_39] : memref<9x128x8xbf16, #tpu.memory_space<vmem>>, vector<1x128x8xbf16>
    %61 = vector.shape_cast %60 : vector<1x128x8xbf16> to vector<128x8xbf16>
    %cst_40 = arith.constant dense<0.000000e+00> : vector<128x8xf32>
    %62 = tpu.matmul %59, %61, %cst_40 {dimension_numbers = #tpu.dot_dimension_numbers<[1], [0], [0], [1], [0, 0, 1, 1], [], []>} : vector<128x128xbf16>, vector<128x8xbf16>, vector<128x8xf32> -> vector<128x8xf32>
    %63 = arith.addf %57, %62 : vector<128x8xf32>
    %c1_41 = arith.constant 1 : index
    %c1_42 = arith.constant 1 : index
    %c0_43 = arith.constant 0 : index
    %64 = vector.load %arg11[%c1_41, %c1_42, %c0_43] : memref<10x24x128xbf16, #tpu.memory_space<vmem>>, vector<8x16x128xbf16>
    %65 = vector.shape_cast %64 : vector<8x16x128xbf16> to vector<128x128xbf16>
    %c4 = arith.constant 4 : index
    %c0_44 = arith.constant 0 : index
    %c0_45 = arith.constant 0 : index
    %66 = vector.load %arg8[%c4, %c0_44, %c0_45] : memref<9x128x8xbf16, #tpu.memory_space<vmem>>, vector<1x128x8xbf16>
    %67 = vector.shape_cast %66 : vector<1x128x8xbf16> to vector<128x8xbf16>
    %cst_46 = arith.constant dense<0.000000e+00> : vector<128x8xf32>
    %68 = tpu.matmul %65, %67, %cst_46 {dimension_numbers = #tpu.dot_dimension_numbers<[1], [0], [0], [1], [0, 0, 1, 1], [], []>} : vector<128x128xbf16>, vector<128x8xbf16>, vector<128x8xf32> -> vector<128x8xf32>
    %69 = arith.addf %63, %68 : vector<128x8xf32>
    %c1_47 = arith.constant 1 : index
    %c2_48 = arith.constant 2 : index
    %c0_49 = arith.constant 0 : index
    %70 = vector.load %arg11[%c1_47, %c2_48, %c0_49] : memref<10x24x128xbf16, #tpu.memory_space<vmem>>, vector<8x16x128xbf16>
    %71 = vector.shape_cast %70 : vector<8x16x128xbf16> to vector<128x128xbf16>
    %c5 = arith.constant 5 : index
    %c0_50 = arith.constant 0 : index
    %c0_51 = arith.constant 0 : index
    %72 = vector.load %arg8[%c5, %c0_50, %c0_51] : memref<9x128x8xbf16, #tpu.memory_space<vmem>>, vector<1x128x8xbf16>
    %73 = vector.shape_cast %72 : vector<1x128x8xbf16> to vector<128x8xbf16>
    %cst_52 = arith.constant dense<0.000000e+00> : vector<128x8xf32>
    %74 = tpu.matmul %71, %73, %cst_52 {dimension_numbers = #tpu.dot_dimension_numbers<[1], [0], [0], [1], [0, 0, 1, 1], [], []>} : vector<128x128xbf16>, vector<128x8xbf16>, vector<128x8xf32> -> vector<128x8xf32>
    %75 = arith.addf %69, %74 : vector<128x8xf32>
    %c2_53 = arith.constant 2 : index
    %c0_54 = arith.constant 0 : index
    %c0_55 = arith.constant 0 : index
    %76 = vector.load %arg11[%c2_53, %c0_54, %c0_55] : memref<10x24x128xbf16, #tpu.memory_space<vmem>>, vector<8x16x128xbf16>
    %77 = vector.shape_cast %76 : vector<8x16x128xbf16> to vector<128x128xbf16>
    %c6 = arith.constant 6 : index
    %c0_56 = arith.constant 0 : index
    %c0_57 = arith.constant 0 : index
    %78 = vector.load %arg8[%c6, %c0_56, %c0_57] : memref<9x128x8xbf16, #tpu.memory_space<vmem>>, vector<1x128x8xbf16>
    %79 = vector.shape_cast %78 : vector<1x128x8xbf16> to vector<128x8xbf16>
    %cst_58 = arith.constant dense<0.000000e+00> : vector<128x8xf32>
    %80 = tpu.matmul %77, %79, %cst_58 {dimension_numbers = #tpu.dot_dimension_numbers<[1], [0], [0], [1], [0, 0, 1, 1], [], []>} : vector<128x128xbf16>, vector<128x8xbf16>, vector<128x8xf32> -> vector<128x8xf32>
    %81 = arith.addf %75, %80 : vector<128x8xf32>
    %c2_59 = arith.constant 2 : index
    %c1_60 = arith.constant 1 : index
    %c0_61 = arith.constant 0 : index
    %82 = vector.load %arg11[%c2_59, %c1_60, %c0_61] : memref<10x24x128xbf16, #tpu.memory_space<vmem>>, vector<8x16x128xbf16>
    %83 = vector.shape_cast %82 : vector<8x16x128xbf16> to vector<128x128xbf16>
    %c7 = arith.constant 7 : index
    %c0_62 = arith.constant 0 : index
    %c0_63 = arith.constant 0 : index
    %84 = vector.load %arg8[%c7, %c0_62, %c0_63] : memref<9x128x8xbf16, #tpu.memory_space<vmem>>, vector<1x128x8xbf16>
    %85 = vector.shape_cast %84 : vector<1x128x8xbf16> to vector<128x8xbf16>
    %cst_64 = arith.constant dense<0.000000e+00> : vector<128x8xf32>
    %86 = tpu.matmul %83, %85, %cst_64 {dimension_numbers = #tpu.dot_dimension_numbers<[1], [0], [0], [1], [0, 0, 1, 1], [], []>} : vector<128x128xbf16>, vector<128x8xbf16>, vector<128x8xf32> -> vector<128x8xf32>
    %87 = arith.addf %81, %86 : vector<128x8xf32>
    %c2_65 = arith.constant 2 : index
    %c2_66 = arith.constant 2 : index
    %c0_67 = arith.constant 0 : index
    %88 = vector.load %arg11[%c2_65, %c2_66, %c0_67] : memref<10x24x128xbf16, #tpu.memory_space<vmem>>, vector<8x16x128xbf16>
    %89 = vector.shape_cast %88 : vector<8x16x128xbf16> to vector<128x128xbf16>
    %c8 = arith.constant 8 : index
    %c0_68 = arith.constant 0 : index
    %c0_69 = arith.constant 0 : index
    %90 = vector.load %arg8[%c8, %c0_68, %c0_69] : memref<9x128x8xbf16, #tpu.memory_space<vmem>>, vector<1x128x8xbf16>
    %91 = vector.shape_cast %90 : vector<1x128x8xbf16> to vector<128x8xbf16>
    %cst_70 = arith.constant dense<0.000000e+00> : vector<128x8xf32>
    %92 = tpu.matmul %89, %91, %cst_70 {dimension_numbers = #tpu.dot_dimension_numbers<[1], [0], [0], [1], [0, 0, 1, 1], [], []>} : vector<128x128xbf16>, vector<128x8xbf16>, vector<128x8xf32> -> vector<128x8xf32>
    %93 = arith.addf %87, %92 : vector<128x8xf32>
    %c0_71 = arith.constant 0 : index
    %c0_72 = arith.constant 0 : index
    %94 = vector.load %arg9[%c0_71, %c0_72] : memref<1x8xf32, #tpu.memory_space<vmem>>, vector<1x8xf32>
    %95 = vector.broadcast %94 : vector<1x8xf32> to vector<128x8xf32>
    %96 = arith.addf %93, %95 : vector<128x8xf32>
    %97 = vector.shape_cast %96 : vector<128x8xf32> to vector<8x16x8xf32>
    %98 = vector.extract_strided_slice %97 {offsets = [0, 0, 0], sizes = [8, 16, 4], strides = [1, 1, 1]} : vector<8x16x8xf32> to vector<8x16x4xf32>
    %99 = vector.extract_strided_slice %97 {offsets = [0, 0, 4], sizes = [8, 16, 4], strides = [1, 1, 1]} : vector<8x16x8xf32> to vector<8x16x4xf32>
    %c0_73 = arith.constant 0 : index
    %c0_74 = arith.constant 0 : index
    %c0_75 = arith.constant 0 : index
    %c0_76 = arith.constant 0 : index
    %100 = vector.load %arg2[%c0_73, %c0_74, %c0_75, %c0_76] : memref<1x8x16x4xf32, #tpu.memory_space<vmem>>, vector<1x8x16x4xf32>
    %101 = vector.shape_cast %100 : vector<1x8x16x4xf32> to vector<8x16x4xf32>
    %c0_77 = arith.constant 0 : index
    %c0_78 = arith.constant 0 : index
    %c0_79 = arith.constant 0 : index
    %c0_80 = arith.constant 0 : index
    %102 = vector.load %arg4[%c0_77, %c0_78, %c0_79, %c0_80] : memref<1x1x1x4xf32, #tpu.memory_space<vmem>>, vector<1x1x1x4xf32>
    %103 = vector.shape_cast %102 : vector<1x1x1x4xf32> to vector<1x4xf32>
    %c0_81 = arith.constant 0 : index
    %c0_82 = arith.constant 0 : index
    %c0_83 = arith.constant 0 : index
    %c0_84 = arith.constant 0 : index
    %104 = vector.load %arg5[%c0_81, %c0_82, %c0_83, %c0_84] : memref<1x1x1x4xf32, #tpu.memory_space<vmem>>, vector<1x1x1x4xf32>
    %105 = vector.shape_cast %104 : vector<1x1x1x4xf32> to vector<1x4xf32>
    %106 = vector.shape_cast %103 : vector<1x4xf32> to vector<1x1x4xf32>
    %107 = vector.broadcast %106 : vector<1x1x4xf32> to vector<8x16x4xf32>
    %108 = arith.subf %101, %107 : vector<8x16x4xf32>
    %109 = vector.shape_cast %105 : vector<1x4xf32> to vector<1x1x4xf32>
    %110 = vector.broadcast %109 : vector<1x1x4xf32> to vector<8x16x4xf32>
    %111 = arith.mulf %108, %110 : vector<8x16x4xf32>
    %112 = arith.mulf %111, %98 : vector<8x16x4xf32>
    %113 = arith.addf %112, %99 : vector<8x16x4xf32>
    %c0_85 = arith.constant 0 : index
    %c0_86 = arith.constant 0 : index
    %c0_87 = arith.constant 0 : index
    %c0_88 = arith.constant 0 : index
    %114 = vector.load %arg10[%c0_85, %c0_86, %c0_87, %c0_88] : memref<1x8x16x4xf32, #tpu.memory_space<vmem>>, vector<1x8x16x4xf32>
    %115 = vector.shape_cast %114 : vector<1x8x16x4xf32> to vector<8x16x4xf32>
    %116 = vector.shape_cast %113 : vector<8x16x4xf32> to vector<1x8x16x4xf32>
    tpu.vector_store %arg10[%c0_85, %c0_86, %c0_87, %c0_88], %116 {strides = array<i32>} : memref<1x8x16x4xf32, #tpu.memory_space<vmem>>, vector<1x8x16x4xf32>,
    return
  }
  func.func @transform_0(%arg0: i32, %arg1: i32) -> (i32, i32, i32, i32) {
    %c0_i32 = arith.constant 0 : i32
    %c0_i32_0 = arith.constant 0 : i32
    %c0_i32_1 = arith.constant 0 : i32
    return %arg0, %arg1, %c0_i32, %c0_i32_0 : i32, i32, i32, i32
  }
  func.func @transform_1(%arg0: i32, %arg1: i32) -> (i32, i32, i32, i32) {
    %c2_i32 = arith.constant 2 : i32
    %0 = arith.muli %arg0, %c2_i32 : i32
    %1 = arith.addi %0, %arg1 : i32
    %c0_i32 = arith.constant 0 : i32
    %c0_i32_0 = arith.constant 0 : i32
    %c0_i32_1 = arith.constant 0 : i32
    %c0_i32_2 = arith.constant 0 : i32
    return %1, %c0_i32, %c0_i32_0, %c0_i32_1 : i32, i32, i32, i32
  }
  func.func @transform_2(%arg0: i32, %arg1: i32) -> (i32, i32, i32, i32) {
    %c0_i32 = arith.constant 0 : i32
    %c0_i32_0 = arith.constant 0 : i32
    %c0_i32_1 = arith.constant 0 : i32
    %c0_i32_2 = arith.constant 0 : i32
    return %arg0, %c0_i32, %c0_i32_0, %c0_i32_1 : i32, i32, i32, i32
  }
  func.func @transform_3(%arg0: i32, %arg1: i32) -> (i32, i32, i32, i32) {
    %c0_i32 = arith.constant 0 : i32
    %c0_i32_0 = arith.constant 0 : i32
    %c0_i32_1 = arith.constant 0 : i32
    %c0_i32_2 = arith.constant 0 : i32
    return %arg0, %c0_i32, %c0_i32_0, %c0_i32_1 : i32, i32, i32, i32
  }
  func.func @transform_4(%arg0: i32, %arg1: i32) -> (i32, i32) {
    %c0_i32 = arith.constant 0 : i32
    %c0_i32_0 = arith.constant 0 : i32
    %c0_i32_1 = arith.constant 0 : i32
    return %c0_i32, %c0_i32_0 : i32, i32
  }
  func.func @transform_5(%arg0: i32, %arg1: i32) -> (i32, i32) {
    %c0_i32 = arith.constant 0 : i32
    %c0_i32_0 = arith.constant 0 : i32
    %c0_i32_1 = arith.constant 0 : i32
    return %c0_i32, %c0_i32_0 : i32, i32
  }
  func.func @transform_6(%arg0: i32, %arg1: i32) -> (i32, i32, i32) {
    %c0_i32 = arith.constant 0 : i32
    %c0_i32_0 = arith.constant 0 : i32
    %c0_i32_1 = arith.constant 0 : i32
    %c0_i32_2 = arith.constant 0 : i32
    return %c0_i32, %c0_i32_0, %c0_i32_1 : i32, i32, i32
  }
  func.func @transform_7(%arg0: i32, %arg1: i32) -> (i32, i32) {
    %c0_i32 = arith.constant 0 : i32
    %c0_i32_0 = arith.constant 0 : i32
    %c0_i32_1 = arith.constant 0 : i32
    return %c0_i32, %c0_i32_0 : i32, i32
  }
  func.func @transform_8(%arg0: i32, %arg1: i32) -> (i32, i32, i32, i32) {
    %c0_i32 = arith.constant 0 : i32
    %c0_i32_0 = arith.constant 0 : i32
    %c0_i32_1 = arith.constant 0 : i32
    return %arg0, %arg1, %c0_i32, %c0_i32_0 : i32, i32, i32, i32
  }
}

</mosaic_0001>

<llo_original>
// kernel: spade_forward.2
$region0: #{spade_forward.2}
  #allocation0 [shape = 'u32[]', space=smem, size = 0x4, offset = 0x4, fixed_abs, tag = 'smem constant byte address 0x4 - core index']
  #allocation1 [shape = 'u32[72,128]{1,0:T(1,128)}', space=vmem, size = 0x9000, scoped, tag = 'internal scratch']
  #allocation2 [shape = 'f32[1,4]{1,0:T(1,128)}', space=vmem, size = 0x200, scoped, tag = 'scratch operand']
  #allocation3 [shape = 'f32[1,4]{1,0:T(1,128)}', space=vmem, size = 0x200, scoped, tag = 'scratch operand']
  %s0 = inlined_call_operand.vmem [shape: f32[2,16,16,4], index: 0, kind: input, shape index: {}]
  %s1 = inlined_call_operand.vmem [shape: f32[2,1,1,4], index: 1, kind: output, shape index: {0}]
  %s2 = inlined_call_operand.vmem [shape: f32[2,1,1,4], index: 2, kind: output, shape index: {1}]
  %3 = xla_tuple %s1, %s2
  %s4 = sld [smem:[#allocation0]]
  $region53: #{spade_forward.2} parent=0
    _
  %s6 = ssub.s32 1, %s4
  %s7 = scalar_select 0, %s6, %s4
  loop: start=0, step=1, limit=6
  $region2: #{spade_forward.2} parent=0 // loop_pre_header
    _
  $region3: #{spade_forward.2} parent=0 // loop_header
    %s9 = sphi 0, %s13
    %p10 = scmp.ge.s32.totalorder %s9, 6
    %s16 = sphi 0, %s28
    %s17 = sphi 0, %s24
    %s18 = sphi 0, %s16
    %s19 = sphi 0, %s17
    %s20 = sphi 0, %s18
    %s21 = sphi 0, %s19
    %s33 = sphi 0, %s35
    %s36 = sphi 0, %s33
    %s37 = sphi 0, %s36
    %s53 = sphi 0, %s37
    %s59 = sphi 0, %s61
    %s62 = sphi 0, %s59
    %s63 = sphi 0, %s62
    %s79 = sphi 0, %s63
    %s85 = sphi 0, %s87
    %s88 = sphi 0, %s85
    %s89 = sphi 0, %s88
    %s105 = sphi 0, %s89
  $region4: #{spade_forward.2} parent=0 // loop_header_branch
    %12 = sbr.rel (%p10) target = $region8
  $region5: #{spade_forward.2} parent=0 // loop_body
    %s14 = ssub.s32 %s9, 1
    %s15 = ssub.s32 %s9, 2
    %s22 = sadd.s32 1, %s17
    %p23 = scmp.ge.s32.totalorder %s22, 2
    %s24 = scalar_select %p23, 0, %s22
    %s25 = sadd.s32 1, %s16
    %s26 = scalar_select %p23, %s25, %s16
    %p27 = scmp.ge.s32.totalorder %s26, 2
    %s28 = scalar_select %p27, 0, %s26
    %s29 = ssub.s32 %s16, %s28
    %s30 = ssub.s32 %s17, %s24
    %s31 = sor.u32 %s29, %s30
    %p32 = scmp.eq.s32.totalorder %s31, 0
    %s34 = sadd.s32 %s33, 1
    %s35 = scalar_select %p32, %s33, %s34
    %p38 = pneg %p32
    %p39 = scmp.eq.s32.totalorder %s9, 3
    %p40 = por %p38, %p39
    %p41 = scmp.ne.s32.totalorder %s33, %s36
    %p42 = scmp.eq.s32.totalorder %s9, 0
    %p43 = por %p41, %p42
    %p44 = scmp.ne.s32.totalorder %s33, %s36
    %p45 = scmp.eq.s32.totalorder %s14, 3
    %p46 = por %p44, %p45
    %p47 = scmp.ne.s32.totalorder %s36, %s37
    %p48 = scmp.eq.s32.totalorder %s14, 0
    %p49 = por %p47, %p48
    %p50 = scmp.ne.s32.totalorder %s36, %s37
    %p51 = scmp.eq.s32.totalorder %s15, 3
    %p52 = por %p50, %p51
    %p54 = scmp.ne.s32.totalorder %s37, %s53
    %p55 = scmp.eq.s32.totalorder %s15, 0
    %p56 = por %p54, %p55
    %s57 = ssub.s32 %s16, %s28
    %p58 = scmp.eq.s32.totalorder %s57, 0
    %s60 = sadd.s32 %s59, 1
    %s61 = scalar_select %p58, %s59, %s60
    %p64 = pneg %p58
    %p65 = scmp.eq.s32.totalorder %s9, 3
    %p66 = por %p64, %p65
    %p67 = scmp.ne.s32.totalorder %s59, %s62
    %p68 = scmp.eq.s32.totalorder %s9, 0
    %p69 = por %p67, %p68
    %p70 = scmp.ne.s32.totalorder %s59, %s62
    %p71 = scmp.eq.s32.totalorder %s14, 3
    %p72 = por %p70, %p71
    %p73 = scmp.ne.s32.totalorder %s62, %s63
    %p74 = scmp.eq.s32.totalorder %s14, 0
    %p75 = por %p73, %p74
    %p76 = scmp.ne.s32.totalorder %s62, %s63
    %p77 = scmp.eq.s32.totalorder %s15, 3
    %p78 = por %p76, %p77
    %p80 = scmp.ne.s32.totalorder %s63, %s79
    %p81 = scmp.eq.s32.totalorder %s15, 0
    %p82 = por %p80, %p81
    %s83 = ssub.s32 %s16, %s28
    %p84 = scmp.eq.s32.totalorder %s83, 0
    %s86 = sadd.s32 %s85, 1
    %s87 = scalar_select %p84, %s85, %s86
    %p90 = pneg %p84
    %p91 = scmp.eq.s32.totalorder %s9, 3
    %p92 = por %p90, %p91
    %p93 = scmp.ne.s32.totalorder %s85, %s88
    %p94 = scmp.eq.s32.totalorder %s9, 0
    %p95 = por %p93, %p94
    %p96 = scmp.ne.s32.totalorder %s85, %s88
    %p97 = scmp.eq.s32.totalorder %s14, 3
    %p98 = por %p96, %p97
    %p99 = scmp.ne.s32.totalorder %s88, %s89
    %p100 = scmp.eq.s32.totalorder %s14, 0
    %p101 = por %p99, %p100
    %p102 = scmp.ne.s32.totalorder %s88, %s89
    %p103 = scmp.eq.s32.totalorder %s15, 3
    %p104 = por %p102, %p103
    %p106 = scmp.ne.s32.totalorder %s89, %s105
    %p107 = scmp.eq.s32.totalorder %s15, 0
    %p108 = por %p106, %p107
    %p109 = scmp.le.s32.totalorder 1, %s9
    %p110 = scmp.lt.s32.totalorder %s9, 5
    %p111 = pnand %p109, %p110
    %p112 = pneg %p111
    // Predicated region
    $region9: #{spade_forward.2} parent=5 // pred_check
      _
    $region10: #{spade_forward.2} parent=5 // pred_check_branch
      %114 = sbr.rel (%p111) target = $region12
    $region11: #{spade_forward.2} parent=5 // pred_region
      %s115 = ssub.s32 %s9, 1
    $region12: #{spade_forward.2} parent=5 // pred_fallthru
      _
    %p116 = scmp.lt.s32.totalorder %s9, 4
    // Predicated region
    $region13: #{spade_forward.2} parent=5 // pred_check
      %p117 = pneg %p116
    $region14: #{spade_forward.2} parent=5 // pred_check_branch
      %119 = sbr.rel (%p117) target = $region16
    $region15: #{spade_forward.2} parent=5 // pred_region
      // Predicated region
      $region17: #{spade_forward.2} parent=15 // pred_check
        %p120 = pneg %p43
      $region18: #{spade_forward.2} parent=15 // pred_check_branch
        %122 = sbr.rel (%p120) target = $region20
      $region19: #{spade_forward.2} parent=15 // pred_region
        %s123 = smul.u32 8, %s17
        %p124 = scmp.lt.s32.totalorder %s16, 1
        %s125 = scalar_select %p124, %s16, 1
        %p126 = scmp.lt.s32.totalorder %s123, 15
        %s127 = scalar_select %p126, %s123, 15
        %s128 = smul.addr %s127, 2
        %s129 = smul.addr %s125, 32
        %s130 = sadd.s32 %s128, %s129
        %s131 = smul.addr %s130, 8
        %s132 = scalar_lea.vmem %s0, %s131
        %s133 = smul.u32 8, %s17
      $region20: #{spade_forward.2} parent=15 // pred_fallthru
        _
    $region16: #{spade_forward.2} parent=5 // pred_fallthru
      _
    %p134 = scmp.le.s32.totalorder 1, %s9
    %p135 = scmp.lt.s32.totalorder %s9, 5
    %p136 = pnand %p134, %p135
    %p137 = pneg %p136
    // Predicated region
    $region21: #{spade_forward.2} parent=5 // pred_check
      _
    $region22: #{spade_forward.2} parent=5 // pred_check_branch
      %139 = sbr.rel (%p136) target = $region24
    $region23: #{spade_forward.2} parent=5 // pred_region
      %s140 = ssub.s32 %s9, 1
      %s141 = smul.u32 8, %s19
      %p142 = scmp.lt.s32.totalorder %s18, 1
      %s143 = scalar_select %p142, %s18, 1
      %p144 = scmp.lt.s32.totalorder %s141, 15
      %s145 = scalar_select %p144, %s141, 15
      %s146 = smul.addr %s145, 2
      %s147 = smul.addr %s143, 32
      %s148 = sadd.s32 %s146, %s147
      %s149 = smul.addr %s148, 8
      %s150 = scalar_lea.vmem %s0, %s149
      %p151 = pneg %p49
      %p152 = pneg %p46
      %p153 = pneg %p75
      %p154 = pneg %p72
      %p155 = scmp.lt.s32.totalorder %s18, 1
      %s156 = scalar_select %p155, %s18, 1
      %s157 = scalar_lea.vmem %s1, %s156
      %p158 = pneg %p101
      %p159 = pneg %p98
      %p160 = scmp.lt.s32.totalorder %s18, 1
      %s161 = scalar_select %p160, %s18, 1
      %s162 = scalar_lea.vmem %s2, %s161
      %s163 = smul.u32 8, %s19
      %p164 = scmp.lt.s32.totalorder %s18, 1
      %s165 = scalar_select %p164, %s18, 1
      %p166 = scmp.lt.s32.totalorder %s163, 15
      %s167 = scalar_select %p166, %s163, 15
      %s168 = smul.addr %s167, 2
      %s169 = smul.addr %s165, 32
      %s170 = sadd.s32 %s168, %s169
      %s171 = smul.addr %s170, 8
      %s172 = scalar_lea.vmem %s0, %s171
      %s173 = smul.u32 8, %s19
      %p174 = scmp.lt.s32.totalorder %s18, 1
      %s175 = scalar_select %p174, %s18, 1
      %s176 = scalar_lea.vmem %s1, %s175
      %p177 = scmp.lt.s32.totalorder %s18, 1
      %s178 = scalar_select %p177, %s18, 1
      %s179 = scalar_lea.vmem %s2, %s178
      %p180 = scmp.eq.s32.totalorder %s19, 0
      // Predicated region
      $region25: #{spade_forward.2} parent=23 // pred_check
        %p181 = pneg %p180
      $region26: #{spade_forward.2} parent=23 // pred_check_branch
        %183 = sbr.rel (%p181) target = $region28
      $region27: #{spade_forward.2} parent=23 // pred_region
        %vm184 = vcmask 24576
        %185 = vst.msk [vmem:[#allocation2] sm:$0x1] %vm184, 0.0
        %186 = vst.msk [vmem:[#allocation3] sm:$0x1] %vm184, 0.0
      $region28: #{spade_forward.2} parent=23 // pred_fallthru
        _
      %v187 = vld [vmem:[%s172] sm:$0xff]
      %v188 = vld [vmem:[%s172 + $0x8] sm:$0xff]
      %v189 = vld [vmem:[%s172 + $0x10] sm:$0xff]
      %v190 = vld [vmem:[%s172 + $0x18] sm:$0xff]
      %v191 = vld [vmem:[%s172 + $0x20] sm:$0xff]
      %v192 = vld [vmem:[%s172 + $0x28] sm:$0xff]
      %v193 = vld [vmem:[%s172 + $0x30] sm:$0xff]
      %v194 = vld [vmem:[%s172 + $0x38] sm:$0xff]
      %v195 = vld [vmem:[%s172 + $0x40] sm:$0xff]
      %v196 = vld [vmem:[%s172 + $0x48] sm:$0xff]
      %v197 = vld [vmem:[%s172 + $0x50] sm:$0xff]
      %v198 = vld [vmem:[%s172 + $0x58] sm:$0xff]
      %v199 = vld [vmem:[%s172 + $0x60] sm:$0xff]
      %v200 = vld [vmem:[%s172 + $0x68] sm:$0xff]
      %v201 = vld [vmem:[%s172 + $0x70] sm:$0xff]
      %v202 = vld [vmem:[%s172 + $0x78] sm:$0xff]
      %v203 = vld [vmem:[#allocation2] sm:$0x1]
      %vm204 = vcmask 31744
      %v205 = vsel %vm204, %v187, 0.0
      %v206 = vsel %vm204, %v188, 0.0
      %v207 = vadd.f32 %v205, %v206
      %v208 = vsel %vm204, %v189, 0.0
      %v209 = vadd.f32 %v207, %v208
      %v210 = vsel %vm204, %v190, 0.0
      %v211 = vadd.f32 %v209, %v210
      %v212 = vsel %vm204, %v191, 0.0
      %v213 = vadd.f32 %v211, %v212
      %v214 = vsel %vm204, %v192, 0.0
      %v215 = vadd.f32 %v213, %v214
      %v216 = vsel %vm204, %v193, 0.0
      %v217 = vadd.f32 %v215, %v216
      %v218 = vsel %vm204, %v194, 0.0
      %v219 = vadd.f32 %v217, %v218
      %v220 = vsel %vm204, %v195, 0.0
      %v221 = vadd.f32 %v219, %v220
      %v222 = vsel %vm204, %v196, 0.0
      %v223 = vadd.f32 %v221, %v222
      %v224 = vsel %vm204, %v197, 0.0
      %v225 = vadd.f32 %v223, %v224
      %v226 = vsel %vm204, %v198, 0.0
      %v227 = vadd.f32 %v225, %v226
      %v228 = vsel %vm204, %v199, 0.0
      %v229 = vadd.f32 %v227, %v228
      %v230 = vsel %vm204, %v200, 0.0
      %v231 = vadd.f32 %v229, %v230
      %v232 = vsel %vm204, %v201, 0.0
      %v233 = vadd.f32 %v231, %v232
      %v234 = vsel %vm204, %v202, 0.0
      %v235 = vadd.f32 %v233, %v234
      %v236 = vrot.slane %v235, 4
      %v237 = vadd.f32 %v235, %v236
      %v238 = vrot.slane %v237, 2
      %v239 = vadd.f32 %v237, %v238
      %v240 = vrot.slane %v239, 1
      %v241 = vadd.f32 %v239, %v240
      %v242 = vadd.f32 %v203, %v241
      %vm243 = vcmask 24576
      %244 = vst.msk [vmem:[#allocation2] sm:$0x1] %vm243, %v242
      %v245 = vld [vmem:[#allocation3] sm:$0x1]
      %v246 = vmul.f32 %v187, %v187
      %v247 = vmul.f32 %v188, %v188
      %v248 = vmul.f32 %v189, %v189
      %v249 = vmul.f32 %v190, %v190
      %v250 = vmul.f32 %v191, %v191
      %v251 = vmul.f32 %v192, %v192
      %v252 = vmul.f32 %v193, %v193
      %v253 = vmul.f32 %v194, %v194
      %v254 = vmul.f32 %v195, %v195
      %v255 = vmul.f32 %v196, %v196
      %v256 = vmul.f32 %v197, %v197
      %v257 = vmul.f32 %v198, %v198
      %v258 = vmul.f32 %v199, %v199
      %v259 = vmul.f32 %v200, %v200
      %v260 = vmul.f32 %v201, %v201
      %v261 = vmul.f32 %v202, %v202
      %v262 = vsel %vm204, %v246, 0.0
      %v263 = vsel %vm204, %v247, 0.0
      %v264 = vadd.f32 %v262, %v263
      %v265 = vsel %vm204, %v248, 0.0
      %v266 = vadd.f32 %v264, %v265
      %v267 = vsel %vm204, %v249, 0.0
      %v268 = vadd.f32 %v266, %v267
      %v269 = vsel %vm204, %v250, 0.0
      %v270 = vadd.f32 %v268, %v269
      %v271 = vsel %vm204, %v251, 0.0
      %v272 = vadd.f32 %v270, %v271
      %v273 = vsel %vm204, %v252, 0.0
      %v274 = vadd.f32 %v272, %v273
      %v275 = vsel %vm204, %v253, 0.0
      %v276 = vadd.f32 %v274, %v275
      %v277 = vsel %vm204, %v254, 0.0
      %v278 = vadd.f32 %v276, %v277
      %v279 = vsel %vm204, %v255, 0.0
      %v280 = vadd.f32 %v278, %v279
      %v281 = vsel %vm204, %v256, 0.0
      %v282 = vadd.f32 %v280, %v281
      %v283 = vsel %vm204, %v257, 0.0
      %v284 = vadd.f32 %v282, %v283
      %v285 = vsel %vm204, %v258, 0.0
      %v286 = vadd.f32 %v284, %v285
      %v287 = vsel %vm204, %v259, 0.0
      %v288 = vadd.f32 %v286, %v287
      %v289 = vsel %vm204, %v260, 0.0
      %v290 = vadd.f32 %v288, %v289
      %v291 = vsel %vm204, %v261, 0.0
      %v292 = vadd.f32 %v290, %v291
      %v293 = vrot.slane %v292, 4
      %v294 = vadd.f32 %v292, %v293
      %v295 = vrot.slane %v294, 2
      %v296 = vadd.f32 %v294, %v295
      %v297 = vrot.slane %v296, 1
      %v298 = vadd.f32 %v296, %v297
      %v299 = vadd.f32 %v245, %v298
      %300 = vst.msk [vmem:[#allocation3] sm:$0x1] %vm243, %v299
      %p301 = scmp.eq.s32.totalorder %s19, 1
      // Predicated region
      $region29: #{spade_forward.2} parent=23 // pred_check
        %p302 = pneg %p301
      $region30: #{spade_forward.2} parent=23 // pred_check_branch
        %304 = sbr.rel (%p302) target = $region32
      $region31: #{spade_forward.2} parent=23 // pred_region
        %v305 = vld [vmem:[#allocation2] sm:$0x1]
        %v306 = vmul.f32 %v305, 0.00390625
        %v307 = vld [vmem:[#allocation3] sm:$0x1]
        %v308 = vmul.f32 %v307, 0.00390625
        %v309 = vmul.f32 %v306, %v306
        %v310 = vsub.f32 %v308, %v309
        %v311 = vmax.f32 %v310, 0.0
        %312 = vst.msk [vmem:[%s176] sm:$0x1] %vm243, %v306
        %v313 = vadd.f32 %v311, 1e-05
        %v314 = vrsqrt.pop %v313
        %v315 = vmul.f32 %v314, %v313
        %v316 = vmul.f32 %v315, %v314
        %v317 = vmul.f32 0.5, %v316
        %v318 = vsub.f32 1.5, %v317
        %v319 = vmul.f32 %v314, %v318
        %vm320 = vweird.f32 %v313
        %vm321 = vweird.f32 %v314
        %vm322 = vmor %vm320, %vm321
        %v323 = vsel %vm322, %v314, %v319
        %324 = vst.msk [vmem:[%s179] sm:$0x1] %vm243, %v323
      $region32: #{spade_forward.2} parent=23 // pred_fallthru
        _
      %p325 = scmp.lt.s32.totalorder %s18, 1
      %s326 = scalar_select %p325, %s18, 1
      %s327 = scalar_lea.vmem %s1, %s326
      %p328 = scmp.lt.s32.totalorder %s18, 1
      %s329 = scalar_select %p328, %s18, 1
      %s330 = scalar_lea.vmem %s2, %s329
      // Predicated region
      $region33: #{spade_forward.2} parent=23 // pred_check
        %p331 = pneg %p72
      $region34: #{spade_forward.2} parent=23 // pred_check_branch
        %333 = sbr.rel (%p331) target = $region36
      $region35: #{spade_forward.2} parent=23 // pred_region
        _
      $region36: #{spade_forward.2} parent=23 // pred_fallthru
        _
      // Predicated region
      $region37: #{spade_forward.2} parent=23 // pred_check
        %p334 = pneg %p98
      $region38: #{spade_forward.2} parent=23 // pred_check_branch
        %336 = sbr.rel (%p334) target = $region40
      $region39: #{spade_forward.2} parent=23 // pred_region
        _
      $region40: #{spade_forward.2} parent=23 // pred_fallthru
        _
    $region24: #{spade_forward.2} parent=5 // pred_fallthru
      _
    %p337 = scmp.le.s32.totalorder 2, %s9
    // Predicated region
    $region41: #{spade_forward.2} parent=5 // pred_check
      %p338 = pneg %p337
    $region42: #{spade_forward.2} parent=5 // pred_check_branch
      %340 = sbr.rel (%p338) target = $region44
    $region43: #{spade_forward.2} parent=5 // pred_region
      %s341 = ssub.s32 %s9, 2
      // Predicated region
      $region45: #{spade_forward.2} parent=43 // pred_check
        %p342 = pneg %p78
      $region46: #{spade_forward.2} parent=43 // pred_check_branch
        %344 = sbr.rel (%p342) target = $region48
      $region47: #{spade_forward.2} parent=43 // pred_region
        %p345 = scmp.lt.s32.totalorder %s20, 1
        %s346 = scalar_select %p345, %s20, 1
        %s347 = scalar_lea.vmem %s1, %s346
      $region48: #{spade_forward.2} parent=43 // pred_fallthru
        _
      // Predicated region
      $region49: #{spade_forward.2} parent=43 // pred_check
        %p348 = pneg %p104
      $region50: #{spade_forward.2} parent=43 // pred_check_branch
        %350 = sbr.rel (%p348) target = $region52
      $region51: #{spade_forward.2} parent=43 // pred_region
        %p351 = scmp.lt.s32.totalorder %s20, 1
        %s352 = scalar_select %p351, %s20, 1
        %s353 = scalar_lea.vmem %s2, %s352
      $region52: #{spade_forward.2} parent=43 // pred_fallthru
        _
    $region44: #{spade_forward.2} parent=5 // pred_fallthru
      _
  $region6: #{spade_forward.2} parent=0 // loop_footer
    %s13 = sadd.s32 1, %s9
  $region7: #{spade_forward.2} parent=0 // loop_footer_branch
    %8 = sbr.rel target = $region3
  $region8: #{spade_forward.2} parent=0 // loop_exit
    _

// kernel: spade_forward.3
$region0: #{spade_forward.3}
  #allocation0 [shape = 'u32[]', space=smem, size = 0x4, offset = 0x4, fixed_abs, tag = 'smem constant byte address 0x4 - core index']
  #allocation1 [shape = 'u32[72,128]{1,0:T(1,128)}', space=vmem, size = 0x9000, scoped, tag = 'internal scratch']
  #allocation2 [shape = 'bf16[10,24,128]{2,1,0:T(8,128)(2,1)}', space=vmem, size = 0xf000, scoped, tag = 'scratch operand']
  %s0 = inlined_call_operand.vmem [shape: f32[2,16,16,4], index: 0, kind: input, shape index: {}]
  %s1 = inlined_call_operand.vmem [shape: bf16[4,10,24,32], index: 1, kind: input, shape index: {}]
  %s2 = inlined_call_operand.vmem [shape: f32[2,1,1,4], index: 2, kind: input, shape index: {}]
  %s3 = inlined_call_operand.vmem [shape: f32[2,1,1,4], index: 3, kind: input, shape index: {}]
  %s4 = inlined_call_operand.vmem [shape: bf16[32,128], index: 4, kind: input, shape index: {}]
  %s5 = inlined_call_operand.vmem [shape: f32[1,128], index: 5, kind: input, shape index: {}]
  %s6 = inlined_call_operand.vmem [shape: bf16[9,128,8], index: 6, kind: input, shape index: {}]
  %s7 = inlined_call_operand.vmem [shape: f32[1,8], index: 7, kind: input, shape index: {}]
  %s8 = inlined_call_operand.vmem [shape: f32[2,16,16,4], index: 8, kind: output, shape index: {}]
  %s9 = sld [smem:[#allocation0]]
  $region65: #{spade_forward.3} parent=0
    _
  %s11 = ssub.s32 1, %s9
  %s12 = scalar_select 0, %s11, %s9
  loop: start=0, step=1, limit=6
  $region2: #{spade_forward.3} parent=0 // loop_pre_header
    _
  $region3: #{spade_forward.3} parent=0 // loop_header
    %s14 = sphi 0, %s18
    %p15 = scmp.ge.s32.totalorder %s14, 6
    %s21 = sphi 0, %s33
    %s22 = sphi 0, %s29
    %s23 = sphi 0, %s21
    %s24 = sphi 0, %s22
    %s25 = sphi 0, %s23
    %s26 = sphi 0, %s24
    %s38 = sphi 0, %s40
    %s41 = sphi 0, %s38
    %s42 = sphi 0, %s41
    %s58 = sphi 0, %s42
    %s68 = sphi 0, %s70
    %s71 = sphi 0, %s68
    %s72 = sphi 0, %s71
    %s88 = sphi 0, %s72
    %s94 = sphi 0, %s96
    %s97 = sphi 0, %s94
    %s98 = sphi 0, %s97
    %s114 = sphi 0, %s98
    %s120 = sphi 0, %s122
    %s123 = sphi 0, %s120
    %s124 = sphi 0, %s123
    %s140 = sphi 0, %s124
    %s144 = sphi 0, %s144
    %s146 = sphi 0, %s144
    %s147 = sphi 0, %s146
    %s161 = sphi 0, %s147
    %s165 = sphi 0, %s165
    %s167 = sphi 0, %s165
    %s168 = sphi 0, %s167
    %s182 = sphi 0, %s168
    %s186 = sphi 0, %s186
    %s188 = sphi 0, %s186
    %s189 = sphi 0, %s188
    %s203 = sphi 0, %s189
    %s207 = sphi 0, %s207
    %s209 = sphi 0, %s207
    %s210 = sphi 0, %s209
    %s224 = sphi 0, %s210
    %s232 = sphi 0, %s234
    %s235 = sphi 0, %s232
    %s236 = sphi 0, %s235
    %s252 = sphi 0, %s236
  $region4: #{spade_forward.3} parent=0 // loop_header_branch
    %17 = sbr.rel (%p15) target = $region8
  $region5: #{spade_forward.3} parent=0 // loop_body
    %s19 = ssub.s32 %s14, 1
    %s20 = ssub.s32 %s14, 2
    %s27 = sadd.s32 1, %s22
    %p28 = scmp.ge.s32.totalorder %s27, 2
    %s29 = scalar_select %p28, 0, %s27
    %s30 = sadd.s32 1, %s21
    %s31 = scalar_select %p28, %s30, %s21
    %p32 = scmp.ge.s32.totalorder %s31, 2
    %s33 = scalar_select %p32, 0, %s31
    %s34 = ssub.s32 %s21, %s33
    %s35 = ssub.s32 %s22, %s29
    %s36 = sor.u32 %s34, %s35
    %p37 = scmp.eq.s32.totalorder %s36, 0
    %s39 = sadd.s32 %s38, 1
    %s40 = scalar_select %p37, %s38, %s39
    %p43 = pneg %p37
    %p44 = scmp.eq.s32.totalorder %s14, 3
    %p45 = por %p43, %p44
    %p46 = scmp.ne.s32.totalorder %s38, %s41
    %p47 = scmp.eq.s32.totalorder %s14, 0
    %p48 = por %p46, %p47
    %p49 = scmp.ne.s32.totalorder %s38, %s41
    %p50 = scmp.eq.s32.totalorder %s19, 3
    %p51 = por %p49, %p50
    %p52 = scmp.ne.s32.totalorder %s41, %s42
    %p53 = scmp.eq.s32.totalorder %s19, 0
    %p54 = por %p52, %p53
    %p55 = scmp.ne.s32.totalorder %s41, %s42
    %p56 = scmp.eq.s32.totalorder %s20, 3
    %p57 = por %p55, %p56
    %p59 = scmp.ne.s32.totalorder %s42, %s58
    %p60 = scmp.eq.s32.totalorder %s20, 0
    %p61 = por %p59, %p60
    %s62 = smul.u32 %s21, 2
    %s63 = sadd.s32 %s62, %s22
    %s64 = smul.u32 %s33, 2
    %s65 = sadd.s32 %s64, %s29
    %s66 = ssub.s32 %s63, %s65
    %p67 = scmp.eq.s32.totalorder %s66, 0
    %s69 = sadd.s32 %s68, 1
    %s70 = scalar_select %p67, %s68, %s69
    %p73 = pneg %p67
    %p74 = scmp.eq.s32.totalorder %s14, 3
    %p75 = por %p73, %p74
    %p76 = scmp.ne.s32.totalorder %s68, %s71
    %p77 = scmp.eq.s32.totalorder %s14, 0
    %p78 = por %p76, %p77
    %p79 = scmp.ne.s32.totalorder %s68, %s71
    %p80 = scmp.eq.s32.totalorder %s19, 3
    %p81 = por %p79, %p80
    %p82 = scmp.ne.s32.totalorder %s71, %s72
    %p83 = scmp.eq.s32.totalorder %s19, 0
    %p84 = por %p82, %p83
    %p85 = scmp.ne.s32.totalorder %s71, %s72
    %p86 = scmp.eq.s32.totalorder %s20, 3
    %p87 = por %p85, %p86
    %p89 = scmp.ne.s32.totalorder %s72, %s88
    %p90 = scmp.eq.s32.totalorder %s20, 0
    %p91 = por %p89, %p90
    %s92 = ssub.s32 %s21, %s33
    %p93 = scmp.eq.s32.totalorder %s92, 0
    %s95 = sadd.s32 %s94, 1
    %s96 = scalar_select %p93, %s94, %s95
    %p99 = pneg %p93
    %p100 = scmp.eq.s32.totalorder %s14, 3
    %p101 = por %p99, %p100
    %p102 = scmp.ne.s32.totalorder %s94, %s97
    %p103 = scmp.eq.s32.totalorder %s14, 0
    %p104 = por %p102, %p103
    %p105 = scmp.ne.s32.totalorder %s94, %s97
    %p106 = scmp.eq.s32.totalorder %s19, 3
    %p107 = por %p105, %p106
    %p108 = scmp.ne.s32.totalorder %s97, %s98
    %p109 = scmp.eq.s32.totalorder %s19, 0
    %p110 = por %p108, %p109
    %p111 = scmp.ne.s32.totalorder %s97, %s98
    %p112 = scmp.eq.s32.totalorder %s20, 3
    %p113 = por %p111, %p112
    %p115 = scmp.ne.s32.totalorder %s98, %s114
    %p116 = scmp.eq.s32.totalorder %s20, 0
    %p117 = por %p115, %p116
    %s118 = ssub.s32 %s21, %s33
    %p119 = scmp.eq.s32.totalorder %s118, 0
    %s121 = sadd.s32 %s120, 1
    %s122 = scalar_select %p119, %s120, %s121
    %p125 = pneg %p119
    %p126 = scmp.eq.s32.totalorder %s14, 3
    %p127 = por %p125, %p126
    %p128 = scmp.ne.s32.totalorder %s120, %s123
    %p129 = scmp.eq.s32.totalorder %s14, 0
    %p130 = por %p128, %p129
    %p131 = scmp.ne.s32.totalorder %s120, %s123
    %p132 = scmp.eq.s32.totalorder %s19, 3
    %p133 = por %p131, %p132
    %p134 = scmp.ne.s32.totalorder %s123, %s124
    %p135 = scmp.eq.s32.totalorder %s19, 0
    %p136 = por %p134, %p135
    %p137 = scmp.ne.s32.totalorder %s123, %s124
    %p138 = scmp.eq.s32.totalorder %s20, 3
    %p139 = por %p137, %p138
    %p141 = scmp.ne.s32.totalorder %s124, %s140
    %p142 = scmp.eq.s32.totalorder %s20, 0
    %p143 = por %p141, %p142
    %s145 = sadd.s32 %s144, 1
    %p148 = scmp.eq.s32.totalorder %s14, 3
    %p149 = scmp.ne.s32.totalorder %s144, %s146
    %p150 = scmp.eq.s32.totalorder %s14, 0
    %p151 = por %p149, %p150
    %p152 = scmp.ne.s32.totalorder %s144, %s146
    %p153 = scmp.eq.s32.totalorder %s19, 3
    %p154 = por %p152, %p153
    %p155 = scmp.ne.s32.totalorder %s146, %s147
    %p156 = scmp.eq.s32.totalorder %s19, 0
    %p157 = por %p155, %p156
    %p158 = scmp.ne.s32.totalorder %s146, %s147
    %p159 = scmp.eq.s32.totalorder %s20, 3
    %p160 = por %p158, %p159
    %p162 = scmp.ne.s32.totalorder %s147, %s161
    %p163 = scmp.eq.s32.totalorder %s20, 0
    %p164 = por %p162, %p163
    %s166 = sadd.s32 %s165, 1
    %p169 = scmp.eq.s32.totalorder %s14, 3
    %p170 = scmp.ne.s32.totalorder %s165, %s167
    %p171 = scmp.eq.s32.totalorder %s14, 0
    %p172 = por %p170, %p171
    %p173 = scmp.ne.s32.totalorder %s165, %s167
    %p174 = scmp.eq.s32.totalorder %s19, 3
    %p175 = por %p173, %p174
    %p176 = scmp.ne.s32.totalorder %s167, %s168
    %p177 = scmp.eq.s32.totalorder %s19, 0
    %p178 = por %p176, %p177
    %p179 = scmp.ne.s32.totalorder %s167, %s168
    %p180 = scmp.eq.s32.totalorder %s20, 3
    %p181 = por %p179, %p180
    %p183 = scmp.ne.s32.totalorder %s168, %s182
    %p184 = scmp.eq.s32.totalorder %s20, 0
    %p185 = por %p183, %p184
    %s187 = sadd.s32 %s186, 1
    %p190 = scmp.eq.s32.totalorder %s14, 3
    %p191 = scmp.ne.s32.totalorder %s186, %s188
    %p192 = scmp.eq.s32.totalorder %s14, 0
    %p193 = por %p191, %p192
    %p194 = scmp.ne.s32.totalorder %s186, %s188
    %p195 = scmp.eq.s32.totalorder %s19, 3
    %p196 = por %p194, %p195
    %p197 = scmp.ne.s32.totalorder %s188, %s189
    %p198 = scmp.eq.s32.totalorder %s19, 0
    %p199 = por %p197, %p198
    %p200 = scmp.ne.s32.totalorder %s188, %s189
    %p201 = scmp.eq.s32.totalorder %s20, 3
    %p202 = por %p200, %p201
    %p204 = scmp.ne.s32.totalorder %s189, %s203
    %p205 = scmp.eq.s32.totalorder %s20, 0
    %p206 = por %p204, %p205
    %s208 = sadd.s32 %s207, 1
    %p211 = scmp.eq.s32.totalorder %s14, 3
    %p212 = scmp.ne.s32.totalorder %s207, %s209
    %p213 = scmp.eq.s32.totalorder %s14, 0
    %p214 = por %p212, %p213
    %p215 = scmp.ne.s32.totalorder %s207, %s209
    %p216 = scmp.eq.s32.totalorder %s19, 3
    %p217 = por %p215, %p216
    %p218 = scmp.ne.s32.totalorder %s209, %s210
    %p219 = scmp.eq.s32.totalorder %s19, 0
    %p220 = por %p218, %p219
    %p221 = scmp.ne.s32.totalorder %s209, %s210
    %p222 = scmp.eq.s32.totalorder %s20, 3
    %p223 = por %p221, %p222
    %p225 = scmp.ne.s32.totalorder %s210, %s224
    %p226 = scmp.eq.s32.totalorder %s20, 0
    %p227 = por %p225, %p226
    %s228 = ssub.s32 %s21, %s33
    %s229 = ssub.s32 %s22, %s29
    %s230 = sor.u32 %s228, %s229
    %p231 = scmp.eq.s32.totalorder %s230, 0
    %s233 = sadd.s32 %s232, 1
    %s234 = scalar_select %p231, %s232, %s233
    %p237 = pneg %p231
    %p238 = scmp.eq.s32.totalorder %s14, 3
    %p239 = por %p237, %p238
    %p240 = scmp.ne.s32.totalorder %s232, %s235
    %p241 = scmp.eq.s32.totalorder %s14, 0
    %p242 = por %p240, %p241
    %p243 = scmp.ne.s32.totalorder %s232, %s235
    %p244 = scmp.eq.s32.totalorder %s19, 3
    %p245 = por %p243, %p244
    %p246 = scmp.ne.s32.totalorder %s235, %s236
    %p247 = scmp.eq.s32.totalorder %s19, 0
    %p248 = por %p246, %p247
    %p249 = scmp.ne.s32.totalorder %s235, %s236
    %p250 = scmp.eq.s32.totalorder %s20, 3
    %p251 = por %p249, %p250
    %p253 = scmp.ne.s32.totalorder %s236, %s252
    %p254 = scmp.eq.s32.totalorder %s20, 0
    %p255 = por %p253, %p254
    %p256 = scmp.le.s32.totalorder 1, %s14
    %p257 = scmp.lt.s32.totalorder %s14, 5
    %p258 = pnand %p256, %p257
    %p259 = pneg %p258
    // Predicated region
    $region9: #{spade_forward.3} parent=5 // pred_check
      _
    $region10: #{spade_forward.3} parent=5 // pred_check_branch
      %261 = sbr.rel (%p258) target = $region12
    $region11: #{spade_forward.3} parent=5 // pred_region
      %s262 = ssub.s32 %s14, 1
      // Predicated region
      $region13: #{spade_forward.3} parent=11 // pred_check
        %p263 = pneg %p157
      $region14: #{spade_forward.3} parent=11 // pred_check_branch
        %265 = sbr.rel (%p263) target = $region16
      $region15: #{spade_forward.3} parent=11 // pred_region
        _
      $region16: #{spade_forward.3} parent=11 // pred_fallthru
        _
      // Predicated region
      $region17: #{spade_forward.3} parent=11 // pred_check
        %p266 = pneg %p178
      $region18: #{spade_forward.3} parent=11 // pred_check_branch
        %268 = sbr.rel (%p266) target = $region20
      $region19: #{spade_forward.3} parent=11 // pred_region
        _
      $region20: #{spade_forward.3} parent=11 // pred_fallthru
        _
      // Predicated region
      $region21: #{spade_forward.3} parent=11 // pred_check
        %p269 = pneg %p199
      $region22: #{spade_forward.3} parent=11 // pred_check_branch
        %271 = sbr.rel (%p269) target = $region24
      $region23: #{spade_forward.3} parent=11 // pred_region
        _
      $region24: #{spade_forward.3} parent=11 // pred_fallthru
        _
      // Predicated region
      $region25: #{spade_forward.3} parent=11 // pred_check
        %p272 = pneg %p220
      $region26: #{spade_forward.3} parent=11 // pred_check_branch
        %274 = sbr.rel (%p272) target = $region28
      $region27: #{spade_forward.3} parent=11 // pred_region
        _
      $region28: #{spade_forward.3} parent=11 // pred_fallthru
        _
    $region12: #{spade_forward.3} parent=5 // pred_fallthru
      _
    %p275 = scmp.lt.s32.totalorder %s14, 4
    // Predicated region
    $region29: #{spade_forward.3} parent=5 // pred_check
      %p276 = pneg %p275
    $region30: #{spade_forward.3} parent=5 // pred_check_branch
      %278 = sbr.rel (%p276) target = $region32
    $region31: #{spade_forward.3} parent=5 // pred_region
      // Predicated region
      $region33: #{spade_forward.3} parent=31 // pred_check
        %p279 = pneg %p48
      $region34: #{spade_forward.3} parent=31 // pred_check_branch
        %281 = sbr.rel (%p279) target = $region36
      $region35: #{spade_forward.3} parent=31 // pred_region
        %s282 = smul.u32 8, %s22
        %p283 = scmp.lt.s32.totalorder %s21, 1
        %s284 = scalar_select %p283, %s21, 1
        %p285 = scmp.lt.s32.totalorder %s282, 15
        %s286 = scalar_select %p285, %s282, 15
        %s287 = smul.addr %s286, 2
        %s288 = smul.addr %s284, 32
        %s289 = sadd.s32 %s287, %s288
        %s290 = smul.addr %s289, 8
        %s291 = scalar_lea.vmem %s0, %s290
        %s292 = smul.u32 8, %s22
      $region36: #{spade_forward.3} parent=31 // pred_fallthru
        _
      // Predicated region
      $region37: #{spade_forward.3} parent=31 // pred_check
        %p293 = pneg %p78
      $region38: #{spade_forward.3} parent=31 // pred_check_branch
        %295 = sbr.rel (%p293) target = $region40
      $region39: #{spade_forward.3} parent=31 // pred_region
        %s296 = smul.u32 %s21, 2
        %s297 = sadd.s32 %s296, %s22
        %p298 = scmp.lt.s32.totalorder %s297, 3
        %s299 = scalar_select %p298, %s297, 3
        %s300 = smul.addr %s299, 30
        %s301 = smul.addr %s300, 4
        %s302 = scalar_lea.vmem %s1, %s301
        %s303 = smul.u32 %s21, 2
        %s304 = sadd.s32 %s303, %s22
      $region40: #{spade_forward.3} parent=31 // pred_fallthru
        _
      // Predicated region
      $region41: #{spade_forward.3} parent=31 // pred_check
        %p305 = pneg %p104
      $region42: #{spade_forward.3} parent=31 // pred_check_branch
        %307 = sbr.rel (%p305) target = $region44
      $region43: #{spade_forward.3} parent=31 // pred_region
        %p308 = scmp.lt.s32.totalorder %s21, 1
        %s309 = scalar_select %p308, %s21, 1
        %s310 = scalar_lea.vmem %s2, %s309
      $region44: #{spade_forward.3} parent=31 // pred_fallthru
        _
      // Predicated region
      $region45: #{spade_forward.3} parent=31 // pred_check
        %p311 = pneg %p130
      $region46: #{spade_forward.3} parent=31 // pred_check_branch
        %313 = sbr.rel (%p311) target = $region48
      $region47: #{spade_forward.3} parent=31 // pred_region
        %p314 = scmp.lt.s32.totalorder %s21, 1
        %s315 = scalar_select %p314, %s21, 1
        %s316 = scalar_lea.vmem %s3, %s315
      $region48: #{spade_forward.3} parent=31 // pred_fallthru
        _
    $region32: #{spade_forward.3} parent=5 // pred_fallthru
      _
    %p317 = scmp.le.s32.totalorder 1, %s14
    %p318 = scmp.lt.s32.totalorder %s14, 5
    %p319 = pnand %p317, %p318
    %p320 = pneg %p319
    // Predicated region
    $region49: #{spade_forward.3} parent=5 // pred_check
      _
    $region50: #{spade_forward.3} parent=5 // pred_check_branch
      %322 = sbr.rel (%p319) target = $region52
    $region51: #{spade_forward.3} parent=5 // pred_region
      %s323 = ssub.s32 %s14, 1
      %s324 = smul.u32 8, %s24
      %p325 = scmp.lt.s32.totalorder %s23, 1
      %s326 = scalar_select %p325, %s23, 1
      %p327 = scmp.lt.s32.totalorder %s324, 15
      %s328 = scalar_select %p327, %s324, 15
      %s329 = smul.addr %s328, 2
      %s330 = smul.addr %s326, 32
      %s331 = sadd.s32 %s329, %s330
      %s332 = smul.addr %s331, 8
      %s333 = scalar_lea.vmem %s0, %s332
      %p334 = pneg %p54
      %p335 = pneg %p51
      %s336 = smul.u32 %s23, 2
      %s337 = sadd.s32 %s336, %s24
      %p338 = scmp.lt.s32.totalorder %s337, 3
      %s339 = scalar_select %p338, %s337, 3
      %s340 = smul.addr %s339, 30
      %s341 = smul.addr %s340, 4
      %s342 = scalar_lea.vmem %s1, %s341
      %p343 = pneg %p84
      %p344 = pneg %p81
      %p345 = scmp.lt.s32.totalorder %s23, 1
      %s346 = scalar_select %p345, %s23, 1
      %s347 = scalar_lea.vmem %s2, %s346
      %p348 = pneg %p110
      %p349 = pneg %p107
      %p350 = scmp.lt.s32.totalorder %s23, 1
      %s351 = scalar_select %p350, %s23, 1
      %s352 = scalar_lea.vmem %s3, %s351
      %p353 = pneg %p136
      %p354 = pneg %p133
      %p355 = pneg %p157
      %p356 = pneg %p154
      %p357 = pneg %p178
      %p358 = pneg %p175
      %p359 = pneg %p199
      %p360 = pneg %p196
      %p361 = pneg %p220
      %p362 = pneg %p217
      %p363 = pneg %p248
      %p364 = pneg %p245
      %s365 = smul.u32 8, %s24
      %p366 = scmp.lt.s32.totalorder %s23, 1
      %s367 = scalar_select %p366, %s23, 1
      %p368 = scmp.lt.s32.totalorder %s365, 15
      %s369 = scalar_select %p368, %s365, 15
      %s370 = smul.addr %s369, 2
      %s371 = smul.addr %s367, 32
      %s372 = sadd.s32 %s370, %s371
      %s373 = smul.addr %s372, 8
      %s374 = scalar_lea.vmem %s8, %s373
      %s375 = smul.u32 8, %s24
      %p376 = scmp.lt.s32.totalorder %s23, 1
      %s377 = scalar_select %p376, %s23, 1
      %p378 = scmp.lt.s32.totalorder %s375, 15
      %s379 = scalar_select %p378, %s375, 15
      %s380 = smul.addr %s379, 2
      %s381 = smul.addr %s377, 32
      %s382 = sadd.s32 %s380, %s381
      %s383 = smul.addr %s382, 8
      %s384 = scalar_lea.vmem %s0, %s383
      %s385 = smul.u32 8, %s24
      %s386 = smul.u32 %s23, 2
      %s387 = sadd.s32 %s386, %s24
      %p388 = scmp.lt.s32.totalorder %s387, 3
      %s389 = scalar_select %p388, %s387, 3
      %s390 = smul.addr %s389, 30
      %s391 = smul.addr %s390, 4
      %s392 = scalar_lea.vmem %s1, %s391
      %s393 = smul.u32 %s23, 2
      %s394 = sadd.s32 %s393, %s24
      %p395 = scmp.lt.s32.totalorder %s23, 1
      %s396 = scalar_select %p395, %s23, 1
      %s397 = scalar_lea.vmem %s2, %s396
      %p398 = scmp.lt.s32.totalorder %s23, 1
      %s399 = scalar_select %p398, %s23, 1
      %s400 = scalar_lea.vmem %s3, %s399
      %s401 = smul.u32 8, %s24
      %p402 = scmp.lt.s32.totalorder %s23, 1
      %s403 = scalar_select %p402, %s23, 1
      %p404 = scmp.lt.s32.totalorder %s401, 15
      %s405 = scalar_select %p404, %s401, 15
      %s406 = smul.addr %s405, 2
      %s407 = smul.addr %s403, 32
      %s408 = sadd.s32 %s406, %s407
      %s409 = smul.addr %s408, 8
      %s410 = scalar_lea.vmem %s8, %s409
      %s411 = smul.u32 8, %s24
      %v413 = vld [vmem:[%s392] sm:$0xf]
      %v414 = vld [vmem:[%s392 + $0x4] sm:$0xf]
      %v415 = vld [vmem:[%s392 + $0x8] sm:$0xf]
      %v416 = vld [vmem:[%s392 + $0xc] sm:$0xf]
      %v417 = vld [vmem:[%s392 + $0x10] sm:$0xf]
      %v418 = vld [vmem:[%s392 + $0x14] sm:$0xf]
      %v419 = vld [vmem:[%s392 + $0x18] sm:$0xf]
      %v420 = vld [vmem:[%s392 + $0x1c] sm:$0xf]
      %v421 = vld [vmem:[%s392 + $0x20] sm:$0xf]
      %v422 = vld [vmem:[%s392 + $0x24] sm:$0xf]
      %v423 = vld [vmem:[%s392 + $0x28] sm:$0xf]
      %v424 = vld [vmem:[%s392 + $0x2c] sm:$0xf]
      %v425 = vld [vmem:[%s392 + $0x30] sm:$0xf]
      %v426 = vld [vmem:[%s392 + $0x34] sm:$0xf]
      %v427 = vld [vmem:[%s392 + $0x38] sm:$0xf]
      %v428 = vld [vmem:[%s392 + $0x3c] sm:$0xf]
      %v429 = vld [vmem:[%s392 + $0x40] sm:$0xf]
      %v430 = vld [vmem:[%s392 + $0x44] sm:$0xf]
      %v431 = vld [vmem:[%s392 + $0x48] sm:$0xf]
      %v432 = vld [vmem:[%s392 + $0x4c] sm:$0xf]
      %v433 = vld [vmem:[%s392 + $0x50] sm:$0xf]
      %v434 = vld [vmem:[%s392 + $0x54] sm:$0xf]
      %v435 = vld [vmem:[%s392 + $0x58] sm:$0xf]
      %v436 = vld [vmem:[%s392 + $0x5c] sm:$0xf]
      %v437 = vld [vmem:[%s392 + $0x60] sm:$0xf]
      %v438 = vld [vmem:[%s392 + $0x64] sm:$0xf]
      %v439 = vld [vmem:[%s392 + $0x68] sm:$0xf]
      %v440 = vld [vmem:[%s392 + $0x6c] sm:$0xf]
      %v441 = vld [vmem:[%s392 + $0x70] sm:$0xf]
      %v442 = vld [vmem:[%s392 + $0x74] sm:$0xf]
      %v443 = vld [vmem:[%s4] sm:$0xf]
      %v444 = vld [vmem:[%s4 + $0x4] sm:$0xf]
      %v445 = vld [vmem:[%s4 + $0x8] sm:$0xf]
      %v446 = vld [vmem:[%s4 + $0xc] sm:$0xf]
      %v447 = vld [vmem:[%s5] sm:$0x1]
      %v449 = vperm.slane %v447, 0
      %v481 = vunpack.c.l.b16 %v413
      %v482 = vunpack.c.l.b16 %v414
      %v483 = vunpack.c.l.b16 %v415
      %v484 = vunpack.c.l.b16 %v416
      %v485 = vunpack.c.l.b16 %v417
      %v486 = vunpack.c.l.b16 %v418
      %v487 = vunpack.c.l.b16 %v419
      %v488 = vunpack.c.l.b16 %v420
      %v489 = vunpack.c.l.b16 %v421
      %v490 = vunpack.c.l.b16 %v422
      %v491 = vunpack.c.l.b16 %v423
      %v492 = vunpack.c.l.b16 %v424
      %v493 = vunpack.c.l.b16 %v425
      %v494 = vunpack.c.l.b16 %v426
      %v495 = vunpack.c.l.b16 %v427
      %v496 = vunpack.c.l.b16 %v428
      %v497 = vunpack.c.l.b16 %v429
      %v498 = vunpack.c.l.b16 %v430
      %v499 = vunpack.c.l.b16 %v431
      %v500 = vunpack.c.l.b16 %v432
      %v501 = vunpack.c.l.b16 %v433
      %v502 = vunpack.c.l.b16 %v434
      %v503 = vunpack.c.l.b16 %v435
      %v504 = vunpack.c.l.b16 %v436
      %v505 = vunpack.c.l.b16 %v437
      %v506 = vunpack.c.l.b16 %v438
      %v507 = vunpack.c.l.b16 %v439
      %v508 = vunpack.c.l.b16 %v440
      %v509 = vunpack.c.l.b16 %v441
      %v510 = vunpack.c.l.b16 %v442
      %v511 = vpack.c.b16 %v482, %v481
      %v512 = vpack.c.b16 %v484, %v483
      %v513 = vpack.c.b16 %v486, %v485
      %v514 = vpack.c.b16 %v488, %v487
      %v515 = vpack.c.b16 %v490, %v489
      %v516 = vpack.c.b16 %v492, %v491
      %v517 = vpack.c.b16 %v494, %v493
      %v518 = vpack.c.b16 %v496, %v495
      %v519 = vpack.c.b16 %v498, %v497
      %v520 = vpack.c.b16 %v500, %v499
      %v521 = vpack.c.b16 %v502, %v501
      %v522 = vpack.c.b16 %v504, %v503
      %v523 = vpack.c.b16 %v506, %v505
      %v524 = vpack.c.b16 %v508, %v507
      %v525 = vpack.c.b16 %v510, %v509
      %v530 = vunpack.c.l.b16 %v443
      %v531 = vunpack.c.l.b16 %v444
      %v532 = vunpack.c.l.b16 %v445
      %v533 = vunpack.c.l.b16 %v446
      %v534 = vpack.c.b16 %v531, %v530
      %v535 = vpack.c.b16 %v533, %v532
      %vm538 = vcmask 261120
      %v540 = vsel %vm538, %v511, 0
      %v543 = vsel %vm538, %v512, 0
      %v546 = vsel %vm538, %v513, 0
      %v549 = vsel %vm538, %v514, 0
      %v552 = vsel %vm538, %v515, 0
      %v555 = vsel %vm538, %v516, 0
      %v558 = vsel %vm538, %v517, 0
      %v561 = vsel %vm538, %v518, 0
      %v564 = vsel %vm538, %v519, 0
      %v567 = vsel %vm538, %v520, 0
      %v570 = vsel %vm538, %v521, 0
      %v573 = vsel %vm538, %v522, 0
      %v576 = vsel %vm538, %v523, 0
      %v579 = vsel %vm538, %v524, 0
      %v582 = vsel %vm538, %v525, 0
      %584 = vmatpush.bf16.msra.mxu0 0
      %585 = vmatpush.bf16.msra.mxu0 0
      %586 = vmatpush.bf16.msra.mxu0 0
      %587 = vmatpush.bf16.msra.mxu0 0
      %588 = vmatpush.bf16.msra.mxu0 0
      %589 = vmatpush.bf16.msra.mxu0 0
      %590 = vmatpush.bf16.msra.mxu0 %v535
      %591 = vmatpush.bf16.msra.mxu0 %v534
      %592 = vmatmul.bf16.gmra.mxu0 %v540
      %v593 = vpop.f32.mrf.mxu0
      %v594 = vadd.f32 %v449, %v593
      %v595 = vpop.f32.mrf.mxu0
      %v596 = vadd.f32 %v449, %v595
      %597 = vmatmul.bf16.gmra.mxu0 %v543
      %v598 = vpop.f32.mrf.mxu0
      %v599 = vadd.f32 %v449, %v598
      %v600 = vpop.f32.mrf.mxu0
      %v601 = vadd.f32 %v449, %v600
      %602 = vmatmul.bf16.gmra.mxu0 %v546
      %v603 = vpop.f32.mrf.mxu0
      %v604 = vadd.f32 %v449, %v603
      %v605 = vpop.f32.mrf.mxu0
      %v606 = vadd.f32 %v449, %v605
      %607 = vmatmul.bf16.gmra.mxu0 %v549
      %v608 = vpop.f32.mrf.mxu0
      %v609 = vadd.f32 %v449, %v608
      %v610 = vpop.f32.mrf.mxu0
      %v611 = vadd.f32 %v449, %v610
      %612 = vmatmul.bf16.gmra.mxu0 %v552
      %v613 = vpop.f32.mrf.mxu0
      %v614 = vadd.f32 %v449, %v613
      %v615 = vpop.f32.mrf.mxu0
      %v616 = vadd.f32 %v449, %v615
      %617 = vmatmul.bf16.gmra.mxu0 %v555
      %v618 = vpop.f32.mrf.mxu0
      %v619 = vadd.f32 %v449, %v618
      %v620 = vpop.f32.mrf.mxu0
      %v621 = vadd.f32 %v449, %v620
      %622 = vmatmul.bf16.gmra.mxu0 %v558
      %v623 = vpop.f32.mrf.mxu0
      %v624 = vadd.f32 %v449, %v623
      %v625 = vpop.f32.mrf.mxu0
      %v626 = vadd.f32 %v449, %v625
      %627 = vmatmul.bf16.gmra.mxu0 %v561
      %v628 = vpop.f32.mrf.mxu0
      %v629 = vadd.f32 %v449, %v628
      %v630 = vpop.f32.mrf.mxu0
      %v631 = vadd.f32 %v449, %v630
      %632 = vmatmul.bf16.gmra.mxu0 %v564
      %v633 = vpop.f32.mrf.mxu0
      %v634 = vadd.f32 %v449, %v633
      %v635 = vpop.f32.mrf.mxu0
      %v636 = vadd.f32 %v449, %v635
      %637 = vmatmul.bf16.gmra.mxu0 %v567
      %v638 = vpop.f32.mrf.mxu0
      %v639 = vadd.f32 %v449, %v638
      %v640 = vpop.f32.mrf.mxu0
      %v641 = vadd.f32 %v449, %v640
      %642 = vmatmul.bf16.gmra.mxu0 %v570
      %v643 = vpop.f32.mrf.mxu0
      %v644 = vadd.f32 %v449, %v643
      %v645 = vpop.f32.mrf.mxu0
      %v646 = vadd.f32 %v449, %v645
      %647 = vmatmul.bf16.gmra.mxu0 %v573
      %v648 = vpop.f32.mrf.mxu0
      %v649 = vadd.f32 %v449, %v648
      %v650 = vpop.f32.mrf.mxu0
      %v651 = vadd.f32 %v449, %v650
      %652 = vmatmul.bf16.gmra.mxu0 %v576
      %v653 = vpop.f32.mrf.mxu0
      %v654 = vadd.f32 %v449, %v653
      %v655 = vpop.f32.mrf.mxu0
      %v656 = vadd.f32 %v449, %v655
      %657 = vmatmul.bf16.gmra.mxu0 %v579
      %v658 = vpop.f32.mrf.mxu0
      %v659 = vadd.f32 %v449, %v658
      %v660 = vpop.f32.mrf.mxu0
      %v661 = vadd.f32 %v449, %v660
      %662 = vmatmul.bf16.gmra.mxu0 %v582
      %v663 = vpop.f32.mrf.mxu0
      %v664 = vadd.f32 %v449, %v663
      %v665 = vpop.f32.mrf.mxu0
      %v666 = vadd.f32 %v449, %v665
      %667 = vdwg.mxu0
      %v668 = vmax.f32 %v594, 0.0
      %v669 = vmax.f32 %v596, 0.0
      %v670 = vmax.f32 %v599, 0.0
      %v671 = vmax.f32 %v601, 0.0
      %v672 = vmax.f32 %v604, 0.0
      %v673 = vmax.f32 %v606, 0.0
      %v674 = vmax.f32 %v609, 0.0
      %v675 = vmax.f32 %v611, 0.0
      %v676 = vmax.f32 %v614, 0.0
      %v677 = vmax.f32 %v616, 0.0
      %v678 = vmax.f32 %v619, 0.0
      %v679 = vmax.f32 %v621, 0.0
      %v680 = vmax.f32 %v624, 0.0
      %v681 = vmax.f32 %v626, 0.0
      %v682 = vmax.f32 %v629, 0.0
      %v683 = vmax.f32 %v631, 0.0
      %v684 = vmax.f32 %v634, 0.0
      %v685 = vmax.f32 %v636, 0.0
      %v686 = vmax.f32 %v639, 0.0
      %v687 = vmax.f32 %v641, 0.0
      %v688 = vmax.f32 %v644, 0.0
      %v689 = vmax.f32 %v646, 0.0
      %v690 = vmax.f32 %v649, 0.0
      %v691 = vmax.f32 %v651, 0.0
      %v692 = vmax.f32 %v654, 0.0
      %v693 = vmax.f32 %v656, 0.0
      %v694 = vmax.f32 %v659, 0.0
      %v695 = vmax.f32 %v661, 0.0
      %v696 = vmax.f32 %v664, 0.0
      %v697 = vmax.f32 %v666, 0.0
      %s698 = smul.u32 %s24, 8
      %s699 = ssub.s32 %s698, 1
      %v700 = vstv %s699
      %v701 = vadd.s32 %v700, 1
      %v702 = vadd.s32 %v700, 2
      %v703 = vadd.s32 %v700, 3
      %v704 = vadd.s32 %v700, 4
      %v705 = vadd.s32 %v700, 5
      %v706 = vadd.s32 %v700, 6
      %v707 = vadd.s32 %v700, 7
      %v708 = vadd.s32 %v700, 8
      %v709 = vadd.s32 %v700, 9
      %v710 = vlaneseq
      %v711 = vshrl.u32 %v710, 7
      %v712 = vadd.s32 %v711, 8
      %v713 = vadd.s32 %v711, 16
      %v714 = vsub.s32 %v711, 1
      %v715 = vsub.s32 %v712, 1
      %v716 = vsub.s32 %v713, 1
      %vm717 = vcmp.ge.s32.totalorder %v700, 0
      %vm718 = vcmp.ge.s32.totalorder %v701, 0
      %vm719 = vcmp.ge.s32.totalorder %v702, 0
      %vm720 = vcmp.ge.s32.totalorder %v703, 0
      %vm721 = vcmp.ge.s32.totalorder %v704, 0
      %vm722 = vcmp.ge.s32.totalorder %v705, 0
      %vm723 = vcmp.ge.s32.totalorder %v706, 0
      %vm724 = vcmp.ge.s32.totalorder %v707, 0
      %vm725 = vcmp.ge.s32.totalorder %v708, 0
      %vm726 = vcmp.ge.s32.totalorder %v709, 0
      %vm727 = vcmp.lt.s32.totalorder %v700, 16
      %vm728 = vcmp.lt.s32.totalorder %v701, 16
      %vm729 = vcmp.lt.s32.totalorder %v702, 16
      %vm730 = vcmp.lt.s32.totalorder %v703, 16
      %vm731 = vcmp.lt.s32.totalorder %v704, 16
      %vm732 = vcmp.lt.s32.totalorder %v705, 16
      %vm733 = vcmp.lt.s32.totalorder %v706, 16
      %vm734 = vcmp.lt.s32.totalorder %v707, 16
      %vm735 = vcmp.lt.s32.totalorder %v708, 16
      %vm736 = vcmp.lt.s32.totalorder %v709, 16
      %vm737 = vmand %vm717, %vm727
      %vm738 = vmand %vm718, %vm728
      %vm739 = vmand %vm719, %vm729
      %vm740 = vmand %vm720, %vm730
      %vm741 = vmand %vm721, %vm731
      %vm742 = vmand %vm722, %vm732
      %vm743 = vmand %vm723, %vm733
      %vm744 = vmand %vm724, %vm734
      %vm745 = vmand %vm725, %vm735
      %vm746 = vmand %vm726, %vm736
      %vm747 = vcmp.ge.s32.totalorder %v714, 0
      %vm748 = vcmp.ge.s32.totalorder %v715, 0
      %vm749 = vcmp.ge.s32.totalorder %v716, 0
      %v750 = vsel %vm737, 1, 0
      %v751 = vsel %vm738, 1, 0
      %v752 = vsel %vm739, 1, 0
      %v753 = vsel %vm740, 1, 0
      %v754 = vsel %vm741, 1, 0
      %v755 = vsel %vm742, 1, 0
      %v756 = vsel %vm743, 1, 0
      %v757 = vsel %vm744, 1, 0
      %v758 = vsel %vm745, 1, 0
      %v759 = vsel %vm746, 1, 0
      %vm760 = vcmp.eq.s32.totalorder %v750, 1
      %vm761 = vcmp.eq.s32.totalorder %v751, 1
      %vm762 = vcmp.eq.s32.totalorder %v752, 1
      %vm763 = vcmp.eq.s32.totalorder %v753, 1
      %vm764 = vcmp.eq.s32.totalorder %v754, 1
      %vm765 = vcmp.eq.s32.totalorder %v755, 1
      %vm766 = vcmp.eq.s32.totalorder %v756, 1
      %vm767 = vcmp.eq.s32.totalorder %v757, 1
      %vm768 = vcmp.eq.s32.totalorder %v758, 1
      %vm769 = vcmp.eq.s32.totalorder %v759, 1
      %v770 = vsel %vm747, 1, 0
      %v771 = vsel %vm748, 1, 0
      %v772 = vsel %vm749, 1, 0
      %vm773 = vcmp.eq.s32.totalorder %v770, 1
      %vm774 = vcmp.eq.s32.totalorder %v771, 1
      %vm775 = vcmp.eq.s32.totalorder %v772, 1
      %vm776 = vmand %vm760, %vm773
      %vm777 = vmand %vm760, %vm774
      %vm778 = vmand %vm760, %vm775
      %vm779 = vmand %vm761, %vm773
      %vm780 = vmand %vm761, %vm774
      %vm781 = vmand %vm761, %vm775
      %vm782 = vmand %vm762, %vm773
      %vm783 = vmand %vm762, %vm774
      %vm784 = vmand %vm762, %vm775
      %vm785 = vmand %vm763, %vm773
      %vm786 = vmand %vm763, %vm774
      %vm787 = vmand %vm763, %vm775
      %vm788 = vmand %vm764, %vm773
      %vm789 = vmand %vm764, %vm774
      %vm790 = vmand %vm764, %vm775
      %vm791 = vmand %vm765, %vm773
      %vm792 = vmand %vm765, %vm774
      %vm793 = vmand %vm765, %vm775
      %vm794 = vmand %vm766, %vm773
      %vm795 = vmand %vm766, %vm774
      %vm796 = vmand %vm766, %vm775
      %vm797 = vmand %vm767, %vm773
      %vm798 = vmand %vm767, %vm774
      %vm799 = vmand %vm767, %vm775
      %vm800 = vmand %vm768, %vm773
      %vm801 = vmand %vm768, %vm774
      %vm802 = vmand %vm768, %vm775
      %vm803 = vmand %vm769, %vm773
      %vm804 = vmand %vm769, %vm774
      %vm805 = vmand %vm769, %vm775
      %vm806 = vcmp.lt.s32.totalorder %v714, 16
      %vm807 = vcmp.lt.s32.totalorder %v715, 16
      %vm808 = vcmp.lt.s32.totalorder %v716, 16
      %v809 = vsel %vm806, 1, 0
      %v810 = vsel %vm807, 1, 0
      %v811 = vsel %vm808, 1, 0
      %vm812 = vcmp.eq.s32.totalorder %v809, 1
      %vm813 = vcmp.eq.s32.totalorder %v810, 1
      %vm814 = vcmp.eq.s32.totalorder %v811, 1
      %vm815 = vmand %vm776, %vm812
      %vm816 = vmand %vm777, %vm813
      %vm817 = vmand %vm778, %vm814
      %vm818 = vmand %vm779, %vm812
      %vm819 = vmand %vm780, %vm813
      %vm820 = vmand %vm781, %vm814
      %vm821 = vmand %vm782, %vm812
      %vm822 = vmand %vm783, %vm813
      %vm823 = vmand %vm784, %vm814
      %vm824 = vmand %vm785, %vm812
      %vm825 = vmand %vm786, %vm813
      %vm826 = vmand %vm787, %vm814
      %vm827 = vmand %vm788, %vm812
      %vm828 = vmand %vm789, %vm813
      %vm829 = vmand %vm790, %vm814
      %vm830 = vmand %vm791, %vm812
      %vm831 = vmand %vm792, %vm813
      %vm832 = vmand %vm793, %vm814
      %vm833 = vmand %vm794, %vm812
      %vm834 = vmand %vm795, %vm813
      %vm835 = vmand %vm796, %vm814
      %vm836 = vmand %vm797, %vm812
      %vm837 = vmand %vm798, %vm813
      %vm838 = vmand %vm799, %vm814
      %vm839 = vmand %vm800, %vm812
      %vm840 = vmand %vm801, %vm813
      %vm841 = vmand %vm802, %vm814
      %vm842 = vmand %vm803, %vm812
      %vm843 = vmand %vm804, %vm813
      %vm844 = vmand %vm805, %vm814
      %v845 = vsel %vm815, 1, 0
      %v846 = vsel %vm816, 1, 0
      %v847 = vsel %vm817, 1, 0
      %v848 = vsel %vm818, 1, 0
      %v849 = vsel %vm819, 1, 0
      %v850 = vsel %vm820, 1, 0
      %v851 = vsel %vm821, 1, 0
      %v852 = vsel %vm822, 1, 0
      %v853 = vsel %vm823, 1, 0
      %v854 = vsel %vm824, 1, 0
      %v855 = vsel %vm825, 1, 0
      %v856 = vsel %vm826, 1, 0
      %v857 = vsel %vm827, 1, 0
      %v858 = vsel %vm828, 1, 0
      %v859 = vsel %vm829, 1, 0
      %v860 = vsel %vm830, 1, 0
      %v861 = vsel %vm831, 1, 0
      %v862 = vsel %vm832, 1, 0
      %v863 = vsel %vm833, 1, 0
      %v864 = vsel %vm834, 1, 0
      %v865 = vsel %vm835, 1, 0
      %v866 = vsel %vm836, 1, 0
      %v867 = vsel %vm837, 1, 0
      %v868 = vsel %vm838, 1, 0
      %v869 = vsel %vm839, 1, 0
      %v870 = vsel %vm840, 1, 0
      %v871 = vsel %vm841, 1, 0
      %v872 = vsel %vm842, 1, 0
      %v873 = vsel %vm843, 1, 0
      %v874 = vsel %vm844, 1, 0
      %vm875 = vcmp.eq.s32.totalorder %v845, 1
      %vm876 = vcmp.eq.s32.totalorder %v846, 1
      %vm877 = vcmp.eq.s32.totalorder %v847, 1
      %vm878 = vcmp.eq.s32.totalorder %v848, 1
      %vm879 = vcmp.eq.s32.totalorder %v849, 1
      %vm880 = vcmp.eq.s32.totalorder %v850, 1
      %vm881 = vcmp.eq.s32.totalorder %v851, 1
      %vm882 = vcmp.eq.s32.totalorder %v852, 1
      %vm883 = vcmp.eq.s32.totalorder %v853, 1
      %vm884 = vcmp.eq.s32.totalorder %v854, 1
      %vm885 = vcmp.eq.s32.totalorder %v855, 1
      %vm886 = vcmp.eq.s32.totalorder %v856, 1
      %vm887 = vcmp.eq.s32.totalorder %v857, 1
      %vm888 = vcmp.eq.s32.totalorder %v858, 1
      %vm889 = vcmp.eq.s32.totalorder %v859, 1
      %vm890 = vcmp.eq.s32.totalorder %v860, 1
      %vm891 = vcmp.eq.s32.totalorder %v861, 1
      %vm892 = vcmp.eq.s32.totalorder %v862, 1
      %vm893 = vcmp.eq.s32.totalorder %v863, 1
      %vm894 = vcmp.eq.s32.totalorder %v864, 1
      %vm895 = vcmp.eq.s32.totalorder %v865, 1
      %vm896 = vcmp.eq.s32.totalorder %v866, 1
      %vm897 = vcmp.eq.s32.totalorder %v867, 1
      %vm898 = vcmp.eq.s32.totalorder %v868, 1
      %vm899 = vcmp.eq.s32.totalorder %v869, 1
      %vm900 = vcmp.eq.s32.totalorder %v870, 1
      %vm901 = vcmp.eq.s32.totalorder %v871, 1
      %vm902 = vcmp.eq.s32.totalorder %v872, 1
      %vm903 = vcmp.eq.s32.totalorder %v873, 1
      %vm904 = vcmp.eq.s32.totalorder %v874, 1
      %v905 = vsel %vm875, %v668, 0.0
      %v906 = vsel %vm876, %v669, 0.0
      %v907 = vsel %vm877, %v670, 0.0
      %v908 = vsel %vm878, %v671, 0.0
      %v909 = vsel %vm879, %v672, 0.0
      %v910 = vsel %vm880, %v673, 0.0
      %v911 = vsel %vm881, %v674, 0.0
      %v912 = vsel %vm882, %v675, 0.0
      %v913 = vsel %vm883, %v676, 0.0
      %v914 = vsel %vm884, %v677, 0.0
      %v915 = vsel %vm885, %v678, 0.0
      %v916 = vsel %vm886, %v679, 0.0
      %v917 = vsel %vm887, %v680, 0.0
      %v918 = vsel %vm888, %v681, 0.0
      %v919 = vsel %vm889, %v682, 0.0
      %v920 = vsel %vm890, %v683, 0.0
      %v921 = vsel %vm891, %v684, 0.0
      %v922 = vsel %vm892, %v685, 0.0
      %v923 = vsel %vm893, %v686, 0.0
      %v924 = vsel %vm894, %v687, 0.0
      %v925 = vsel %vm895, %v688, 0.0
      %v926 = vsel %vm896, %v689, 0.0
      %v927 = vsel %vm897, %v690, 0.0
      %v928 = vsel %vm898, %v691, 0.0
      %v929 = vsel %vm899, %v692, 0.0
      %v930 = vsel %vm900, %v693, 0.0
      %v931 = vsel %vm901, %v694, 0.0
      %v932 = vsel %vm902, %v695, 0.0
      %v933 = vsel %vm903, %v696, 0.0
      %v934 = vsel %vm904, %v697, 0.0
      %v935 = vpack.c.bf16 %v905, %v905
      %v936 = vpack.c.bf16 %v906, %v906
      %v937 = vpack.c.bf16 %v907, %v907
      %v938 = vpack.c.bf16 %v908, %v908
      %v939 = vpack.c.bf16 %v909, %v909
      %v940 = vpack.c.bf16 %v910, %v910
      %v941 = vpack.c.bf16 %v911, %v911
      %v942 = vpack.c.bf16 %v912, %v912
      %v943 = vpack.c.bf16 %v913, %v913
      %v944 = vpack.c.bf16 %v914, %v914
      %v945 = vpack.c.bf16 %v915, %v915
      %v946 = vpack.c.bf16 %v916, %v916
      %v947 = vpack.c.bf16 %v917, %v917
      %v948 = vpack.c.bf16 %v918, %v918
      %v949 = vpack.c.bf16 %v919, %v919
      %v950 = vpack.c.bf16 %v920, %v920
      %v951 = vpack.c.bf16 %v921, %v921
      %v952 = vpack.c.bf16 %v922, %v922
      %v953 = vpack.c.bf16 %v923, %v923
      %v954 = vpack.c.bf16 %v924, %v924
      %v955 = vpack.c.bf16 %v925, %v925
      %v956 = vpack.c.bf16 %v926, %v926
      %v957 = vpack.c.bf16 %v927, %v927
      %v958 = vpack.c.bf16 %v928, %v928
      %v959 = vpack.c.bf16 %v929, %v929
      %v960 = vpack.c.bf16 %v930, %v930
      %v961 = vpack.c.bf16 %v931, %v931
      %v962 = vpack.c.bf16 %v932, %v932
      %v963 = vpack.c.bf16 %v933, %v933
      %v964 = vpack.c.bf16 %v934, %v934
      %965 = vst [vmem:[#allocation2] sm:$0xf] %v935
      %966 = vst [vmem:[#allocation2 + $0x4] sm:$0xf] %v936
      %967 = vst [vmem:[#allocation2 + $0x8] sm:$0xf] %v937
      %968 = vst [vmem:[#allocation2 + $0xc] sm:$0xf] %v938
      %969 = vst [vmem:[#allocation2 + $0x10] sm:$0xf] %v939
      %970 = vst [vmem:[#allocation2 + $0x14] sm:$0xf] %v940
      %971 = vst [vmem:[#allocation2 + $0x18] sm:$0xf] %v941
      %972 = vst [vmem:[#allocation2 + $0x1c] sm:$0xf] %v942
      %973 = vst [vmem:[#allocation2 + $0x20] sm:$0xf] %v943
      %974 = vst [vmem:[#allocation2 + $0x24] sm:$0xf] %v944
      %975 = vst [vmem:[#allocation2 + $0x28] sm:$0xf] %v945
      %976 = vst [vmem:[#allocation2 + $0x2c] sm:$0xf] %v946
      %977 = vst [vmem:[#allocation2 + $0x30] sm:$0xf] %v947
      %978 = vst [vmem:[#allocation2 + $0x34] sm:$0xf] %v948
      %979 = vst [vmem:[#allocation2 + $0x38] sm:$0xf] %v949
      %980 = vst [vmem:[#allocation2 + $0x3c] sm:$0xf] %v950
      %981 = vst [vmem:[#allocation2 + $0x40] sm:$0xf] %v951
      %982 = vst [vmem:[#allocation2 + $0x44] sm:$0xf] %v952
      %983 = vst [vmem:[#allocation2 + $0x48] sm:$0xf] %v953
      %984 = vst [vmem:[#allocation2 + $0x4c] sm:$0xf] %v954
      %985 = vst [vmem:[#allocation2 + $0x50] sm:$0xf] %v955
      %986 = vst [vmem:[#allocation2 + $0x54] sm:$0xf] %v956
      %987 = vst [vmem:[#allocation2 + $0x58] sm:$0xf] %v957
      %988 = vst [vmem:[#allocation2 + $0x5c] sm:$0xf] %v958
      %989 = vst [vmem:[#allocation2 + $0x60] sm:$0xf] %v959
      %990 = vst [vmem:[#allocation2 + $0x64] sm:$0xf] %v960
      %991 = vst [vmem:[#allocation2 + $0x68] sm:$0xf] %v961
      %992 = vst [vmem:[#allocation2 + $0x6c] sm:$0xf] %v962
      %993 = vst [vmem:[#allocation2 + $0x70] sm:$0xf] %v963
      %994 = vst [vmem:[#allocation2 + $0x74] sm:$0xf] %v964
      %v995 = vld [vmem:[#allocation2] sm:$0xf]
      %v996 = vld [vmem:[#allocation2 + $0x4] sm:$0xf]
      %v997 = vld [vmem:[#allocation2 + $0xc] sm:$0xf]
      %v998 = vld [vmem:[#allocation2 + $0x10] sm:$0xf]
      %v999 = vld [vmem:[#allocation2 + $0x18] sm:$0xf]
      %v1000 = vld [vmem:[#allocation2 + $0x1c] sm:$0xf]
      %v1001 = vld [vmem:[#allocation2 + $0x24] sm:$0xf]
      %v1002 = vld [vmem:[#allocation2 + $0x28] sm:$0xf]
      %v1003 = vld [vmem:[#allocation2 + $0x30] sm:$0xf]
      %v1004 = vld [vmem:[#allocation2 + $0x34] sm:$0xf]
      %v1005 = vld [vmem:[#allocation2 + $0x3c] sm:$0xf]
      %v1006 = vld [vmem:[#allocation2 + $0x40] sm:$0xf]
      %v1007 = vld [vmem:[#allocation2 + $0x48] sm:$0xf]
      %v1008 = vld [vmem:[#allocation2 + $0x4c] sm:$0xf]
      %v1009 = vld [vmem:[#allocation2 + $0x54] sm:$0xf]
      %v1010 = vld [vmem:[#allocation2 + $0x58] sm:$0xf]
      %v1011 = vld [vmem:[%s6] sm:$0xf]
      %v1012 = vld [vmem:[%s6 + $0x4] sm:$0xf]
      %v1013 = vld [vmem:[%s6 + $0x8] sm:$0xf]
      %v1014 = vld [vmem:[%s6 + $0xc] sm:$0xf]
      %v1015 = vld [vmem:[%s6 + $0x10] sm:$0xf]
      %v1016 = vld [vmem:[%s6 + $0x14] sm:$0xf]
      %v1017 = vld [vmem:[%s6 + $0x18] sm:$0xf]
      %v1018 = vld [vmem:[%s6 + $0x1c] sm:$0xf]
      %v1019 = vld [vmem:[%s6 + $0x20] sm:$0xf]
      %v1020 = vld [vmem:[%s6 + $0x24] sm:$0xf]
      %v1021 = vld [vmem:[%s6 + $0x28] sm:$0xf]
      %v1022 = vld [vmem:[%s6 + $0x2c] sm:$0xf]
      %v1023 = vld [vmem:[%s6 + $0x30] sm:$0xf]
      %v1024 = vld [vmem:[%s6 + $0x34] sm:$0xf]
      %v1025 = vld [vmem:[%s6 + $0x38] sm:$0xf]
      %v1026 = vld [vmem:[%s6 + $0x3c] sm:$0xf]
      %v1027 = vld [vmem:[#allocation2 + $0x8] sm:$0x1]
      %v1028 = vld [vmem:[#allocation2 + $0x14] sm:$0x1]
      %v1029 = vld [vmem:[#allocation2 + $0x20] sm:$0x1]
      %v1030 = vld [vmem:[#allocation2 + $0x2c] sm:$0x1]
      %v1031 = vld [vmem:[#allocation2 + $0x38] sm:$0x1]
      %v1032 = vld [vmem:[#allocation2 + $0x44] sm:$0x1]
      %v1033 = vld [vmem:[#allocation2 + $0x50] sm:$0x1]
      %v1034 = vld [vmem:[#allocation2 + $0x5c] sm:$0x1]
      %vm1035 = vsmask.f32 3328
      %vm1036 = vsmask.f32 7440
      %vm1037 = vmor %vm1035, %vm1036
      %v1039 = vshrl.u32 %v995, 16
      %v1041 = vrot.slane %v1039, 4
      %v1042 = vshll.u32 %v995, 16
      %v1044 = vrot.slane %v1042, 5
      %v1045 = vor.u32 %v1041, %v1044
      %v1046 = vrot.slane %v1045, 4
      %v1048 = vshll.u32 %v996, 16
      %v1050 = vrot.slane %v1048, 5
      %v1051 = vsel %vm1037, %v1046, %v1050
      %v1052 = vshrl.u32 %v996, 16
      %v1054 = vrot.slane %v1052, 4
      %v1055 = vor.u32 %v1054, %v1050
      %v1056 = vrot.slane %v1055, 4
      %v1058 = vshll.u32 %v1027, 16
      %v1060 = vrot.slane %v1058, 5
      %v1061 = vsel %vm1037, %v1056, %v1060
      %v1063 = vshrl.u32 %v997, 16
      %v1065 = vrot.slane %v1063, 4
      %v1066 = vshll.u32 %v997, 16
      %v1068 = vrot.slane %v1066, 5
      %v1069 = vor.u32 %v1065, %v1068
      %v1070 = vrot.slane %v1069, 4
      %v1072 = vshll.u32 %v998, 16
      %v1074 = vrot.slane %v1072, 5
      %v1075 = vsel %vm1037, %v1070, %v1074
      %v1076 = vshrl.u32 %v998, 16
      %v1078 = vrot.slane %v1076, 4
      %v1079 = vor.u32 %v1078, %v1074
      %v1080 = vrot.slane %v1079, 4
      %v1082 = vshll.u32 %v1028, 16
      %v1084 = vrot.slane %v1082, 5
      %v1085 = vsel %vm1037, %v1080, %v1084
      %v1087 = vshrl.u32 %v999, 16
      %v1089 = vrot.slane %v1087, 4
      %v1090 = vshll.u32 %v999, 16
      %v1092 = vrot.slane %v1090, 5
      %v1093 = vor.u32 %v1089, %v1092
      %v1094 = vrot.slane %v1093, 4
      %v1096 = vshll.u32 %v1000, 16
      %v1098 = vrot.slane %v1096, 5
      %v1099 = vsel %vm1037, %v1094, %v1098
      %v1100 = vshrl.u32 %v1000, 16
      %v1102 = vrot.slane %v1100, 4
      %v1103 = vor.u32 %v1102, %v1098
      %v1104 = vrot.slane %v1103, 4
      %v1106 = vshll.u32 %v1029, 16
      %v1108 = vrot.slane %v1106, 5
      %v1109 = vsel %vm1037, %v1104, %v1108
      %v1111 = vshrl.u32 %v1001, 16
      %v1113 = vrot.slane %v1111, 4
      %v1114 = vshll.u32 %v1001, 16
      %v1116 = vrot.slane %v1114, 5
      %v1117 = vor.u32 %v1113, %v1116
      %v1118 = vrot.slane %v1117, 4
      %v1120 = vshll.u32 %v1002, 16
      %v1122 = vrot.slane %v1120, 5
      %v1123 = vsel %vm1037, %v1118, %v1122
      %v1124 = vshrl.u32 %v1002, 16
      %v1126 = vrot.slane %v1124, 4
      %v1127 = vor.u32 %v1126, %v1122
      %v1128 = vrot.slane %v1127, 4
      %v1130 = vshll.u32 %v1030, 16
      %v1132 = vrot.slane %v1130, 5
      %v1133 = vsel %vm1037, %v1128, %v1132
      %v1135 = vshrl.u32 %v1003, 16
      %v1137 = vrot.slane %v1135, 4
      %v1138 = vshll.u32 %v1003, 16
      %v1140 = vrot.slane %v1138, 5
      %v1141 = vor.u32 %v1137, %v1140
      %v1142 = vrot.slane %v1141, 4
      %v1144 = vshll.u32 %v1004, 16
      %v1146 = vrot.slane %v1144, 5
      %v1147 = vsel %vm1037, %v1142, %v1146
      %v1148 = vshrl.u32 %v1004, 16
      %v1150 = vrot.slane %v1148, 4
      %v1151 = vor.u32 %v1150, %v1146
      %v1152 = vrot.slane %v1151, 4
      %v1154 = vshll.u32 %v1031, 16
      %v1156 = vrot.slane %v1154, 5
      %v1157 = vsel %vm1037, %v1152, %v1156
      %v1159 = vshrl.u32 %v1005, 16
      %v1161 = vrot.slane %v1159, 4
      %v1162 = vshll.u32 %v1005, 16
      %v1164 = vrot.slane %v1162, 5
      %v1165 = vor.u32 %v1161, %v1164
      %v1166 = vrot.slane %v1165, 4
      %v1168 = vshll.u32 %v1006, 16
      %v1170 = vrot.slane %v1168, 5
      %v1171 = vsel %vm1037, %v1166, %v1170
      %v1172 = vshrl.u32 %v1006, 16
      %v1174 = vrot.slane %v1172, 4
      %v1175 = vor.u32 %v1174, %v1170
      %v1176 = vrot.slane %v1175, 4
      %v1178 = vshll.u32 %v1032, 16
      %v1180 = vrot.slane %v1178, 5
      %v1181 = vsel %vm1037, %v1176, %v1180
      %v1183 = vshrl.u32 %v1007, 16
      %v1185 = vrot.slane %v1183, 4
      %v1186 = vshll.u32 %v1007, 16
      %v1188 = vrot.slane %v1186, 5
      %v1189 = vor.u32 %v1185, %v1188
      %v1190 = vrot.slane %v1189, 4
      %v1192 = vshll.u32 %v1008, 16
      %v1194 = vrot.slane %v1192, 5
      %v1195 = vsel %vm1037, %v1190, %v1194
      %v1196 = vshrl.u32 %v1008, 16
      %v1198 = vrot.slane %v1196, 4
      %v1199 = vor.u32 %v1198, %v1194
      %v1200 = vrot.slane %v1199, 4
      %v1202 = vshll.u32 %v1033, 16
      %v1204 = vrot.slane %v1202, 5
      %v1205 = vsel %vm1037, %v1200, %v1204
      %v1207 = vshrl.u32 %v1009, 16
      %v1209 = vrot.slane %v1207, 4
      %v1210 = vshll.u32 %v1009, 16
      %v1212 = vrot.slane %v1210, 5
      %v1213 = vor.u32 %v1209, %v1212
      %v1214 = vrot.slane %v1213, 4
      %v1216 = vshll.u32 %v1010, 16
      %v1218 = vrot.slane %v1216, 5
      %v1219 = vsel %vm1037, %v1214, %v1218
      %v1220 = vshrl.u32 %v1010, 16
      %v1222 = vrot.slane %v1220, 4
      %v1223 = vor.u32 %v1222, %v1218
      %v1224 = vrot.slane %v1223, 4
      %v1226 = vshll.u32 %v1034, 16
      %v1228 = vrot.slane %v1226, 5
      %v1229 = vsel %vm1037, %v1224, %v1228
      %s1230 = scalar_lea.vmem %s6, 64
      %v1231 = vld [vmem:[%s1230] sm:$0xf]
      %v1232 = vld [vmem:[%s1230 + $0x4] sm:$0xf]
      %v1233 = vld [vmem:[%s1230 + $0x8] sm:$0xf]
      %v1234 = vld [vmem:[%s1230 + $0xc] sm:$0xf]
      %v1235 = vld [vmem:[%s1230 + $0x10] sm:$0xf]
      %v1236 = vld [vmem:[%s1230 + $0x14] sm:$0xf]
      %v1237 = vld [vmem:[%s1230 + $0x18] sm:$0xf]
      %v1238 = vld [vmem:[%s1230 + $0x1c] sm:$0xf]
      %v1239 = vld [vmem:[%s1230 + $0x20] sm:$0xf]
      %v1240 = vld [vmem:[%s1230 + $0x24] sm:$0xf]
      %v1241 = vld [vmem:[%s1230 + $0x28] sm:$0xf]
      %v1242 = vld [vmem:[%s1230 + $0x2c] sm:$0xf]
      %v1243 = vld [vmem:[%s1230 + $0x30] sm:$0xf]
      %v1244 = vld [vmem:[%s1230 + $0x34] sm:$0xf]
      %v1245 = vld [vmem:[%s1230 + $0x38] sm:$0xf]
      %v1246 = vld [vmem:[%s1230 + $0x3c] sm:$0xf]
      %v1247 = vunpack.c.l.b16 %v1051
      %v1248 = vunpack.c.l.b16 %v1061
      %v1249 = vunpack.c.l.b16 %v1075
      %v1250 = vunpack.c.l.b16 %v1085
      %v1251 = vunpack.c.l.b16 %v1099
      %v1252 = vunpack.c.l.b16 %v1109
      %v1253 = vunpack.c.l.b16 %v1123
      %v1254 = vunpack.c.l.b16 %v1133
      %v1255 = vunpack.c.l.b16 %v1147
      %v1256 = vunpack.c.l.b16 %v1157
      %v1257 = vunpack.c.l.b16 %v1171
      %v1258 = vunpack.c.l.b16 %v1181
      %v1259 = vunpack.c.l.b16 %v1195
      %v1260 = vunpack.c.l.b16 %v1205
      %v1261 = vunpack.c.l.b16 %v1219
      %v1262 = vunpack.c.l.b16 %v1229
      %v1263 = vpack.c.b16 %v1248, %v1247
      %v1264 = vpack.c.b16 %v1250, %v1249
      %v1265 = vpack.c.b16 %v1252, %v1251
      %v1266 = vpack.c.b16 %v1254, %v1253
      %v1267 = vpack.c.b16 %v1256, %v1255
      %v1268 = vpack.c.b16 %v1258, %v1257
      %v1269 = vpack.c.b16 %v1260, %v1259
      %v1270 = vpack.c.b16 %v1262, %v1261
      %v1295 = vunpack.c.l.b16 %v1231
      %v1296 = vunpack.c.l.b16 %v1232
      %v1297 = vunpack.c.l.b16 %v1233
      %v1298 = vunpack.c.l.b16 %v1234
      %v1299 = vunpack.c.l.b16 %v1235
      %v1300 = vunpack.c.l.b16 %v1236
      %v1301 = vunpack.c.l.b16 %v1237
      %v1302 = vunpack.c.l.b16 %v1238
      %v1303 = vunpack.c.l.b16 %v1239
      %v1304 = vunpack.c.l.b16 %v1240
      %v1305 = vunpack.c.l.b16 %v1241
      %v1306 = vunpack.c.l.b16 %v1242
      %v1307 = vunpack.c.l.b16 %v1243
      %v1308 = vunpack.c.l.b16 %v1244
      %v1309 = vunpack.c.l.b16 %v1245
      %v1310 = vunpack.c.l.b16 %v1246
      %v1311 = vpack.c.b16 %v1296, %v1295
      %v1312 = vpack.c.b16 %v1298, %v1297
      %v1313 = vpack.c.b16 %v1300, %v1299
      %v1314 = vpack.c.b16 %v1302, %v1301
      %v1315 = vpack.c.b16 %v1304, %v1303
      %v1316 = vpack.c.b16 %v1306, %v1305
      %v1317 = vpack.c.b16 %v1308, %v1307
      %v1318 = vpack.c.b16 %v1310, %v1309
      %1327 = vmatpush.bf16.msra.mxu0 %v1318
      %1328 = vmatpush.bf16.msra.mxu0 %v1317
      %1329 = vmatpush.bf16.msra.mxu0 %v1316
      %1330 = vmatpush.bf16.msra.mxu0 %v1315
      %1331 = vmatpush.bf16.msra.mxu0 %v1314
      %1332 = vmatpush.bf16.msra.mxu0 %v1313
      %1333 = vmatpush.bf16.msra.mxu0 %v1312
      %1334 = vmatpush.bf16.msra.mxu0 %v1311
      %1335 = vmatmul.bf16.gmra.mxu0 %v1263
      %v1336 = vpop.f32.mrf.mxu0
      %v1337 = vadd.f32 0.0, %v1336
      %v1338 = vpop.f32.mrf.mxu0
      %v1339 = vadd.f32 0.0, %v1338
      %1340 = vmatmul.bf16.gmra.mxu0 %v1264
      %v1341 = vpop.f32.mrf.mxu0
      %v1342 = vadd.f32 0.0, %v1341
      %v1343 = vpop.f32.mrf.mxu0
      %v1344 = vadd.f32 0.0, %v1343
      %1345 = vmatmul.bf16.gmra.mxu0 %v1265
      %v1346 = vpop.f32.mrf.mxu0
      %v1347 = vadd.f32 0.0, %v1346
      %v1348 = vpop.f32.mrf.mxu0
      %v1349 = vadd.f32 0.0, %v1348
      %1350 = vmatmul.bf16.gmra.mxu0 %v1266
      %v1351 = vpop.f32.mrf.mxu0
      %v1352 = vadd.f32 0.0, %v1351
      %v1353 = vpop.f32.mrf.mxu0
      %v1354 = vadd.f32 0.0, %v1353
      %1355 = vmatmul.bf16.gmra.mxu0 %v1267
      %v1356 = vpop.f32.mrf.mxu0
      %v1357 = vadd.f32 0.0, %v1356
      %v1358 = vpop.f32.mrf.mxu0
      %v1359 = vadd.f32 0.0, %v1358
      %1360 = vmatmul.bf16.gmra.mxu0 %v1268
      %v1361 = vpop.f32.mrf.mxu0
      %v1362 = vadd.f32 0.0, %v1361
      %v1363 = vpop.f32.mrf.mxu0
      %v1364 = vadd.f32 0.0, %v1363
      %1365 = vmatmul.bf16.gmra.mxu0 %v1269
      %v1366 = vpop.f32.mrf.mxu0
      %v1367 = vadd.f32 0.0, %v1366
      %v1368 = vpop.f32.mrf.mxu0
      %v1369 = vadd.f32 0.0, %v1368
      %1370 = vmatmul.bf16.gmra.mxu0 %v1270
      %v1371 = vpop.f32.mrf.mxu0
      %v1372 = vadd.f32 0.0, %v1371
      %v1373 = vpop.f32.mrf.mxu0
      %v1374 = vadd.f32 0.0, %v1373
      %1375 = vdwg.mxu0
      %v1392 = vunpack.c.l.b16 %v995
      %v1393 = vunpack.c.l.b16 %v996
      %v1394 = vunpack.c.l.b16 %v997
      %v1395 = vunpack.c.l.b16 %v998
      %v1396 = vunpack.c.l.b16 %v999
      %v1397 = vunpack.c.l.b16 %v1000
      %v1398 = vunpack.c.l.b16 %v1001
      %v1399 = vunpack.c.l.b16 %v1002
      %v1400 = vunpack.c.l.b16 %v1003
      %v1401 = vunpack.c.l.b16 %v1004
      %v1402 = vunpack.c.l.b16 %v1005
      %v1403 = vunpack.c.l.b16 %v1006
      %v1404 = vunpack.c.l.b16 %v1007
      %v1405 = vunpack.c.l.b16 %v1008
      %v1406 = vunpack.c.l.b16 %v1009
      %v1407 = vunpack.c.l.b16 %v1010
      %v1408 = vpack.c.b16 %v1393, %v1392
      %v1409 = vpack.c.b16 %v1395, %v1394
      %v1410 = vpack.c.b16 %v1397, %v1396
      %v1411 = vpack.c.b16 %v1399, %v1398
      %v1412 = vpack.c.b16 %v1401, %v1400
      %v1413 = vpack.c.b16 %v1403, %v1402
      %v1414 = vpack.c.b16 %v1405, %v1404
      %v1415 = vpack.c.b16 %v1407, %v1406
      %v1440 = vunpack.c.l.b16 %v1011
      %v1441 = vunpack.c.l.b16 %v1012
      %v1442 = vunpack.c.l.b16 %v1013
      %v1443 = vunpack.c.l.b16 %v1014
      %v1444 = vunpack.c.l.b16 %v1015
      %v1445 = vunpack.c.l.b16 %v1016
      %v1446 = vunpack.c.l.b16 %v1017
      %v1447 = vunpack.c.l.b16 %v1018
      %v1448 = vunpack.c.l.b16 %v1019
      %v1449 = vunpack.c.l.b16 %v1020
      %v1450 = vunpack.c.l.b16 %v1021
      %v1451 = vunpack.c.l.b16 %v1022
      %v1452 = vunpack.c.l.b16 %v1023
      %v1453 = vunpack.c.l.b16 %v1024
      %v1454 = vunpack.c.l.b16 %v1025
      %v1455 = vunpack.c.l.b16 %v1026
      %v1456 = vpack.c.b16 %v1441, %v1440
      %v1457 = vpack.c.b16 %v1443, %v1442
      %v1458 = vpack.c.b16 %v1445, %v1444
      %v1459 = vpack.c.b16 %v1447, %v1446
      %v1460 = vpack.c.b16 %v1449, %v1448
      %v1461 = vpack.c.b16 %v1451, %v1450
      %v1462 = vpack.c.b16 %v1453, %v1452
      %v1463 = vpack.c.b16 %v1455, %v1454
      %1472 = vmatpush.bf16.msra.mxu0 %v1463
      %1473 = vmatpush.bf16.msra.mxu0 %v1462
      %1474 = vmatpush.bf16.msra.mxu0 %v1461
      %1475 = vmatpush.bf16.msra.mxu0 %v1460
      %1476 = vmatpush.bf16.msra.mxu0 %v1459
      %1477 = vmatpush.bf16.msra.mxu0 %v1458
      %1478 = vmatpush.bf16.msra.mxu0 %v1457
      %1479 = vmatpush.bf16.msra.mxu0 %v1456
      %1480 = vmatmul.bf16.gmra.mxu0 %v1408
      %v1481 = vpop.f32.mrf.mxu0
      %v1482 = vadd.f32 %v1337, %v1481
      %v1483 = vpop.f32.mrf.mxu0
      %v1484 = vadd.f32 %v1339, %v1483
      %1485 = vmatmul.bf16.gmra.mxu0 %v1409
      %v1486 = vpop.f32.mrf.mxu0
      %v1487 = vadd.f32 %v1342, %v1486
      %v1488 = vpop.f32.mrf.mxu0
      %v1489 = vadd.f32 %v1344, %v1488
      %1490 = vmatmul.bf16.gmra.mxu0 %v1410
      %v1491 = vpop.f32.mrf.mxu0
      %v1492 = vadd.f32 %v1347, %v1491
      %v1493 = vpop.f32.mrf.mxu0
      %v1494 = vadd.f32 %v1349, %v1493
      %1495 = vmatmul.bf16.gmra.mxu0 %v1411
      %v1496 = vpop.f32.mrf.mxu0
      %v1497 = vadd.f32 %v1352, %v1496
      %v1498 = vpop.f32.mrf.mxu0
      %v1499 = vadd.f32 %v1354, %v1498
      %1500 = vmatmul.bf16.gmra.mxu0 %v1412
      %v1501 = vpop.f32.mrf.mxu0
      %v1502 = vadd.f32 %v1357, %v1501
      %v1503 = vpop.f32.mrf.mxu0
      %v1504 = vadd.f32 %v1359, %v1503
      %1505 = vmatmul.bf16.gmra.mxu0 %v1413
      %v1506 = vpop.f32.mrf.mxu0
      %v1507 = vadd.f32 %v1362, %v1506
      %v1508 = vpop.f32.mrf.mxu0
      %v1509 = vadd.f32 %v1364, %v1508
      %1510 = vmatmul.bf16.gmra.mxu0 %v1414
      %v1511 = vpop.f32.mrf.mxu0
      %v1512 = vadd.f32 %v1367, %v1511
      %v1513 = vpop.f32.mrf.mxu0
      %v1514 = vadd.f32 %v1369, %v1513
      %1515 = vmatmul.bf16.gmra.mxu0 %v1415
      %v1516 = vpop.f32.mrf.mxu0
      %v1517 = vadd.f32 %v1372, %v1516
      %v1518 = vpop.f32.mrf.mxu0
      %v1519 = vadd.f32 %v1374, %v1518
      %1520 = vdwg.mxu0
      %v1521 = vld [vmem:[#allocation2] sm:$0xe]
      %v1522 = vld [vmem:[#allocation2 + $0xc] sm:$0xe]
      %v1523 = vld [vmem:[#allocation2 + $0x18] sm:$0xe]
      %v1524 = vld [vmem:[#allocation2 + $0x24] sm:$0xe]
      %v1525 = vld [vmem:[#allocation2 + $0x30] sm:$0xe]
      %v1526 = vld [vmem:[#allocation2 + $0x3c] sm:$0xe]
      %v1527 = vld [vmem:[#allocation2 + $0x48] sm:$0xe]
      %v1528 = vld [vmem:[#allocation2 + $0x54] sm:$0xe]
      %vm1545 = vcmask 1042432
      %vm1546 = vcmask 1046532
      %vm1547 = vmor %vm1545, %vm1546
      %v1548 = vrot.slane %v1521, 5
      %v1549 = vrot.slane %v1548, 4
      %v1550 = vrot.slane %v996, 5
      %v1551 = vsel %vm1547, %v1549, %v1550
      %v1552 = vrot.slane %v1550, 4
      %v1553 = vrot.slane %v1027, 5
      %v1554 = vsel %vm1547, %v1552, %v1553
      %v1555 = vrot.slane %v1522, 5
      %v1556 = vrot.slane %v1555, 4
      %v1557 = vrot.slane %v998, 5
      %v1558 = vsel %vm1547, %v1556, %v1557
      %v1559 = vrot.slane %v1557, 4
      %v1560 = vrot.slane %v1028, 5
      %v1561 = vsel %vm1547, %v1559, %v1560
      %v1562 = vrot.slane %v1523, 5
      %v1563 = vrot.slane %v1562, 4
      %v1564 = vrot.slane %v1000, 5
      %v1565 = vsel %vm1547, %v1563, %v1564
      %v1566 = vrot.slane %v1564, 4
      %v1567 = vrot.slane %v1029, 5
      %v1568 = vsel %vm1547, %v1566, %v1567
      %v1569 = vrot.slane %v1524, 5
      %v1570 = vrot.slane %v1569, 4
      %v1571 = vrot.slane %v1002, 5
      %v1572 = vsel %vm1547, %v1570, %v1571
      %v1573 = vrot.slane %v1571, 4
      %v1574 = vrot.slane %v1030, 5
      %v1575 = vsel %vm1547, %v1573, %v1574
      %v1576 = vrot.slane %v1525, 5
      %v1577 = vrot.slane %v1576, 4
      %v1578 = vrot.slane %v1004, 5
      %v1579 = vsel %vm1547, %v1577, %v1578
      %v1580 = vrot.slane %v1578, 4
      %v1581 = vrot.slane %v1031, 5
      %v1582 = vsel %vm1547, %v1580, %v1581
      %v1583 = vrot.slane %v1526, 5
      %v1584 = vrot.slane %v1583, 4
      %v1585 = vrot.slane %v1006, 5
      %v1586 = vsel %vm1547, %v1584, %v1585
      %v1587 = vrot.slane %v1585, 4
      %v1588 = vrot.slane %v1032, 5
      %v1589 = vsel %vm1547, %v1587, %v1588
      %v1590 = vrot.slane %v1527, 5
      %v1591 = vrot.slane %v1590, 4
      %v1592 = vrot.slane %v1008, 5
      %v1593 = vsel %vm1547, %v1591, %v1592
      %v1594 = vrot.slane %v1592, 4
      %v1595 = vrot.slane %v1033, 5
      %v1596 = vsel %vm1547, %v1594, %v1595
      %v1597 = vrot.slane %v1528, 5
      %v1598 = vrot.slane %v1597, 4
      %v1599 = vrot.slane %v1010, 5
      %v1600 = vsel %vm1547, %v1598, %v1599
      %v1601 = vrot.slane %v1599, 4
      %v1602 = vrot.slane %v1034, 5
      %v1603 = vsel %vm1547, %v1601, %v1602
      %s1604 = scalar_lea.vmem %s6, 128
      %v1605 = vld [vmem:[%s1604] sm:$0xf]
      %v1606 = vld [vmem:[%s1604 + $0x4] sm:$0xf]
      %v1607 = vld [vmem:[%s1604 + $0x8] sm:$0xf]
      %v1608 = vld [vmem:[%s1604 + $0xc] sm:$0xf]
      %v1609 = vld [vmem:[%s1604 + $0x10] sm:$0xf]
      %v1610 = vld [vmem:[%s1604 + $0x14] sm:$0xf]
      %v1611 = vld [vmem:[%s1604 + $0x18] sm:$0xf]
      %v1612 = vld [vmem:[%s1604 + $0x1c] sm:$0xf]
      %v1613 = vld [vmem:[%s1604 + $0x20] sm:$0xf]
      %v1614 = vld [vmem:[%s1604 + $0x24] sm:$0xf]
      %v1615 = vld [vmem:[%s1604 + $0x28] sm:$0xf]
      %v1616 = vld [vmem:[%s1604 + $0x2c] sm:$0xf]
      %v1617 = vld [vmem:[%s1604 + $0x30] sm:$0xf]
      %v1618 = vld [vmem:[%s1604 + $0x34] sm:$0xf]
      %v1619 = vld [vmem:[%s1604 + $0x38] sm:$0xf]
      %v1620 = vld [vmem:[%s1604 + $0x3c] sm:$0xf]
      %v1621 = vunpack.c.l.b16 %v1551
      %v1622 = vunpack.c.l.b16 %v1554
      %v1623 = vunpack.c.l.b16 %v1558
      %v1624 = vunpack.c.l.b16 %v1561
      %v1625 = vunpack.c.l.b16 %v1565
      %v1626 = vunpack.c.l.b16 %v1568
      %v1627 = vunpack.c.l.b16 %v1572
      %v1628 = vunpack.c.l.b16 %v1575
      %v1629 = vunpack.c.l.b16 %v1579
      %v1630 = vunpack.c.l.b16 %v1582
      %v1631 = vunpack.c.l.b16 %v1586
      %v1632 = vunpack.c.l.b16 %v1589
      %v1633 = vunpack.c.l.b16 %v1593
      %v1634 = vunpack.c.l.b16 %v1596
      %v1635 = vunpack.c.l.b16 %v1600
      %v1636 = vunpack.c.l.b16 %v1603
      %v1637 = vpack.c.b16 %v1622, %v1621
      %v1638 = vpack.c.b16 %v1624, %v1623
      %v1639 = vpack.c.b16 %v1626, %v1625
      %v1640 = vpack.c.b16 %v1628, %v1627
      %v1641 = vpack.c.b16 %v1630, %v1629
      %v1642 = vpack.c.b16 %v1632, %v1631
      %v1643 = vpack.c.b16 %v1634, %v1633
      %v1644 = vpack.c.b16 %v1636, %v1635
      %v1669 = vunpack.c.l.b16 %v1605
      %v1670 = vunpack.c.l.b16 %v1606
      %v1671 = vunpack.c.l.b16 %v1607
      %v1672 = vunpack.c.l.b16 %v1608
      %v1673 = vunpack.c.l.b16 %v1609
      %v1674 = vunpack.c.l.b16 %v1610
      %v1675 = vunpack.c.l.b16 %v1611
      %v1676 = vunpack.c.l.b16 %v1612
      %v1677 = vunpack.c.l.b16 %v1613
      %v1678 = vunpack.c.l.b16 %v1614
      %v1679 = vunpack.c.l.b16 %v1615
      %v1680 = vunpack.c.l.b16 %v1616
      %v1681 = vunpack.c.l.b16 %v1617
      %v1682 = vunpack.c.l.b16 %v1618
      %v1683 = vunpack.c.l.b16 %v1619
      %v1684 = vunpack.c.l.b16 %v1620
      %v1685 = vpack.c.b16 %v1670, %v1669
      %v1686 = vpack.c.b16 %v1672, %v1671
      %v1687 = vpack.c.b16 %v1674, %v1673
      %v1688 = vpack.c.b16 %v1676, %v1675
      %v1689 = vpack.c.b16 %v1678, %v1677
      %v1690 = vpack.c.b16 %v1680, %v1679
      %v1691 = vpack.c.b16 %v1682, %v1681
      %v1692 = vpack.c.b16 %v1684, %v1683
      %1701 = vmatpush.bf16.msra.mxu0 %v1692
      %1702 = vmatpush.bf16.msra.mxu0 %v1691
      %1703 = vmatpush.bf16.msra.mxu0 %v1690
      %1704 = vmatpush.bf16.msra.mxu0 %v1689
      %1705 = vmatpush.bf16.msra.mxu0 %v1688
      %1706 = vmatpush.bf16.msra.mxu0 %v1687
      %1707 = vmatpush.bf16.msra.mxu0 %v1686
      %1708 = vmatpush.bf16.msra.mxu0 %v1685
      %1709 = vmatmul.bf16.gmra.mxu0 %v1637
      %v1710 = vpop.f32.mrf.mxu0
      %v1711 = vadd.f32 0.0, %v1710
      %v1712 = vpop.f32.mrf.mxu0
      %v1713 = vadd.f32 0.0, %v1712
      %1714 = vmatmul.bf16.gmra.mxu0 %v1638
      %v1715 = vpop.f32.mrf.mxu0
      %v1716 = vadd.f32 0.0, %v1715
      %v1717 = vpop.f32.mrf.mxu0
      %v1718 = vadd.f32 0.0, %v1717
      %1719 = vmatmul.bf16.gmra.mxu0 %v1639
      %v1720 = vpop.f32.mrf.mxu0
      %v1721 = vadd.f32 0.0, %v1720
      %v1722 = vpop.f32.mrf.mxu0
      %v1723 = vadd.f32 0.0, %v1722
      %1724 = vmatmul.bf16.gmra.mxu0 %v1640
      %v1725 = vpop.f32.mrf.mxu0
      %v1726 = vadd.f32 0.0, %v1725
      %v1727 = vpop.f32.mrf.mxu0
      %v1728 = vadd.f32 0.0, %v1727
      %1729 = vmatmul.bf16.gmra.mxu0 %v1641
      %v1730 = vpop.f32.mrf.mxu0
      %v1731 = vadd.f32 0.0, %v1730
      %v1732 = vpop.f32.mrf.mxu0
      %v1733 = vadd.f32 0.0, %v1732
      %1734 = vmatmul.bf16.gmra.mxu0 %v1642
      %v1735 = vpop.f32.mrf.mxu0
      %v1736 = vadd.f32 0.0, %v1735
      %v1737 = vpop.f32.mrf.mxu0
      %v1738 = vadd.f32 0.0, %v1737
      %1739 = vmatmul.bf16.gmra.mxu0 %v1643
      %v1740 = vpop.f32.mrf.mxu0
      %v1741 = vadd.f32 0.0, %v1740
      %v1742 = vpop.f32.mrf.mxu0
      %v1743 = vadd.f32 0.0, %v1742
      %1744 = vmatmul.bf16.gmra.mxu0 %v1644
      %v1745 = vpop.f32.mrf.mxu0
      %v1746 = vadd.f32 0.0, %v1745
      %v1747 = vpop.f32.mrf.mxu0
      %v1748 = vadd.f32 0.0, %v1747
      %1749 = vdwg.mxu0
      %v1750 = vadd.f32 %v1482, %v1711
      %v1751 = vadd.f32 %v1484, %v1713
      %v1752 = vadd.f32 %v1487, %v1716
      %v1753 = vadd.f32 %v1489, %v1718
      %v1754 = vadd.f32 %v1492, %v1721
      %v1755 = vadd.f32 %v1494, %v1723
      %v1756 = vadd.f32 %v1497, %v1726
      %v1757 = vadd.f32 %v1499, %v1728
      %v1758 = vadd.f32 %v1502, %v1731
      %v1759 = vadd.f32 %v1504, %v1733
      %v1760 = vadd.f32 %v1507, %v1736
      %v1761 = vadd.f32 %v1509, %v1738
      %v1762 = vadd.f32 %v1512, %v1741
      %v1763 = vadd.f32 %v1514, %v1743
      %v1764 = vadd.f32 %v1517, %v1746
      %v1765 = vadd.f32 %v1519, %v1748
      %s1766 = scalar_lea.vmem [#allocation2], 12
      %v1767 = vld [vmem:[%s1766] sm:$0xf]
      %v1768 = vld [vmem:[%s1766 + $0x4] sm:$0xf]
      %v1769 = vld [vmem:[%s1766 + $0xc] sm:$0xf]
      %v1770 = vld [vmem:[%s1766 + $0x10] sm:$0xf]
      %v1771 = vld [vmem:[%s1766 + $0x18] sm:$0xf]
      %v1772 = vld [vmem:[%s1766 + $0x1c] sm:$0xf]
      %v1773 = vld [vmem:[%s1766 + $0x24] sm:$0xf]
      %v1774 = vld [vmem:[%s1766 + $0x28] sm:$0xf]
      %v1775 = vld [vmem:[%s1766 + $0x30] sm:$0xf]
      %v1776 = vld [vmem:[%s1766 + $0x34] sm:$0xf]
      %v1777 = vld [vmem:[%s1766 + $0x3c] sm:$0xf]
      %v1778 = vld [vmem:[%s1766 + $0x40] sm:$0xf]
      %v1779 = vld [vmem:[%s1766 + $0x48] sm:$0xf]
      %v1780 = vld [vmem:[%s1766 + $0x4c] sm:$0xf]
      %v1781 = vld [vmem:[%s1766 + $0x54] sm:$0xf]
      %v1782 = vld [vmem:[%s1766 + $0x58] sm:$0xf]
      %s1783 = scalar_lea.vmem %s6, 192
      %v1784 = vld [vmem:[%s1783] sm:$0xf]
      %v1785 = vld [vmem:[%s1783 + $0x4] sm:$0xf]
      %v1786 = vld [vmem:[%s1783 + $0x8] sm:$0xf]
      %v1787 = vld [vmem:[%s1783 + $0xc] sm:$0xf]
      %v1788 = vld [vmem:[%s1783 + $0x10] sm:$0xf]
      %v1789 = vld [vmem:[%s1783 + $0x14] sm:$0xf]
      %v1790 = vld [vmem:[%s1783 + $0x18] sm:$0xf]
      %v1791 = vld [vmem:[%s1783 + $0x1c] sm:$0xf]
      %v1792 = vld [vmem:[%s1783 + $0x20] sm:$0xf]
      %v1793 = vld [vmem:[%s1783 + $0x24] sm:$0xf]
      %v1794 = vld [vmem:[%s1783 + $0x28] sm:$0xf]
      %v1795 = vld [vmem:[%s1783 + $0x2c] sm:$0xf]
      %v1796 = vld [vmem:[%s1783 + $0x30] sm:$0xf]
      %v1797 = vld [vmem:[%s1783 + $0x34] sm:$0xf]
      %v1798 = vld [vmem:[%s1783 + $0x38] sm:$0xf]
      %v1799 = vld [vmem:[%s1783 + $0x3c] sm:$0xf]
      %v1816 = vunpack.c.l.b16 %v1767
      %v1817 = vunpack.c.l.b16 %v1768
      %v1818 = vunpack.c.l.b16 %v1769
      %v1819 = vunpack.c.l.b16 %v1770
      %v1820 = vunpack.c.l.b16 %v1771
      %v1821 = vunpack.c.l.b16 %v1772
      %v1822 = vunpack.c.l.b16 %v1773
      %v1823 = vunpack.c.l.b16 %v1774
      %v1824 = vunpack.c.l.b16 %v1775
      %v1825 = vunpack.c.l.b16 %v1776
      %v1826 = vunpack.c.l.b16 %v1777
      %v1827 = vunpack.c.l.b16 %v1778
      %v1828 = vunpack.c.l.b16 %v1779
      %v1829 = vunpack.c.l.b16 %v1780
      %v1830 = vunpack.c.l.b16 %v1781
      %v1831 = vunpack.c.l.b16 %v1782
      %v1832 = vpack.c.b16 %v1817, %v1816
      %v1833 = vpack.c.b16 %v1819, %v1818
      %v1834 = vpack.c.b16 %v1821, %v1820
      %v1835 = vpack.c.b16 %v1823, %v1822
      %v1836 = vpack.c.b16 %v1825, %v1824
      %v1837 = vpack.c.b16 %v1827, %v1826
      %v1838 = vpack.c.b16 %v1829, %v1828
      %v1839 = vpack.c.b16 %v1831, %v1830
      %v1864 = vunpack.c.l.b16 %v1784
      %v1865 = vunpack.c.l.b16 %v1785
      %v1866 = vunpack.c.l.b16 %v1786
      %v1867 = vunpack.c.l.b16 %v1787
      %v1868 = vunpack.c.l.b16 %v1788
      %v1869 = vunpack.c.l.b16 %v1789
      %v1870 = vunpack.c.l.b16 %v1790
      %v1871 = vunpack.c.l.b16 %v1791
      %v1872 = vunpack.c.l.b16 %v1792
      %v1873 = vunpack.c.l.b16 %v1793
      %v1874 = vunpack.c.l.b16 %v1794
      %v1875 = vunpack.c.l.b16 %v1795
      %v1876 = vunpack.c.l.b16 %v1796
      %v1877 = vunpack.c.l.b16 %v1797
      %v1878 = vunpack.c.l.b16 %v1798
      %v1879 = vunpack.c.l.b16 %v1799
      %v1880 = vpack.c.b16 %v1865, %v1864
      %v1881 = vpack.c.b16 %v1867, %v1866
      %v1882 = vpack.c.b16 %v1869, %v1868
      %v1883 = vpack.c.b16 %v1871, %v1870
      %v1884 = vpack.c.b16 %v1873, %v1872
      %v1885 = vpack.c.b16 %v1875, %v1874
      %v1886 = vpack.c.b16 %v1877, %v1876
      %v1887 = vpack.c.b16 %v1879, %v1878
      %1896 = vmatpush.bf16.msra.mxu0 %v1887
      %1897 = vmatpush.bf16.msra.mxu0 %v1886
      %1898 = vmatpush.bf16.msra.mxu0 %v1885
      %1899 = vmatpush.bf16.msra.mxu0 %v1884
      %1900 = vmatpush.bf16.msra.mxu0 %v1883
      %1901 = vmatpush.bf16.msra.mxu0 %v1882
      %1902 = vmatpush.bf16.msra.mxu0 %v1881
      %1903 = vmatpush.bf16.msra.mxu0 %v1880
      %1904 = vmatmul.bf16.gmra.mxu0 %v1832
      %v1905 = vpop.f32.mrf.mxu0
      %v1906 = vadd.f32 0.0, %v1905
      %v1907 = vpop.f32.mrf.mxu0
      %v1908 = vadd.f32 0.0, %v1907
      %1909 = vmatmul.bf16.gmra.mxu0 %v1833
      %v1910 = vpop.f32.mrf.mxu0
      %v1911 = vadd.f32 0.0, %v1910
      %v1912 = vpop.f32.mrf.mxu0
      %v1913 = vadd.f32 0.0, %v1912
      %1914 = vmatmul.bf16.gmra.mxu0 %v1834
      %v1915 = vpop.f32.mrf.mxu0
      %v1916 = vadd.f32 0.0, %v1915
      %v1917 = vpop.f32.mrf.mxu0
      %v1918 = vadd.f32 0.0, %v1917
      %1919 = vmatmul.bf16.gmra.mxu0 %v1835
      %v1920 = vpop.f32.mrf.mxu0
      %v1921 = vadd.f32 0.0, %v1920
      %v1922 = vpop.f32.mrf.mxu0
      %v1923 = vadd.f32 0.0, %v1922
      %1924 = vmatmul.bf16.gmra.mxu0 %v1836
      %v1925 = vpop.f32.mrf.mxu0
      %v1926 = vadd.f32 0.0, %v1925
      %v1927 = vpop.f32.mrf.mxu0
      %v1928 = vadd.f32 0.0, %v1927
      %1929 = vmatmul.bf16.gmra.mxu0 %v1837
      %v1930 = vpop.f32.mrf.mxu0
      %v1931 = vadd.f32 0.0, %v1930
      %v1932 = vpop.f32.mrf.mxu0
      %v1933 = vadd.f32 0.0, %v1932
      %1934 = vmatmul.bf16.gmra.mxu0 %v1838
      %v1935 = vpop.f32.mrf.mxu0
      %v1936 = vadd.f32 0.0, %v1935
      %v1937 = vpop.f32.mrf.mxu0
      %v1938 = vadd.f32 0.0, %v1937
      %1939 = vmatmul.bf16.gmra.mxu0 %v1839
      %v1940 = vpop.f32.mrf.mxu0
      %v1941 = vadd.f32 0.0, %v1940
      %v1942 = vpop.f32.mrf.mxu0
      %v1943 = vadd.f32 0.0, %v1942
      %1944 = vdwg.mxu0
      %v1945 = vadd.f32 %v1750, %v1906
      %v1946 = vadd.f32 %v1751, %v1908
      %v1947 = vadd.f32 %v1752, %v1911
      %v1948 = vadd.f32 %v1753, %v1913
      %v1949 = vadd.f32 %v1754, %v1916
      %v1950 = vadd.f32 %v1755, %v1918
      %v1951 = vadd.f32 %v1756, %v1921
      %v1952 = vadd.f32 %v1757, %v1923
      %v1953 = vadd.f32 %v1758, %v1926
      %v1954 = vadd.f32 %v1759, %v1928
      %v1955 = vadd.f32 %v1760, %v1931
      %v1956 = vadd.f32 %v1761, %v1933
      %v1957 = vadd.f32 %v1762, %v1936
      %v1958 = vadd.f32 %v1763, %v1938
      %v1959 = vadd.f32 %v1764, %v1941
      %v1960 = vadd.f32 %v1765, %v1943
      %v1961 = vld [vmem:[%s1766] sm:$0xf]
      %v1962 = vld [vmem:[%s1766 + $0x4] sm:$0xf]
      %v1963 = vld [vmem:[%s1766 + $0x8] sm:$0x1]
      %v1964 = vld [vmem:[%s1766 + $0xc] sm:$0xf]
      %v1965 = vld [vmem:[%s1766 + $0x10] sm:$0xf]
      %v1966 = vld [vmem:[%s1766 + $0x14] sm:$0x1]
      %v1967 = vld [vmem:[%s1766 + $0x18] sm:$0xf]
      %v1968 = vld [vmem:[%s1766 + $0x1c] sm:$0xf]
      %v1969 = vld [vmem:[%s1766 + $0x20] sm:$0x1]
      %v1970 = vld [vmem:[%s1766 + $0x24] sm:$0xf]
      %v1971 = vld [vmem:[%s1766 + $0x28] sm:$0xf]
      %v1972 = vld [vmem:[%s1766 + $0x2c] sm:$0x1]
      %v1973 = vld [vmem:[%s1766 + $0x30] sm:$0xf]
      %v1974 = vld [vmem:[%s1766 + $0x34] sm:$0xf]
      %v1975 = vld [vmem:[%s1766 + $0x38] sm:$0x1]
      %v1976 = vld [vmem:[%s1766 + $0x3c] sm:$0xf]
      %v1977 = vld [vmem:[%s1766 + $0x40] sm:$0xf]
      %v1978 = vld [vmem:[%s1766 + $0x44] sm:$0x1]
      %v1979 = vld [vmem:[%s1766 + $0x48] sm:$0xf]
      %v1980 = vld [vmem:[%s1766 + $0x4c] sm:$0xf]
      %v1981 = vld [vmem:[%s1766 + $0x50] sm:$0x1]
      %v1982 = vld [vmem:[%s1766 + $0x54] sm:$0xf]
      %v1983 = vld [vmem:[%s1766 + $0x58] sm:$0xf]
      %v1984 = vld [vmem:[%s1766 + $0x5c] sm:$0x1]
      %v1986 = vshrl.u32 %v1961, 16
      %v1988 = vrot.slane %v1986, 4
      %v1989 = vshll.u32 %v1961, 16
      %v1991 = vrot.slane %v1989, 5
      %v1992 = vor.u32 %v1988, %v1991
      %v1993 = vrot.slane %v1992, 4
      %v1995 = vshll.u32 %v1962, 16
      %v1997 = vrot.slane %v1995, 5
      %v1998 = vsel %vm1037, %v1993, %v1997
      %v1999 = vshrl.u32 %v1962, 16
      %v2001 = vrot.slane %v1999, 4
      %v2002 = vor.u32 %v2001, %v1997
      %v2003 = vrot.slane %v2002, 4
      %v2005 = vshll.u32 %v1963, 16
      %v2007 = vrot.slane %v2005, 5
      %v2008 = vsel %vm1037, %v2003, %v2007
      %v2010 = vshrl.u32 %v1964, 16
      %v2012 = vrot.slane %v2010, 4
      %v2013 = vshll.u32 %v1964, 16
      %v2015 = vrot.slane %v2013, 5
      %v2016 = vor.u32 %v2012, %v2015
      %v2017 = vrot.slane %v2016, 4
      %v2019 = vshll.u32 %v1965, 16
      %v2021 = vrot.slane %v2019, 5
      %v2022 = vsel %vm1037, %v2017, %v2021
      %v2023 = vshrl.u32 %v1965, 16
      %v2025 = vrot.slane %v2023, 4
      %v2026 = vor.u32 %v2025, %v2021
      %v2027 = vrot.slane %v2026, 4
      %v2029 = vshll.u32 %v1966, 16
      %v2031 = vrot.slane %v2029, 5
      %v2032 = vsel %vm1037, %v2027, %v2031
      %v2034 = vshrl.u32 %v1967, 16
      %v2036 = vrot.slane %v2034, 4
      %v2037 = vshll.u32 %v1967, 16
      %v2039 = vrot.slane %v2037, 5
      %v2040 = vor.u32 %v2036, %v2039
      %v2041 = vrot.slane %v2040, 4
      %v2043 = vshll.u32 %v1968, 16
      %v2045 = vrot.slane %v2043, 5
      %v2046 = vsel %vm1037, %v2041, %v2045
      %v2047 = vshrl.u32 %v1968, 16
      %v2049 = vrot.slane %v2047, 4
      %v2050 = vor.u32 %v2049, %v2045
      %v2051 = vrot.slane %v2050, 4
      %v2053 = vshll.u32 %v1969, 16
      %v2055 = vrot.slane %v2053, 5
      %v2056 = vsel %vm1037, %v2051, %v2055
      %v2058 = vshrl.u32 %v1970, 16
      %v2060 = vrot.slane %v2058, 4
      %v2061 = vshll.u32 %v1970, 16
      %v2063 = vrot.slane %v2061, 5
      %v2064 = vor.u32 %v2060, %v2063
      %v2065 = vrot.slane %v2064, 4
      %v2067 = vshll.u32 %v1971, 16
      %v2069 = vrot.slane %v2067, 5
      %v2070 = vsel %vm1037, %v2065, %v2069
      %v2071 = vshrl.u32 %v1971, 16
      %v2073 = vrot.slane %v2071, 4
      %v2074 = vor.u32 %v2073, %v2069
      %v2075 = vrot.slane %v2074, 4
      %v2077 = vshll.u32 %v1972, 16
      %v2079 = vrot.slane %v2077, 5
      %v2080 = vsel %vm1037, %v2075, %v2079
      %v2082 = vshrl.u32 %v1973, 16
      %v2084 = vrot.slane %v2082, 4
      %v2085 = vshll.u32 %v1973, 16
      %v2087 = vrot.slane %v2085, 5
      %v2088 = vor.u32 %v2084, %v2087
      %v2089 = vrot.slane %v2088, 4
      %v2091 = vshll.u32 %v1974, 16
      %v2093 = vrot.slane %v2091, 5
      %v2094 = vsel %vm1037, %v2089, %v2093
      %v2095 = vshrl.u32 %v1974, 16
      %v2097 = vrot.slane %v2095, 4
      %v2098 = vor.u32 %v2097, %v2093
      %v2099 = vrot.slane %v2098, 4
      %v2101 = vshll.u32 %v1975, 16
      %v2103 = vrot.slane %v2101, 5
      %v2104 = vsel %vm1037, %v2099, %v2103
      %v2106 = vshrl.u32 %v1976, 16
      %v2108 = vrot.slane %v2106, 4
      %v2109 = vshll.u32 %v1976, 16
      %v2111 = vrot.slane %v2109, 5
      %v2112 = vor.u32 %v2108, %v2111
      %v2113 = vrot.slane %v2112, 4
      %v2115 = vshll.u32 %v1977, 16
      %v2117 = vrot.slane %v2115, 5
      %v2118 = vsel %vm1037, %v2113, %v2117
      %v2119 = vshrl.u32 %v1977, 16
      %v2121 = vrot.slane %v2119, 4
      %v2122 = vor.u32 %v2121, %v2117
      %v2123 = vrot.slane %v2122, 4
      %v2125 = vshll.u32 %v1978, 16
      %v2127 = vrot.slane %v2125, 5
      %v2128 = vsel %vm1037, %v2123, %v2127
      %v2130 = vshrl.u32 %v1979, 16
      %v2132 = vrot.slane %v2130, 4
      %v2133 = vshll.u32 %v1979, 16
      %v2135 = vrot.slane %v2133, 5
      %v2136 = vor.u32 %v2132, %v2135
      %v2137 = vrot.slane %v2136, 4
      %v2139 = vshll.u32 %v1980, 16
      %v2141 = vrot.slane %v2139, 5
      %v2142 = vsel %vm1037, %v2137, %v2141
      %v2143 = vshrl.u32 %v1980, 16
      %v2145 = vrot.slane %v2143, 4
      %v2146 = vor.u32 %v2145, %v2141
      %v2147 = vrot.slane %v2146, 4
      %v2149 = vshll.u32 %v1981, 16
      %v2151 = vrot.slane %v2149, 5
      %v2152 = vsel %vm1037, %v2147, %v2151
      %v2154 = vshrl.u32 %v1982, 16
      %v2156 = vrot.slane %v2154, 4
      %v2157 = vshll.u32 %v1982, 16
      %v2159 = vrot.slane %v2157, 5
      %v2160 = vor.u32 %v2156, %v2159
      %v2161 = vrot.slane %v2160, 4
      %v2163 = vshll.u32 %v1983, 16
      %v2165 = vrot.slane %v2163, 5
      %v2166 = vsel %vm1037, %v2161, %v2165
      %v2167 = vshrl.u32 %v1983, 16
      %v2169 = vrot.slane %v2167, 4
      %v2170 = vor.u32 %v2169, %v2165
      %v2171 = vrot.slane %v2170, 4
      %v2173 = vshll.u32 %v1984, 16
      %v2175 = vrot.slane %v2173, 5
      %v2176 = vsel %vm1037, %v2171, %v2175
      %s2177 = scalar_lea.vmem %s6, 256
      %v2178 = vld [vmem:[%s2177] sm:$0xf]
      %v2179 = vld [vmem:[%s2177 + $0x4] sm:$0xf]
      %v2180 = vld [vmem:[%s2177 + $0x8] sm:$0xf]
      %v2181 = vld [vmem:[%s2177 + $0xc] sm:$0xf]
      %v2182 = vld [vmem:[%s2177 + $0x10] sm:$0xf]
      %v2183 = vld [vmem:[%s2177 + $0x14] sm:$0xf]
      %v2184 = vld [vmem:[%s2177 + $0x18] sm:$0xf]
      %v2185 = vld [vmem:[%s2177 + $0x1c] sm:$0xf]
      %v2186 = vld [vmem:[%s2177 + $0x20] sm:$0xf]
      %v2187 = vld [vmem:[%s2177 + $0x24] sm:$0xf]
      %v2188 = vld [vmem:[%s2177 + $0x28] sm:$0xf]
      %v2189 = vld [vmem:[%s2177 + $0x2c] sm:$0xf]
      %v2190 = vld [vmem:[%s2177 + $0x30] sm:$0xf]
      %v2191 = vld [vmem:[%s2177 + $0x34] sm:$0xf]
      %v2192 = vld [vmem:[%s2177 + $0x38] sm:$0xf]
      %v2193 = vld [vmem:[%s2177 + $0x3c] sm:$0xf]
      %v2194 = vunpack.c.l.b16 %v1998
      %v2195 = vunpack.c.l.b16 %v2008
      %v2196 = vunpack.c.l.b16 %v2022
      %v2197 = vunpack.c.l.b16 %v2032
      %v2198 = vunpack.c.l.b16 %v2046
      %v2199 = vunpack.c.l.b16 %v2056
      %v2200 = vunpack.c.l.b16 %v2070
      %v2201 = vunpack.c.l.b16 %v2080
      %v2202 = vunpack.c.l.b16 %v2094
      %v2203 = vunpack.c.l.b16 %v2104
      %v2204 = vunpack.c.l.b16 %v2118
      %v2205 = vunpack.c.l.b16 %v2128
      %v2206 = vunpack.c.l.b16 %v2142
      %v2207 = vunpack.c.l.b16 %v2152
      %v2208 = vunpack.c.l.b16 %v2166
      %v2209 = vunpack.c.l.b16 %v2176
      %v2210 = vpack.c.b16 %v2195, %v2194
      %v2211 = vpack.c.b16 %v2197, %v2196
      %v2212 = vpack.c.b16 %v2199, %v2198
      %v2213 = vpack.c.b16 %v2201, %v2200
      %v2214 = vpack.c.b16 %v2203, %v2202
      %v2215 = vpack.c.b16 %v2205, %v2204
      %v2216 = vpack.c.b16 %v2207, %v2206
      %v2217 = vpack.c.b16 %v2209, %v2208
      %v2242 = vunpack.c.l.b16 %v2178
      %v2243 = vunpack.c.l.b16 %v2179
      %v2244 = vunpack.c.l.b16 %v2180
      %v2245 = vunpack.c.l.b16 %v2181
      %v2246 = vunpack.c.l.b16 %v2182
      %v2247 = vunpack.c.l.b16 %v2183
      %v2248 = vunpack.c.l.b16 %v2184
      %v2249 = vunpack.c.l.b16 %v2185
      %v2250 = vunpack.c.l.b16 %v2186
      %v2251 = vunpack.c.l.b16 %v2187
      %v2252 = vunpack.c.l.b16 %v2188
      %v2253 = vunpack.c.l.b16 %v2189
      %v2254 = vunpack.c.l.b16 %v2190
      %v2255 = vunpack.c.l.b16 %v2191
      %v2256 = vunpack.c.l.b16 %v2192
      %v2257 = vunpack.c.l.b16 %v2193
      %v2258 = vpack.c.b16 %v2243, %v2242
      %v2259 = vpack.c.b16 %v2245, %v2244
      %v2260 = vpack.c.b16 %v2247, %v2246
      %v2261 = vpack.c.b16 %v2249, %v2248
      %v2262 = vpack.c.b16 %v2251, %v2250
      %v2263 = vpack.c.b16 %v2253, %v2252
      %v2264 = vpack.c.b16 %v2255, %v2254
      %v2265 = vpack.c.b16 %v2257, %v2256
      %2274 = vmatpush.bf16.msra.mxu0 %v2265
      %2275 = vmatpush.bf16.msra.mxu0 %v2264
      %2276 = vmatpush.bf16.msra.mxu0 %v2263
      %2277 = vmatpush.bf16.msra.mxu0 %v2262
      %2278 = vmatpush.bf16.msra.mxu0 %v2261
      %2279 = vmatpush.bf16.msra.mxu0 %v2260
      %2280 = vmatpush.bf16.msra.mxu0 %v2259
      %2281 = vmatpush.bf16.msra.mxu0 %v2258
      %2282 = vmatmul.bf16.gmra.mxu0 %v2210
      %v2283 = vpop.f32.mrf.mxu0
      %v2284 = vadd.f32 0.0, %v2283
      %v2285 = vpop.f32.mrf.mxu0
      %v2286 = vadd.f32 0.0, %v2285
      %2287 = vmatmul.bf16.gmra.mxu0 %v2211
      %v2288 = vpop.f32.mrf.mxu0
      %v2289 = vadd.f32 0.0, %v2288
      %v2290 = vpop.f32.mrf.mxu0
      %v2291 = vadd.f32 0.0, %v2290
      %2292 = vmatmul.bf16.gmra.mxu0 %v2212
      %v2293 = vpop.f32.mrf.mxu0
      %v2294 = vadd.f32 0.0, %v2293
      %v2295 = vpop.f32.mrf.mxu0
      %v2296 = vadd.f32 0.0, %v2295
      %2297 = vmatmul.bf16.gmra.mxu0 %v2213
      %v2298 = vpop.f32.mrf.mxu0
      %v2299 = vadd.f32 0.0, %v2298
      %v2300 = vpop.f32.mrf.mxu0
      %v2301 = vadd.f32 0.0, %v2300
      %2302 = vmatmul.bf16.gmra.mxu0 %v2214
      %v2303 = vpop.f32.mrf.mxu0
      %v2304 = vadd.f32 0.0, %v2303
      %v2305 = vpop.f32.mrf.mxu0
      %v2306 = vadd.f32 0.0, %v2305
      %2307 = vmatmul.bf16.gmra.mxu0 %v2215
      %v2308 = vpop.f32.mrf.mxu0
      %v2309 = vadd.f32 0.0, %v2308
      %v2310 = vpop.f32.mrf.mxu0
      %v2311 = vadd.f32 0.0, %v2310
      %2312 = vmatmul.bf16.gmra.mxu0 %v2216
      %v2313 = vpop.f32.mrf.mxu0
      %v2314 = vadd.f32 0.0, %v2313
      %v2315 = vpop.f32.mrf.mxu0
      %v2316 = vadd.f32 0.0, %v2315
      %2317 = vmatmul.bf16.gmra.mxu0 %v2217
      %v2318 = vpop.f32.mrf.mxu0
      %v2319 = vadd.f32 0.0, %v2318
      %v2320 = vpop.f32.mrf.mxu0
      %v2321 = vadd.f32 0.0, %v2320
      %2322 = vdwg.mxu0
      %v2323 = vadd.f32 %v1945, %v2284
      %v2324 = vadd.f32 %v1946, %v2286
      %v2325 = vadd.f32 %v1947, %v2289
      %v2326 = vadd.f32 %v1948, %v2291
      %v2327 = vadd.f32 %v1949, %v2294
      %v2328 = vadd.f32 %v1950, %v2296
      %v2329 = vadd.f32 %v1951, %v2299
      %v2330 = vadd.f32 %v1952, %v2301
      %v2331 = vadd.f32 %v1953, %v2304
      %v2332 = vadd.f32 %v1954, %v2306
      %v2333 = vadd.f32 %v1955, %v2309
      %v2334 = vadd.f32 %v1956, %v2311
      %v2335 = vadd.f32 %v1957, %v2314
      %v2336 = vadd.f32 %v1958, %v2316
      %v2337 = vadd.f32 %v1959, %v2319
      %v2338 = vadd.f32 %v1960, %v2321
      %v2339 = vld [vmem:[%s1766] sm:$0xe]
      %v2340 = vld [vmem:[%s1766 + $0xc] sm:$0xe]
      %v2341 = vld [vmem:[%s1766 + $0x18] sm:$0xe]
      %v2342 = vld [vmem:[%s1766 + $0x24] sm:$0xe]
      %v2343 = vld [vmem:[%s1766 + $0x30] sm:$0xe]
      %v2344 = vld [vmem:[%s1766 + $0x3c] sm:$0xe]
      %v2345 = vld [vmem:[%s1766 + $0x48] sm:$0xe]
      %v2346 = vld [vmem:[%s1766 + $0x54] sm:$0xe]
      %v2371 = vrot.slane %v2339, 5
      %v2372 = vrot.slane %v2371, 4
      %v2373 = vrot.slane %v1962, 5
      %v2374 = vsel %vm1547, %v2372, %v2373
      %v2375 = vrot.slane %v2373, 4
      %v2376 = vrot.slane %v1963, 5
      %v2377 = vsel %vm1547, %v2375, %v2376
      %v2378 = vrot.slane %v2340, 5
      %v2379 = vrot.slane %v2378, 4
      %v2380 = vrot.slane %v1965, 5
      %v2381 = vsel %vm1547, %v2379, %v2380
      %v2382 = vrot.slane %v2380, 4
      %v2383 = vrot.slane %v1966, 5
      %v2384 = vsel %vm1547, %v2382, %v2383
      %v2385 = vrot.slane %v2341, 5
      %v2386 = vrot.slane %v2385, 4
      %v2387 = vrot.slane %v1968, 5
      %v2388 = vsel %vm1547, %v2386, %v2387
      %v2389 = vrot.slane %v2387, 4
      %v2390 = vrot.slane %v1969, 5
      %v2391 = vsel %vm1547, %v2389, %v2390
      %v2392 = vrot.slane %v2342, 5
      %v2393 = vrot.slane %v2392, 4
      %v2394 = vrot.slane %v1971, 5
      %v2395 = vsel %vm1547, %v2393, %v2394
      %v2396 = vrot.slane %v2394, 4
      %v2397 = vrot.slane %v1972, 5
      %v2398 = vsel %vm1547, %v2396, %v2397
      %v2399 = vrot.slane %v2343, 5
      %v2400 = vrot.slane %v2399, 4
      %v2401 = vrot.slane %v1974, 5
      %v2402 = vsel %vm1547, %v2400, %v2401
      %v2403 = vrot.slane %v2401, 4
      %v2404 = vrot.slane %v1975, 5
      %v2405 = vsel %vm1547, %v2403, %v2404
      %v2406 = vrot.slane %v2344, 5
      %v2407 = vrot.slane %v2406, 4
      %v2408 = vrot.slane %v1977, 5
      %v2409 = vsel %vm1547, %v2407, %v2408
      %v2410 = vrot.slane %v2408, 4
      %v2411 = vrot.slane %v1978, 5
      %v2412 = vsel %vm1547, %v2410, %v2411
      %v2413 = vrot.slane %v2345, 5
      %v2414 = vrot.slane %v2413, 4
      %v2415 = vrot.slane %v1980, 5
      %v2416 = vsel %vm1547, %v2414, %v2415
      %v2417 = vrot.slane %v2415, 4
      %v2418 = vrot.slane %v1981, 5
      %v2419 = vsel %vm1547, %v2417, %v2418
      %v2420 = vrot.slane %v2346, 5
      %v2421 = vrot.slane %v2420, 4
      %v2422 = vrot.slane %v1983, 5
      %v2423 = vsel %vm1547, %v2421, %v2422
      %v2424 = vrot.slane %v2422, 4
      %v2425 = vrot.slane %v1984, 5
      %v2426 = vsel %vm1547, %v2424, %v2425
      %s2427 = scalar_lea.vmem %s6, 320
      %v2428 = vld [vmem:[%s2427] sm:$0xf]
      %v2429 = vld [vmem:[%s2427 + $0x4] sm:$0xf]
      %v2430 = vld [vmem:[%s2427 + $0x8] sm:$0xf]
      %v2431 = vld [vmem:[%s2427 + $0xc] sm:$0xf]
      %v2432 = vld [vmem:[%s2427 + $0x10] sm:$0xf]
      %v2433 = vld [vmem:[%s2427 + $0x14] sm:$0xf]
      %v2434 = vld [vmem:[%s2427 + $0x18] sm:$0xf]
      %v2435 = vld [vmem:[%s2427 + $0x1c] sm:$0xf]
      %v2436 = vld [vmem:[%s2427 + $0x20] sm:$0xf]
      %v2437 = vld [vmem:[%s2427 + $0x24] sm:$0xf]
      %v2438 = vld [vmem:[%s2427 + $0x28] sm:$0xf]
      %v2439 = vld [vmem:[%s2427 + $0x2c] sm:$0xf]
      %v2440 = vld [vmem:[%s2427 + $0x30] sm:$0xf]
      %v2441 = vld [vmem:[%s2427 + $0x34] sm:$0xf]
      %v2442 = vld [vmem:[%s2427 + $0x38] sm:$0xf]
      %v2443 = vld [vmem:[%s2427 + $0x3c] sm:$0xf]
      %v2444 = vunpack.c.l.b16 %v2374
      %v2445 = vunpack.c.l.b16 %v2377
      %v2446 = vunpack.c.l.b16 %v2381
      %v2447 = vunpack.c.l.b16 %v2384
      %v2448 = vunpack.c.l.b16 %v2388
      %v2449 = vunpack.c.l.b16 %v2391
      %v2450 = vunpack.c.l.b16 %v2395
      %v2451 = vunpack.c.l.b16 %v2398
      %v2452 = vunpack.c.l.b16 %v2402
      %v2453 = vunpack.c.l.b16 %v2405
      %v2454 = vunpack.c.l.b16 %v2409
      %v2455 = vunpack.c.l.b16 %v2412
      %v2456 = vunpack.c.l.b16 %v2416
      %v2457 = vunpack.c.l.b16 %v2419
      %v2458 = vunpack.c.l.b16 %v2423
      %v2459 = vunpack.c.l.b16 %v2426
      %v2460 = vpack.c.b16 %v2445, %v2444
      %v2461 = vpack.c.b16 %v2447, %v2446
      %v2462 = vpack.c.b16 %v2449, %v2448
      %v2463 = vpack.c.b16 %v2451, %v2450
      %v2464 = vpack.c.b16 %v2453, %v2452
      %v2465 = vpack.c.b16 %v2455, %v2454
      %v2466 = vpack.c.b16 %v2457, %v2456
      %v2467 = vpack.c.b16 %v2459, %v2458
      %v2492 = vunpack.c.l.b16 %v2428
      %v2493 = vunpack.c.l.b16 %v2429
      %v2494 = vunpack.c.l.b16 %v2430
      %v2495 = vunpack.c.l.b16 %v2431
      %v2496 = vunpack.c.l.b16 %v2432
      %v2497 = vunpack.c.l.b16 %v2433
      %v2498 = vunpack.c.l.b16 %v2434
      %v2499 = vunpack.c.l.b16 %v2435
      %v2500 = vunpack.c.l.b16 %v2436
      %v2501 = vunpack.c.l.b16 %v2437
      %v2502 = vunpack.c.l.b16 %v2438
      %v2503 = vunpack.c.l.b16 %v2439
      %v2504 = vunpack.c.l.b16 %v2440
      %v2505 = vunpack.c.l.b16 %v2441
      %v2506 = vunpack.c.l.b16 %v2442
      %v2507 = vunpack.c.l.b16 %v2443
      %v2508 = vpack.c.b16 %v2493, %v2492
      %v2509 = vpack.c.b16 %v2495, %v2494
      %v2510 = vpack.c.b16 %v2497, %v2496
      %v2511 = vpack.c.b16 %v2499, %v2498
      %v2512 = vpack.c.b16 %v2501, %v2500
      %v2513 = vpack.c.b16 %v2503, %v2502
      %v2514 = vpack.c.b16 %v2505, %v2504
      %v2515 = vpack.c.b16 %v2507, %v2506
      %2524 = vmatpush.bf16.msra.mxu0 %v2515
      %2525 = vmatpush.bf16.msra.mxu0 %v2514
      %2526 = vmatpush.bf16.msra.mxu0 %v2513
      %2527 = vmatpush.bf16.msra.mxu0 %v2512
      %2528 = vmatpush.bf16.msra.mxu0 %v2511
      %2529 = vmatpush.bf16.msra.mxu0 %v2510
      %2530 = vmatpush.bf16.msra.mxu0 %v2509
      %2531 = vmatpush.bf16.msra.mxu0 %v2508
      %2532 = vmatmul.bf16.gmra.mxu0 %v2460
      %v2533 = vpop.f32.mrf.mxu0
      %v2534 = vadd.f32 0.0, %v2533
      %v2535 = vpop.f32.mrf.mxu0
      %v2536 = vadd.f32 0.0, %v2535
      %2537 = vmatmul.bf16.gmra.mxu0 %v2461
      %v2538 = vpop.f32.mrf.mxu0
      %v2539 = vadd.f32 0.0, %v2538
      %v2540 = vpop.f32.mrf.mxu0
      %v2541 = vadd.f32 0.0, %v2540
      %2542 = vmatmul.bf16.gmra.mxu0 %v2462
      %v2543 = vpop.f32.mrf.mxu0
      %v2544 = vadd.f32 0.0, %v2543
      %v2545 = vpop.f32.mrf.mxu0
      %v2546 = vadd.f32 0.0, %v2545
      %2547 = vmatmul.bf16.gmra.mxu0 %v2463
      %v2548 = vpop.f32.mrf.mxu0
      %v2549 = vadd.f32 0.0, %v2548
      %v2550 = vpop.f32.mrf.mxu0
      %v2551 = vadd.f32 0.0, %v2550
      %2552 = vmatmul.bf16.gmra.mxu0 %v2464
      %v2553 = vpop.f32.mrf.mxu0
      %v2554 = vadd.f32 0.0, %v2553
      %v2555 = vpop.f32.mrf.mxu0
      %v2556 = vadd.f32 0.0, %v2555
      %2557 = vmatmul.bf16.gmra.mxu0 %v2465
      %v2558 = vpop.f32.mrf.mxu0
      %v2559 = vadd.f32 0.0, %v2558
      %v2560 = vpop.f32.mrf.mxu0
      %v2561 = vadd.f32 0.0, %v2560
      %2562 = vmatmul.bf16.gmra.mxu0 %v2466
      %v2563 = vpop.f32.mrf.mxu0
      %v2564 = vadd.f32 0.0, %v2563
      %v2565 = vpop.f32.mrf.mxu0
      %v2566 = vadd.f32 0.0, %v2565
      %2567 = vmatmul.bf16.gmra.mxu0 %v2467
      %v2568 = vpop.f32.mrf.mxu0
      %v2569 = vadd.f32 0.0, %v2568
      %v2570 = vpop.f32.mrf.mxu0
      %v2571 = vadd.f32 0.0, %v2570
      %2572 = vdwg.mxu0
      %v2573 = vadd.f32 %v2323, %v2534
      %v2574 = vadd.f32 %v2324, %v2536
      %v2575 = vadd.f32 %v2325, %v2539
      %v2576 = vadd.f32 %v2326, %v2541
      %v2577 = vadd.f32 %v2327, %v2544
      %v2578 = vadd.f32 %v2328, %v2546
      %v2579 = vadd.f32 %v2329, %v2549
      %v2580 = vadd.f32 %v2330, %v2551
      %v2581 = vadd.f32 %v2331, %v2554
      %v2582 = vadd.f32 %v2332, %v2556
      %v2583 = vadd.f32 %v2333, %v2559
      %v2584 = vadd.f32 %v2334, %v2561
      %v2585 = vadd.f32 %v2335, %v2564
      %v2586 = vadd.f32 %v2336, %v2566
      %v2587 = vadd.f32 %v2337, %v2569
      %v2588 = vadd.f32 %v2338, %v2571
      %s2589 = scalar_lea.vmem [#allocation2], 24
      %v2590 = vld [vmem:[%s2589] sm:$0xf]
      %v2591 = vld [vmem:[%s2589 + $0x4] sm:$0xf]
      %v2592 = vld [vmem:[%s2589 + $0xc] sm:$0xf]
      %v2593 = vld [vmem:[%s2589 + $0x10] sm:$0xf]
      %v2594 = vld [vmem:[%s2589 + $0x18] sm:$0xf]
      %v2595 = vld [vmem:[%s2589 + $0x1c] sm:$0xf]
      %v2596 = vld [vmem:[%s2589 + $0x24] sm:$0xf]
      %v2597 = vld [vmem:[%s2589 + $0x28] sm:$0xf]
      %v2598 = vld [vmem:[%s2589 + $0x30] sm:$0xf]
      %v2599 = vld [vmem:[%s2589 + $0x34] sm:$0xf]
      %v2600 = vld [vmem:[%s2589 + $0x3c] sm:$0xf]
      %v2601 = vld [vmem:[%s2589 + $0x40] sm:$0xf]
      %v2602 = vld [vmem:[%s2589 + $0x48] sm:$0xf]
      %v2603 = vld [vmem:[%s2589 + $0x4c] sm:$0xf]
      %v2604 = vld [vmem:[%s2589 + $0x54] sm:$0xf]
      %v2605 = vld [vmem:[%s2589 + $0x58] sm:$0xf]
      %s2606 = scalar_lea.vmem %s6, 384
      %v2607 = vld [vmem:[%s2606] sm:$0xf]
      %v2608 = vld [vmem:[%s2606 + $0x4] sm:$0xf]
      %v2609 = vld [vmem:[%s2606 + $0x8] sm:$0xf]
      %v2610 = vld [vmem:[%s2606 + $0xc] sm:$0xf]
      %v2611 = vld [vmem:[%s2606 + $0x10] sm:$0xf]
      %v2612 = vld [vmem:[%s2606 + $0x14] sm:$0xf]
      %v2613 = vld [vmem:[%s2606 + $0x18] sm:$0xf]
      %v2614 = vld [vmem:[%s2606 + $0x1c] sm:$0xf]
      %v2615 = vld [vmem:[%s2606 + $0x20] sm:$0xf]
      %v2616 = vld [vmem:[%s2606 + $0x24] sm:$0xf]
      %v2617 = vld [vmem:[%s2606 + $0x28] sm:$0xf]
      %v2618 = vld [vmem:[%s2606 + $0x2c] sm:$0xf]
      %v2619 = vld [vmem:[%s2606 + $0x30] sm:$0xf]
      %v2620 = vld [vmem:[%s2606 + $0x34] sm:$0xf]
      %v2621 = vld [vmem:[%s2606 + $0x38] sm:$0xf]
      %v2622 = vld [vmem:[%s2606 + $0x3c] sm:$0xf]
      %v2639 = vunpack.c.l.b16 %v2590
      %v2640 = vunpack.c.l.b16 %v2591
      %v2641 = vunpack.c.l.b16 %v2592
      %v2642 = vunpack.c.l.b16 %v2593
      %v2643 = vunpack.c.l.b16 %v2594
      %v2644 = vunpack.c.l.b16 %v2595
      %v2645 = vunpack.c.l.b16 %v2596
      %v2646 = vunpack.c.l.b16 %v2597
      %v2647 = vunpack.c.l.b16 %v2598
      %v2648 = vunpack.c.l.b16 %v2599
      %v2649 = vunpack.c.l.b16 %v2600
      %v2650 = vunpack.c.l.b16 %v2601
      %v2651 = vunpack.c.l.b16 %v2602
      %v2652 = vunpack.c.l.b16 %v2603
      %v2653 = vunpack.c.l.b16 %v2604
      %v2654 = vunpack.c.l.b16 %v2605
      %v2655 = vpack.c.b16 %v2640, %v2639
      %v2656 = vpack.c.b16 %v2642, %v2641
      %v2657 = vpack.c.b16 %v2644, %v2643
      %v2658 = vpack.c.b16 %v2646, %v2645
      %v2659 = vpack.c.b16 %v2648, %v2647
      %v2660 = vpack.c.b16 %v2650, %v2649
      %v2661 = vpack.c.b16 %v2652, %v2651
      %v2662 = vpack.c.b16 %v2654, %v2653
      %v2687 = vunpack.c.l.b16 %v2607
      %v2688 = vunpack.c.l.b16 %v2608
      %v2689 = vunpack.c.l.b16 %v2609
      %v2690 = vunpack.c.l.b16 %v2610
      %v2691 = vunpack.c.l.b16 %v2611
      %v2692 = vunpack.c.l.b16 %v2612
      %v2693 = vunpack.c.l.b16 %v2613
      %v2694 = vunpack.c.l.b16 %v2614
      %v2695 = vunpack.c.l.b16 %v2615
      %v2696 = vunpack.c.l.b16 %v2616
      %v2697 = vunpack.c.l.b16 %v2617
      %v2698 = vunpack.c.l.b16 %v2618
      %v2699 = vunpack.c.l.b16 %v2619
      %v2700 = vunpack.c.l.b16 %v2620
      %v2701 = vunpack.c.l.b16 %v2621
      %v2702 = vunpack.c.l.b16 %v2622
      %v2703 = vpack.c.b16 %v2688, %v2687
      %v2704 = vpack.c.b16 %v2690, %v2689
      %v2705 = vpack.c.b16 %v2692, %v2691
      %v2706 = vpack.c.b16 %v2694, %v2693
      %v2707 = vpack.c.b16 %v2696, %v2695
      %v2708 = vpack.c.b16 %v2698, %v2697
      %v2709 = vpack.c.b16 %v2700, %v2699
      %v2710 = vpack.c.b16 %v2702, %v2701
      %2719 = vmatpush.bf16.msra.mxu0 %v2710
      %2720 = vmatpush.bf16.msra.mxu0 %v2709
      %2721 = vmatpush.bf16.msra.mxu0 %v2708
      %2722 = vmatpush.bf16.msra.mxu0 %v2707
      %2723 = vmatpush.bf16.msra.mxu0 %v2706
      %2724 = vmatpush.bf16.msra.mxu0 %v2705
      %2725 = vmatpush.bf16.msra.mxu0 %v2704
      %2726 = vmatpush.bf16.msra.mxu0 %v2703
      %2727 = vmatmul.bf16.gmra.mxu0 %v2655
      %v2728 = vpop.f32.mrf.mxu0
      %v2729 = vadd.f32 0.0, %v2728
      %v2730 = vpop.f32.mrf.mxu0
      %v2731 = vadd.f32 0.0, %v2730
      %2732 = vmatmul.bf16.gmra.mxu0 %v2656
      %v2733 = vpop.f32.mrf.mxu0
      %v2734 = vadd.f32 0.0, %v2733
      %v2735 = vpop.f32.mrf.mxu0
      %v2736 = vadd.f32 0.0, %v2735
      %2737 = vmatmul.bf16.gmra.mxu0 %v2657
      %v2738 = vpop.f32.mrf.mxu0
      %v2739 = vadd.f32 0.0, %v2738
      %v2740 = vpop.f32.mrf.mxu0
      %v2741 = vadd.f32 0.0, %v2740
      %2742 = vmatmul.bf16.gmra.mxu0 %v2658
      %v2743 = vpop.f32.mrf.mxu0
      %v2744 = vadd.f32 0.0, %v2743
      %v2745 = vpop.f32.mrf.mxu0
      %v2746 = vadd.f32 0.0, %v2745
      %2747 = vmatmul.bf16.gmra.mxu0 %v2659
      %v2748 = vpop.f32.mrf.mxu0
      %v2749 = vadd.f32 0.0, %v2748
      %v2750 = vpop.f32.mrf.mxu0
      %v2751 = vadd.f32 0.0, %v2750
      %2752 = vmatmul.bf16.gmra.mxu0 %v2660
      %v2753 = vpop.f32.mrf.mxu0
      %v2754 = vadd.f32 0.0, %v2753
      %v2755 = vpop.f32.mrf.mxu0
      %v2756 = vadd.f32 0.0, %v2755
      %2757 = vmatmul.bf16.gmra.mxu0 %v2661
      %v2758 = vpop.f32.mrf.mxu0
      %v2759 = vadd.f32 0.0, %v2758
      %v2760 = vpop.f32.mrf.mxu0
      %v2761 = vadd.f32 0.0, %v2760
      %2762 = vmatmul.bf16.gmra.mxu0 %v2662
      %v2763 = vpop.f32.mrf.mxu0
      %v2764 = vadd.f32 0.0, %v2763
      %v2765 = vpop.f32.mrf.mxu0
      %v2766 = vadd.f32 0.0, %v2765
      %2767 = vdwg.mxu0
      %v2768 = vadd.f32 %v2573, %v2729
      %v2769 = vadd.f32 %v2574, %v2731
      %v2770 = vadd.f32 %v2575, %v2734
      %v2771 = vadd.f32 %v2576, %v2736
      %v2772 = vadd.f32 %v2577, %v2739
      %v2773 = vadd.f32 %v2578, %v2741
      %v2774 = vadd.f32 %v2579, %v2744
      %v2775 = vadd.f32 %v2580, %v2746
      %v2776 = vadd.f32 %v2581, %v2749
      %v2777 = vadd.f32 %v2582, %v2751
      %v2778 = vadd.f32 %v2583, %v2754
      %v2779 = vadd.f32 %v2584, %v2756
      %v2780 = vadd.f32 %v2585, %v2759
      %v2781 = vadd.f32 %v2586, %v2761
      %v2782 = vadd.f32 %v2587, %v2764
      %v2783 = vadd.f32 %v2588, %v2766
      %v2784 = vld [vmem:[%s2589] sm:$0xf]
      %v2785 = vld [vmem:[%s2589 + $0x4] sm:$0xf]
      %v2786 = vld [vmem:[%s2589 + $0x8] sm:$0x1]
      %v2787 = vld [vmem:[%s2589 + $0xc] sm:$0xf]
      %v2788 = vld [vmem:[%s2589 + $0x10] sm:$0xf]
      %v2789 = vld [vmem:[%s2589 + $0x14] sm:$0x1]
      %v2790 = vld [vmem:[%s2589 + $0x18] sm:$0xf]
      %v2791 = vld [vmem:[%s2589 + $0x1c] sm:$0xf]
      %v2792 = vld [vmem:[%s2589 + $0x20] sm:$0x1]
      %v2793 = vld [vmem:[%s2589 + $0x24] sm:$0xf]
      %v2794 = vld [vmem:[%s2589 + $0x28] sm:$0xf]
      %v2795 = vld [vmem:[%s2589 + $0x2c] sm:$0x1]
      %v2796 = vld [vmem:[%s2589 + $0x30] sm:$0xf]
      %v2797 = vld [vmem:[%s2589 + $0x34] sm:$0xf]
      %v2798 = vld [vmem:[%s2589 + $0x38] sm:$0x1]
      %v2799 = vld [vmem:[%s2589 + $0x3c] sm:$0xf]
      %v2800 = vld [vmem:[%s2589 + $0x40] sm:$0xf]
      %v2801 = vld [vmem:[%s2589 + $0x44] sm:$0x1]
      %v2802 = vld [vmem:[%s2589 + $0x48] sm:$0xf]
      %v2803 = vld [vmem:[%s2589 + $0x4c] sm:$0xf]
      %v2804 = vld [vmem:[%s2589 + $0x50] sm:$0x1]
      %v2805 = vld [vmem:[%s2589 + $0x54] sm:$0xf]
      %v2806 = vld [vmem:[%s2589 + $0x58] sm:$0xf]
      %v2807 = vld [vmem:[%s2589 + $0x5c] sm:$0x1]
      %v2809 = vshrl.u32 %v2784, 16
      %v2811 = vrot.slane %v2809, 4
      %v2812 = vshll.u32 %v2784, 16
      %v2814 = vrot.slane %v2812, 5
      %v2815 = vor.u32 %v2811, %v2814
      %v2816 = vrot.slane %v2815, 4
      %v2818 = vshll.u32 %v2785, 16
      %v2820 = vrot.slane %v2818, 5
      %v2821 = vsel %vm1037, %v2816, %v2820
      %v2822 = vshrl.u32 %v2785, 16
      %v2824 = vrot.slane %v2822, 4
      %v2825 = vor.u32 %v2824, %v2820
      %v2826 = vrot.slane %v2825, 4
      %v2828 = vshll.u32 %v2786, 16
      %v2830 = vrot.slane %v2828, 5
      %v2831 = vsel %vm1037, %v2826, %v2830
      %v2833 = vshrl.u32 %v2787, 16
      %v2835 = vrot.slane %v2833, 4
      %v2836 = vshll.u32 %v2787, 16
      %v2838 = vrot.slane %v2836, 5
      %v2839 = vor.u32 %v2835, %v2838
      %v2840 = vrot.slane %v2839, 4
      %v2842 = vshll.u32 %v2788, 16
      %v2844 = vrot.slane %v2842, 5
      %v2845 = vsel %vm1037, %v2840, %v2844
      %v2846 = vshrl.u32 %v2788, 16
      %v2848 = vrot.slane %v2846, 4
      %v2849 = vor.u32 %v2848, %v2844
      %v2850 = vrot.slane %v2849, 4
      %v2852 = vshll.u32 %v2789, 16
      %v2854 = vrot.slane %v2852, 5
      %v2855 = vsel %vm1037, %v2850, %v2854
      %v2857 = vshrl.u32 %v2790, 16
      %v2859 = vrot.slane %v2857, 4
      %v2860 = vshll.u32 %v2790, 16
      %v2862 = vrot.slane %v2860, 5
      %v2863 = vor.u32 %v2859, %v2862
      %v2864 = vrot.slane %v2863, 4
      %v2866 = vshll.u32 %v2791, 16
      %v2868 = vrot.slane %v2866, 5
      %v2869 = vsel %vm1037, %v2864, %v2868
      %v2870 = vshrl.u32 %v2791, 16
      %v2872 = vrot.slane %v2870, 4
      %v2873 = vor.u32 %v2872, %v2868
      %v2874 = vrot.slane %v2873, 4
      %v2876 = vshll.u32 %v2792, 16
      %v2878 = vrot.slane %v2876, 5
      %v2879 = vsel %vm1037, %v2874, %v2878
      %v2881 = vshrl.u32 %v2793, 16
      %v2883 = vrot.slane %v2881, 4
      %v2884 = vshll.u32 %v2793, 16
      %v2886 = vrot.slane %v2884, 5
      %v2887 = vor.u32 %v2883, %v2886
      %v2888 = vrot.slane %v2887, 4
      %v2890 = vshll.u32 %v2794, 16
      %v2892 = vrot.slane %v2890, 5
      %v2893 = vsel %vm1037, %v2888, %v2892
      %v2894 = vshrl.u32 %v2794, 16
      %v2896 = vrot.slane %v2894, 4
      %v2897 = vor.u32 %v2896, %v2892
      %v2898 = vrot.slane %v2897, 4
      %v2900 = vshll.u32 %v2795, 16
      %v2902 = vrot.slane %v2900, 5
      %v2903 = vsel %vm1037, %v2898, %v2902
      %v2905 = vshrl.u32 %v2796, 16
      %v2907 = vrot.slane %v2905, 4
      %v2908 = vshll.u32 %v2796, 16
      %v2910 = vrot.slane %v2908, 5
      %v2911 = vor.u32 %v2907, %v2910
      %v2912 = vrot.slane %v2911, 4
      %v2914 = vshll.u32 %v2797, 16
      %v2916 = vrot.slane %v2914, 5
      %v2917 = vsel %vm1037, %v2912, %v2916
      %v2918 = vshrl.u32 %v2797, 16
      %v2920 = vrot.slane %v2918, 4
      %v2921 = vor.u32 %v2920, %v2916
      %v2922 = vrot.slane %v2921, 4
      %v2924 = vshll.u32 %v2798, 16
      %v2926 = vrot.slane %v2924, 5
      %v2927 = vsel %vm1037, %v2922, %v2926
      %v2929 = vshrl.u32 %v2799, 16
      %v2931 = vrot.slane %v2929, 4
      %v2932 = vshll.u32 %v2799, 16
      %v2934 = vrot.slane %v2932, 5
      %v2935 = vor.u32 %v2931, %v2934
      %v2936 = vrot.slane %v2935, 4
      %v2938 = vshll.u32 %v2800, 16
      %v2940 = vrot.slane %v2938, 5
      %v2941 = vsel %vm1037, %v2936, %v2940
      %v2942 = vshrl.u32 %v2800, 16
      %v2944 = vrot.slane %v2942, 4
      %v2945 = vor.u32 %v2944, %v2940
      %v2946 = vrot.slane %v2945, 4
      %v2948 = vshll.u32 %v2801, 16
      %v2950 = vrot.slane %v2948, 5
      %v2951 = vsel %vm1037, %v2946, %v2950
      %v2953 = vshrl.u32 %v2802, 16
      %v2955 = vrot.slane %v2953, 4
      %v2956 = vshll.u32 %v2802, 16
      %v2958 = vrot.slane %v2956, 5
      %v2959 = vor.u32 %v2955, %v2958
      %v2960 = vrot.slane %v2959, 4
      %v2962 = vshll.u32 %v2803, 16
      %v2964 = vrot.slane %v2962, 5
      %v2965 = vsel %vm1037, %v2960, %v2964
      %v2966 = vshrl.u32 %v2803, 16
      %v2968 = vrot.slane %v2966, 4
      %v2969 = vor.u32 %v2968, %v2964
      %v2970 = vrot.slane %v2969, 4
      %v2972 = vshll.u32 %v2804, 16
      %v2974 = vrot.slane %v2972, 5
      %v2975 = vsel %vm1037, %v2970, %v2974
      %v2977 = vshrl.u32 %v2805, 16
      %v2979 = vrot.slane %v2977, 4
      %v2980 = vshll.u32 %v2805, 16
      %v2982 = vrot.slane %v2980, 5
      %v2983 = vor.u32 %v2979, %v2982
      %v2984 = vrot.slane %v2983, 4
      %v2986 = vshll.u32 %v2806, 16
      %v2988 = vrot.slane %v2986, 5
      %v2989 = vsel %vm1037, %v2984, %v2988
      %v2990 = vshrl.u32 %v2806, 16
      %v2992 = vrot.slane %v2990, 4
      %v2993 = vor.u32 %v2992, %v2988
      %v2994 = vrot.slane %v2993, 4
      %v2996 = vshll.u32 %v2807, 16
      %v2998 = vrot.slane %v2996, 5
      %v2999 = vsel %vm1037, %v2994, %v2998
      %s3000 = scalar_lea.vmem %s6, 448
      %v3001 = vld [vmem:[%s3000] sm:$0xf]
      %v3002 = vld [vmem:[%s3000 + $0x4] sm:$0xf]
      %v3003 = vld [vmem:[%s3000 + $0x8] sm:$0xf]
      %v3004 = vld [vmem:[%s3000 + $0xc] sm:$0xf]
      %v3005 = vld [vmem:[%s3000 + $0x10] sm:$0xf]
      %v3006 = vld [vmem:[%s3000 + $0x14] sm:$0xf]
      %v3007 = vld [vmem:[%s3000 + $0x18] sm:$0xf]
      %v3008 = vld [vmem:[%s3000 + $0x1c] sm:$0xf]
      %v3009 = vld [vmem:[%s3000 + $0x20] sm:$0xf]
      %v3010 = vld [vmem:[%s3000 + $0x24] sm:$0xf]
      %v3011 = vld [vmem:[%s3000 + $0x28] sm:$0xf]
      %v3012 = vld [vmem:[%s3000 + $0x2c] sm:$0xf]
      %v3013 = vld [vmem:[%s3000 + $0x30] sm:$0xf]
      %v3014 = vld [vmem:[%s3000 + $0x34] sm:$0xf]
      %v3015 = vld [vmem:[%s3000 + $0x38] sm:$0xf]
      %v3016 = vld [vmem:[%s3000 + $0x3c] sm:$0xf]
      %v3017 = vunpack.c.l.b16 %v2821
      %v3018 = vunpack.c.l.b16 %v2831
      %v3019 = vunpack.c.l.b16 %v2845
      %v3020 = vunpack.c.l.b16 %v2855
      %v3021 = vunpack.c.l.b16 %v2869
      %v3022 = vunpack.c.l.b16 %v2879
      %v3023 = vunpack.c.l.b16 %v2893
      %v3024 = vunpack.c.l.b16 %v2903
      %v3025 = vunpack.c.l.b16 %v2917
      %v3026 = vunpack.c.l.b16 %v2927
      %v3027 = vunpack.c.l.b16 %v2941
      %v3028 = vunpack.c.l.b16 %v2951
      %v3029 = vunpack.c.l.b16 %v2965
      %v3030 = vunpack.c.l.b16 %v2975
      %v3031 = vunpack.c.l.b16 %v2989
      %v3032 = vunpack.c.l.b16 %v2999
      %v3033 = vpack.c.b16 %v3018, %v3017
      %v3034 = vpack.c.b16 %v3020, %v3019
      %v3035 = vpack.c.b16 %v3022, %v3021
      %v3036 = vpack.c.b16 %v3024, %v3023
      %v3037 = vpack.c.b16 %v3026, %v3025
      %v3038 = vpack.c.b16 %v3028, %v3027
      %v3039 = vpack.c.b16 %v3030, %v3029
      %v3040 = vpack.c.b16 %v3032, %v3031
      %v3065 = vunpack.c.l.b16 %v3001
      %v3066 = vunpack.c.l.b16 %v3002
      %v3067 = vunpack.c.l.b16 %v3003
      %v3068 = vunpack.c.l.b16 %v3004
      %v3069 = vunpack.c.l.b16 %v3005
      %v3070 = vunpack.c.l.b16 %v3006
      %v3071 = vunpack.c.l.b16 %v3007
      %v3072 = vunpack.c.l.b16 %v3008
      %v3073 = vunpack.c.l.b16 %v3009
      %v3074 = vunpack.c.l.b16 %v3010
      %v3075 = vunpack.c.l.b16 %v3011
      %v3076 = vunpack.c.l.b16 %v3012
      %v3077 = vunpack.c.l.b16 %v3013
      %v3078 = vunpack.c.l.b16 %v3014
      %v3079 = vunpack.c.l.b16 %v3015
      %v3080 = vunpack.c.l.b16 %v3016
      %v3081 = vpack.c.b16 %v3066, %v3065
      %v3082 = vpack.c.b16 %v3068, %v3067
      %v3083 = vpack.c.b16 %v3070, %v3069
      %v3084 = vpack.c.b16 %v3072, %v3071
      %v3085 = vpack.c.b16 %v3074, %v3073
      %v3086 = vpack.c.b16 %v3076, %v3075
      %v3087 = vpack.c.b16 %v3078, %v3077
      %v3088 = vpack.c.b16 %v3080, %v3079
      %3097 = vmatpush.bf16.msra.mxu0 %v3088
      %3098 = vmatpush.bf16.msra.mxu0 %v3087
      %3099 = vmatpush.bf16.msra.mxu0 %v3086
      %3100 = vmatpush.bf16.msra.mxu0 %v3085
      %3101 = vmatpush.bf16.msra.mxu0 %v3084
      %3102 = vmatpush.bf16.msra.mxu0 %v3083
      %3103 = vmatpush.bf16.msra.mxu0 %v3082
      %3104 = vmatpush.bf16.msra.mxu0 %v3081
      %3105 = vmatmul.bf16.gmra.mxu0 %v3033
      %v3106 = vpop.f32.mrf.mxu0
      %v3107 = vadd.f32 0.0, %v3106
      %v3108 = vpop.f32.mrf.mxu0
      %v3109 = vadd.f32 0.0, %v3108
      %3110 = vmatmul.bf16.gmra.mxu0 %v3034
      %v3111 = vpop.f32.mrf.mxu0
      %v3112 = vadd.f32 0.0, %v3111
      %v3113 = vpop.f32.mrf.mxu0
      %v3114 = vadd.f32 0.0, %v3113
      %3115 = vmatmul.bf16.gmra.mxu0 %v3035
      %v3116 = vpop.f32.mrf.mxu0
      %v3117 = vadd.f32 0.0, %v3116
      %v3118 = vpop.f32.mrf.mxu0
      %v3119 = vadd.f32 0.0, %v3118
      %3120 = vmatmul.bf16.gmra.mxu0 %v3036
      %v3121 = vpop.f32.mrf.mxu0
      %v3122 = vadd.f32 0.0, %v3121
      %v3123 = vpop.f32.mrf.mxu0
      %v3124 = vadd.f32 0.0, %v3123
      %3125 = vmatmul.bf16.gmra.mxu0 %v3037
      %v3126 = vpop.f32.mrf.mxu0
      %v3127 = vadd.f32 0.0, %v3126
      %v3128 = vpop.f32.mrf.mxu0
      %v3129 = vadd.f32 0.0, %v3128
      %3130 = vmatmul.bf16.gmra.mxu0 %v3038
      %v3131 = vpop.f32.mrf.mxu0
      %v3132 = vadd.f32 0.0, %v3131
      %v3133 = vpop.f32.mrf.mxu0
      %v3134 = vadd.f32 0.0, %v3133
      %3135 = vmatmul.bf16.gmra.mxu0 %v3039
      %v3136 = vpop.f32.mrf.mxu0
      %v3137 = vadd.f32 0.0, %v3136
      %v3138 = vpop.f32.mrf.mxu0
      %v3139 = vadd.f32 0.0, %v3138
      %3140 = vmatmul.bf16.gmra.mxu0 %v3040
      %v3141 = vpop.f32.mrf.mxu0
      %v3142 = vadd.f32 0.0, %v3141
      %v3143 = vpop.f32.mrf.mxu0
      %v3144 = vadd.f32 0.0, %v3143
      %3145 = vdwg.mxu0
      %v3146 = vadd.f32 %v2768, %v3107
      %v3147 = vadd.f32 %v2769, %v3109
      %v3148 = vadd.f32 %v2770, %v3112
      %v3149 = vadd.f32 %v2771, %v3114
      %v3150 = vadd.f32 %v2772, %v3117
      %v3151 = vadd.f32 %v2773, %v3119
      %v3152 = vadd.f32 %v2774, %v3122
      %v3153 = vadd.f32 %v2775, %v3124
      %v3154 = vadd.f32 %v2776, %v3127
      %v3155 = vadd.f32 %v2777, %v3129
      %v3156 = vadd.f32 %v2778, %v3132
      %v3157 = vadd.f32 %v2779, %v3134
      %v3158 = vadd.f32 %v2780, %v3137
      %v3159 = vadd.f32 %v2781, %v3139
      %v3160 = vadd.f32 %v2782, %v3142
      %v3161 = vadd.f32 %v2783, %v3144
      %v3162 = vld [vmem:[%s2589] sm:$0xe]
      %v3163 = vld [vmem:[%s2589 + $0xc] sm:$0xe]
      %v3164 = vld [vmem:[%s2589 + $0x18] sm:$0xe]
      %v3165 = vld [vmem:[%s2589 + $0x24] sm:$0xe]
      %v3166 = vld [vmem:[%s2589 + $0x30] sm:$0xe]
      %v3167 = vld [vmem:[%s2589 + $0x3c] sm:$0xe]
      %v3168 = vld [vmem:[%s2589 + $0x48] sm:$0xe]
      %v3169 = vld [vmem:[%s2589 + $0x54] sm:$0xe]
      %v3194 = vrot.slane %v3162, 5
      %v3195 = vrot.slane %v3194, 4
      %v3196 = vrot.slane %v2785, 5
      %v3197 = vsel %vm1547, %v3195, %v3196
      %v3198 = vrot.slane %v3196, 4
      %v3199 = vrot.slane %v2786, 5
      %v3200 = vsel %vm1547, %v3198, %v3199
      %v3201 = vrot.slane %v3163, 5
      %v3202 = vrot.slane %v3201, 4
      %v3203 = vrot.slane %v2788, 5
      %v3204 = vsel %vm1547, %v3202, %v3203
      %v3205 = vrot.slane %v3203, 4
      %v3206 = vrot.slane %v2789, 5
      %v3207 = vsel %vm1547, %v3205, %v3206
      %v3208 = vrot.slane %v3164, 5
      %v3209 = vrot.slane %v3208, 4
      %v3210 = vrot.slane %v2791, 5
      %v3211 = vsel %vm1547, %v3209, %v3210
      %v3212 = vrot.slane %v3210, 4
      %v3213 = vrot.slane %v2792, 5
      %v3214 = vsel %vm1547, %v3212, %v3213
      %v3215 = vrot.slane %v3165, 5
      %v3216 = vrot.slane %v3215, 4
      %v3217 = vrot.slane %v2794, 5
      %v3218 = vsel %vm1547, %v3216, %v3217
      %v3219 = vrot.slane %v3217, 4
      %v3220 = vrot.slane %v2795, 5
      %v3221 = vsel %vm1547, %v3219, %v3220
      %v3222 = vrot.slane %v3166, 5
      %v3223 = vrot.slane %v3222, 4
      %v3224 = vrot.slane %v2797, 5
      %v3225 = vsel %vm1547, %v3223, %v3224
      %v3226 = vrot.slane %v3224, 4
      %v3227 = vrot.slane %v2798, 5
      %v3228 = vsel %vm1547, %v3226, %v3227
      %v3229 = vrot.slane %v3167, 5
      %v3230 = vrot.slane %v3229, 4
      %v3231 = vrot.slane %v2800, 5
      %v3232 = vsel %vm1547, %v3230, %v3231
      %v3233 = vrot.slane %v3231, 4
      %v3234 = vrot.slane %v2801, 5
      %v3235 = vsel %vm1547, %v3233, %v3234
      %v3236 = vrot.slane %v3168, 5
      %v3237 = vrot.slane %v3236, 4
      %v3238 = vrot.slane %v2803, 5
      %v3239 = vsel %vm1547, %v3237, %v3238
      %v3240 = vrot.slane %v3238, 4
      %v3241 = vrot.slane %v2804, 5
      %v3242 = vsel %vm1547, %v3240, %v3241
      %v3243 = vrot.slane %v3169, 5
      %v3244 = vrot.slane %v3243, 4
      %v3245 = vrot.slane %v2806, 5
      %v3246 = vsel %vm1547, %v3244, %v3245
      %v3247 = vrot.slane %v3245, 4
      %v3248 = vrot.slane %v2807, 5
      %v3249 = vsel %vm1547, %v3247, %v3248
      %s3250 = scalar_lea.vmem %s6, 512
      %v3251 = vld [vmem:[%s3250] sm:$0xf]
      %v3252 = vld [vmem:[%s3250 + $0x4] sm:$0xf]
      %v3253 = vld [vmem:[%s3250 + $0x8] sm:$0xf]
      %v3254 = vld [vmem:[%s3250 + $0xc] sm:$0xf]
      %v3255 = vld [vmem:[%s3250 + $0x10] sm:$0xf]
      %v3256 = vld [vmem:[%s3250 + $0x14] sm:$0xf]
      %v3257 = vld [vmem:[%s3250 + $0x18] sm:$0xf]
      %v3258 = vld [vmem:[%s3250 + $0x1c] sm:$0xf]
      %v3259 = vld [vmem:[%s3250 + $0x20] sm:$0xf]
      %v3260 = vld [vmem:[%s3250 + $0x24] sm:$0xf]
      %v3261 = vld [vmem:[%s3250 + $0x28] sm:$0xf]
      %v3262 = vld [vmem:[%s3250 + $0x2c] sm:$0xf]
      %v3263 = vld [vmem:[%s3250 + $0x30] sm:$0xf]
      %v3264 = vld [vmem:[%s3250 + $0x34] sm:$0xf]
      %v3265 = vld [vmem:[%s3250 + $0x38] sm:$0xf]
      %v3266 = vld [vmem:[%s3250 + $0x3c] sm:$0xf]
      %v3267 = vunpack.c.l.b16 %v3197
      %v3268 = vunpack.c.l.b16 %v3200
      %v3269 = vunpack.c.l.b16 %v3204
      %v3270 = vunpack.c.l.b16 %v3207
      %v3271 = vunpack.c.l.b16 %v3211
      %v3272 = vunpack.c.l.b16 %v3214
      %v3273 = vunpack.c.l.b16 %v3218
      %v3274 = vunpack.c.l.b16 %v3221
      %v3275 = vunpack.c.l.b16 %v3225
      %v3276 = vunpack.c.l.b16 %v3228
      %v3277 = vunpack.c.l.b16 %v3232
      %v3278 = vunpack.c.l.b16 %v3235
      %v3279 = vunpack.c.l.b16 %v3239
      %v3280 = vunpack.c.l.b16 %v3242
      %v3281 = vunpack.c.l.b16 %v3246
      %v3282 = vunpack.c.l.b16 %v3249
      %v3283 = vpack.c.b16 %v3268, %v3267
      %v3284 = vpack.c.b16 %v3270, %v3269
      %v3285 = vpack.c.b16 %v3272, %v3271
      %v3286 = vpack.c.b16 %v3274, %v3273
      %v3287 = vpack.c.b16 %v3276, %v3275
      %v3288 = vpack.c.b16 %v3278, %v3277
      %v3289 = vpack.c.b16 %v3280, %v3279
      %v3290 = vpack.c.b16 %v3282, %v3281
      %v3315 = vunpack.c.l.b16 %v3251
      %v3316 = vunpack.c.l.b16 %v3252
      %v3317 = vunpack.c.l.b16 %v3253
      %v3318 = vunpack.c.l.b16 %v3254
      %v3319 = vunpack.c.l.b16 %v3255
      %v3320 = vunpack.c.l.b16 %v3256
      %v3321 = vunpack.c.l.b16 %v3257
      %v3322 = vunpack.c.l.b16 %v3258
      %v3323 = vunpack.c.l.b16 %v3259
      %v3324 = vunpack.c.l.b16 %v3260
      %v3325 = vunpack.c.l.b16 %v3261
      %v3326 = vunpack.c.l.b16 %v3262
      %v3327 = vunpack.c.l.b16 %v3263
      %v3328 = vunpack.c.l.b16 %v3264
      %v3329 = vunpack.c.l.b16 %v3265
      %v3330 = vunpack.c.l.b16 %v3266
      %v3331 = vpack.c.b16 %v3316, %v3315
      %v3332 = vpack.c.b16 %v3318, %v3317
      %v3333 = vpack.c.b16 %v3320, %v3319
      %v3334 = vpack.c.b16 %v3322, %v3321
      %v3335 = vpack.c.b16 %v3324, %v3323
      %v3336 = vpack.c.b16 %v3326, %v3325
      %v3337 = vpack.c.b16 %v3328, %v3327
      %v3338 = vpack.c.b16 %v3330, %v3329
      %3347 = vmatpush.bf16.msra.mxu0 %v3338
      %3348 = vmatpush.bf16.msra.mxu0 %v3337
      %3349 = vmatpush.bf16.msra.mxu0 %v3336
      %3350 = vmatpush.bf16.msra.mxu0 %v3335
      %3351 = vmatpush.bf16.msra.mxu0 %v3334
      %3352 = vmatpush.bf16.msra.mxu0 %v3333
      %3353 = vmatpush.bf16.msra.mxu0 %v3332
      %3354 = vmatpush.bf16.msra.mxu0 %v3331
      %3355 = vmatmul.bf16.gmra.mxu0 %v3283
      %v3356 = vpop.f32.mrf.mxu0
      %v3357 = vadd.f32 0.0, %v3356
      %v3358 = vpop.f32.mrf.mxu0
      %v3359 = vadd.f32 0.0, %v3358
      %3360 = vmatmul.bf16.gmra.mxu0 %v3284
      %v3361 = vpop.f32.mrf.mxu0
      %v3362 = vadd.f32 0.0, %v3361
      %v3363 = vpop.f32.mrf.mxu0
      %v3364 = vadd.f32 0.0, %v3363
      %3365 = vmatmul.bf16.gmra.mxu0 %v3285
      %v3366 = vpop.f32.mrf.mxu0
      %v3367 = vadd.f32 0.0, %v3366
      %v3368 = vpop.f32.mrf.mxu0
      %v3369 = vadd.f32 0.0, %v3368
      %3370 = vmatmul.bf16.gmra.mxu0 %v3286
      %v3371 = vpop.f32.mrf.mxu0
      %v3372 = vadd.f32 0.0, %v3371
      %v3373 = vpop.f32.mrf.mxu0
      %v3374 = vadd.f32 0.0, %v3373
      %3375 = vmatmul.bf16.gmra.mxu0 %v3287
      %v3376 = vpop.f32.mrf.mxu0
      %v3377 = vadd.f32 0.0, %v3376
      %v3378 = vpop.f32.mrf.mxu0
      %v3379 = vadd.f32 0.0, %v3378
      %3380 = vmatmul.bf16.gmra.mxu0 %v3288
      %v3381 = vpop.f32.mrf.mxu0
      %v3382 = vadd.f32 0.0, %v3381
      %v3383 = vpop.f32.mrf.mxu0
      %v3384 = vadd.f32 0.0, %v3383
      %3385 = vmatmul.bf16.gmra.mxu0 %v3289
      %v3386 = vpop.f32.mrf.mxu0
      %v3387 = vadd.f32 0.0, %v3386
      %v3388 = vpop.f32.mrf.mxu0
      %v3389 = vadd.f32 0.0, %v3388
      %3390 = vmatmul.bf16.gmra.mxu0 %v3290
      %v3391 = vpop.f32.mrf.mxu0
      %v3392 = vadd.f32 0.0, %v3391
      %v3393 = vpop.f32.mrf.mxu0
      %v3394 = vadd.f32 0.0, %v3393
      %3395 = vdwg.mxu0
      %v3396 = vadd.f32 %v3146, %v3357
      %v3397 = vadd.f32 %v3147, %v3359
      %v3398 = vadd.f32 %v3148, %v3362
      %v3399 = vadd.f32 %v3149, %v3364
      %v3400 = vadd.f32 %v3150, %v3367
      %v3401 = vadd.f32 %v3151, %v3369
      %v3402 = vadd.f32 %v3152, %v3372
      %v3403 = vadd.f32 %v3153, %v3374
      %v3404 = vadd.f32 %v3154, %v3377
      %v3405 = vadd.f32 %v3155, %v3379
      %v3406 = vadd.f32 %v3156, %v3382
      %v3407 = vadd.f32 %v3157, %v3384
      %v3408 = vadd.f32 %v3158, %v3387
      %v3409 = vadd.f32 %v3159, %v3389
      %v3410 = vadd.f32 %v3160, %v3392
      %v3411 = vadd.f32 %v3161, %v3394
      %v3412 = vld [vmem:[%s7] sm:$0x1]
      %v3414 = vperm.slane %v3412, 0
      %v3416 = vadd.f32 %v3396, %v3414
      %v3417 = vadd.f32 %v3397, %v3414
      %v3418 = vadd.f32 %v3398, %v3414
      %v3419 = vadd.f32 %v3399, %v3414
      %v3420 = vadd.f32 %v3400, %v3414
      %v3421 = vadd.f32 %v3401, %v3414
      %v3422 = vadd.f32 %v3402, %v3414
      %v3423 = vadd.f32 %v3403, %v3414
      %v3424 = vadd.f32 %v3404, %v3414
      %v3425 = vadd.f32 %v3405, %v3414
      %v3426 = vadd.f32 %v3406, %v3414
      %v3427 = vadd.f32 %v3407, %v3414
      %v3428 = vadd.f32 %v3408, %v3414
      %v3429 = vadd.f32 %v3409, %v3414
      %v3430 = vadd.f32 %v3410, %v3414
      %v3431 = vadd.f32 %v3411, %v3414
      %v3432 = vld [vmem:[%s384] sm:$0xff]
      %v3433 = vld [vmem:[%s384 + $0x8] sm:$0xff]
      %v3434 = vld [vmem:[%s384 + $0x10] sm:$0xff]
      %v3435 = vld [vmem:[%s384 + $0x18] sm:$0xff]
      %v3436 = vld [vmem:[%s384 + $0x20] sm:$0xff]
      %v3437 = vld [vmem:[%s384 + $0x28] sm:$0xff]
      %v3438 = vld [vmem:[%s384 + $0x30] sm:$0xff]
      %v3439 = vld [vmem:[%s384 + $0x38] sm:$0xff]
      %v3440 = vld [vmem:[%s384 + $0x40] sm:$0xff]
      %v3441 = vld [vmem:[%s384 + $0x48] sm:$0xff]
      %v3442 = vld [vmem:[%s384 + $0x50] sm:$0xff]
      %v3443 = vld [vmem:[%s384 + $0x58] sm:$0xff]
      %v3444 = vld [vmem:[%s384 + $0x60] sm:$0xff]
      %v3445 = vld [vmem:[%s384 + $0x68] sm:$0xff]
      %v3446 = vld [vmem:[%s384 + $0x70] sm:$0xff]
      %v3447 = vld [vmem:[%s384 + $0x78] sm:$0xff]
      %v3448 = vld [vmem:[%s397] sm:$0x1]
      %v3449 = vld [vmem:[%s400] sm:$0x1]
      %v3451 = vperm.slane %v3448, 0
      %v3453 = vsub.f32 %v3432, %v3451
      %v3454 = vsub.f32 %v3433, %v3451
      %v3455 = vsub.f32 %v3434, %v3451
      %v3456 = vsub.f32 %v3435, %v3451
      %v3457 = vsub.f32 %v3436, %v3451
      %v3458 = vsub.f32 %v3437, %v3451
      %v3459 = vsub.f32 %v3438, %v3451
      %v3460 = vsub.f32 %v3439, %v3451
      %v3461 = vsub.f32 %v3440, %v3451
      %v3462 = vsub.f32 %v3441, %v3451
      %v3463 = vsub.f32 %v3442, %v3451
      %v3464 = vsub.f32 %v3443, %v3451
      %v3465 = vsub.f32 %v3444, %v3451
      %v3466 = vsub.f32 %v3445, %v3451
      %v3467 = vsub.f32 %v3446, %v3451
      %v3468 = vsub.f32 %v3447, %v3451
      %v3470 = vperm.slane %v3449, 0
      %v3472 = vmul.f32 %v3453, %v3470
      %v3473 = vmul.f32 %v3454, %v3470
      %v3474 = vmul.f32 %v3455, %v3470
      %v3475 = vmul.f32 %v3456, %v3470
      %v3476 = vmul.f32 %v3457, %v3470
      %v3477 = vmul.f32 %v3458, %v3470
      %v3478 = vmul.f32 %v3459, %v3470
      %v3479 = vmul.f32 %v3460, %v3470
      %v3480 = vmul.f32 %v3461, %v3470
      %v3481 = vmul.f32 %v3462, %v3470
      %v3482 = vmul.f32 %v3463, %v3470
      %v3483 = vmul.f32 %v3464, %v3470
      %v3484 = vmul.f32 %v3465, %v3470
      %v3485 = vmul.f32 %v3466, %v3470
      %v3486 = vmul.f32 %v3467, %v3470
      %v3487 = vmul.f32 %v3468, %v3470
      %v3488 = vmul.f32 %v3472, %v3416
      %v3489 = vmul.f32 %v3473, %v3417
      %v3490 = vmul.f32 %v3474, %v3418
      %v3491 = vmul.f32 %v3475, %v3419
      %v3492 = vmul.f32 %v3476, %v3420
      %v3493 = vmul.f32 %v3477, %v3421
      %v3494 = vmul.f32 %v3478, %v3422
      %v3495 = vmul.f32 %v3479, %v3423
      %v3496 = vmul.f32 %v3480, %v3424
      %v3497 = vmul.f32 %v3481, %v3425
      %v3498 = vmul.f32 %v3482, %v3426
      %v3499 = vmul.f32 %v3483, %v3427
      %v3500 = vmul.f32 %v3484, %v3428
      %v3501 = vmul.f32 %v3485, %v3429
      %v3502 = vmul.f32 %v3486, %v3430
      %v3503 = vmul.f32 %v3487, %v3431
      %3520 = vrot.lane.b32.xlu0 %v3416, 124
      %v3521 = vpop.permute.xlu0 %3520
      %3522 = vrot.lane.b32.xlu0 %v3417, 124
      %v3523 = vpop.permute.xlu0 %3522
      %3524 = vrot.lane.b32.xlu0 %v3418, 124
      %v3525 = vpop.permute.xlu0 %3524
      %3526 = vrot.lane.b32.xlu0 %v3419, 124
      %v3527 = vpop.permute.xlu0 %3526
      %3528 = vrot.lane.b32.xlu0 %v3420, 124
      %v3529 = vpop.permute.xlu0 %3528
      %3530 = vrot.lane.b32.xlu0 %v3421, 124
      %v3531 = vpop.permute.xlu0 %3530
      %3532 = vrot.lane.b32.xlu0 %v3422, 124
      %v3533 = vpop.permute.xlu0 %3532
      %3534 = vrot.lane.b32.xlu0 %v3423, 124
      %v3535 = vpop.permute.xlu0 %3534
      %3536 = vrot.lane.b32.xlu0 %v3424, 124
      %v3537 = vpop.permute.xlu0 %3536
      %3538 = vrot.lane.b32.xlu0 %v3425, 124
      %v3539 = vpop.permute.xlu0 %3538
      %3540 = vrot.lane.b32.xlu0 %v3426, 124
      %v3541 = vpop.permute.xlu0 %3540
      %3542 = vrot.lane.b32.xlu0 %v3427, 124
      %v3543 = vpop.permute.xlu0 %3542
      %3544 = vrot.lane.b32.xlu0 %v3428, 124
      %v3545 = vpop.permute.xlu0 %3544
      %3546 = vrot.lane.b32.xlu0 %v3429, 124
      %v3547 = vpop.permute.xlu0 %3546
      %3548 = vrot.lane.b32.xlu0 %v3430, 124
      %v3549 = vpop.permute.xlu0 %3548
      %3550 = vrot.lane.b32.xlu0 %v3431, 124
      %v3551 = vpop.permute.xlu0 %3550
      %v3568 = vadd.f32 %v3488, %v3521
      %v3569 = vadd.f32 %v3489, %v3523
      %v3570 = vadd.f32 %v3490, %v3525
      %v3571 = vadd.f32 %v3491, %v3527
      %v3572 = vadd.f32 %v3492, %v3529
      %v3573 = vadd.f32 %v3493, %v3531
      %v3574 = vadd.f32 %v3494, %v3533
      %v3575 = vadd.f32 %v3495, %v3535
      %v3576 = vadd.f32 %v3496, %v3537
      %v3577 = vadd.f32 %v3497, %v3539
      %v3578 = vadd.f32 %v3498, %v3541
      %v3579 = vadd.f32 %v3499, %v3543
      %v3580 = vadd.f32 %v3500, %v3545
      %v3581 = vadd.f32 %v3501, %v3547
      %v3582 = vadd.f32 %v3502, %v3549
      %v3583 = vadd.f32 %v3503, %v3551
      %vm3584 = vcmask 31744
      %3585 = vst.msk [vmem:[%s410] sm:$0xff] %vm3584, %v3568
      %3586 = vst.msk [vmem:[%s410 + $0x8] sm:$0xff] %vm3584, %v3569
      %3587 = vst.msk [vmem:[%s410 + $0x10] sm:$0xff] %vm3584, %v3570
      %3588 = vst.msk [vmem:[%s410 + $0x18] sm:$0xff] %vm3584, %v3571
      %3589 = vst.msk [vmem:[%s410 + $0x20] sm:$0xff] %vm3584, %v3572
      %3590 = vst.msk [vmem:[%s410 + $0x28] sm:$0xff] %vm3584, %v3573
      %3591 = vst.msk [vmem:[%s410 + $0x30] sm:$0xff] %vm3584, %v3574
      %3592 = vst.msk [vmem:[%s410 + $0x38] sm:$0xff] %vm3584, %v3575
      %3593 = vst.msk [vmem:[%s410 + $0x40] sm:$0xff] %vm3584, %v3576
      %3594 = vst.msk [vmem:[%s410 + $0x48] sm:$0xff] %vm3584, %v3577
      %3595 = vst.msk [vmem:[%s410 + $0x50] sm:$0xff] %vm3584, %v3578
      %3596 = vst.msk [vmem:[%s410 + $0x58] sm:$0xff] %vm3584, %v3579
      %3597 = vst.msk [vmem:[%s410 + $0x60] sm:$0xff] %vm3584, %v3580
      %3598 = vst.msk [vmem:[%s410 + $0x68] sm:$0xff] %vm3584, %v3581
      %3599 = vst.msk [vmem:[%s410 + $0x70] sm:$0xff] %vm3584, %v3582
      %3600 = vst.msk [vmem:[%s410 + $0x78] sm:$0xff] %vm3584, %v3583
      %s3601 = smul.u32 8, %s24
      %p3602 = scmp.lt.s32.totalorder %s23, 1
      %s3603 = scalar_select %p3602, %s23, 1
      %p3604 = scmp.lt.s32.totalorder %s3601, 15
      %s3605 = scalar_select %p3604, %s3601, 15
      %s3606 = smul.addr %s3605, 2
      %s3607 = smul.addr %s3603, 32
      %s3608 = sadd.s32 %s3606, %s3607
      %s3609 = smul.addr %s3608, 8
      %s3610 = scalar_lea.vmem %s8, %s3609
      // Predicated region
      $region53: #{spade_forward.3} parent=51 // pred_check
        %p3611 = pneg %p245
      $region54: #{spade_forward.3} parent=51 // pred_check_branch
        %3613 = sbr.rel (%p3611) target = $region56
      $region55: #{spade_forward.3} parent=51 // pred_region
        %s3614 = smul.u32 8, %s24
      $region56: #{spade_forward.3} parent=51 // pred_fallthru
        _
    $region52: #{spade_forward.3} parent=5 // pred_fallthru
      _
    %p3615 = scmp.le.s32.totalorder 2, %s14
    // Predicated region
    $region57: #{spade_forward.3} parent=5 // pred_check
      %p3616 = pneg %p3615
    $region58: #{spade_forward.3} parent=5 // pred_check_branch
      %3618 = sbr.rel (%p3616) target = $region60
    $region59: #{spade_forward.3} parent=5 // pred_region
      %s3619 = ssub.s32 %s14, 2
      // Predicated region
      $region61: #{spade_forward.3} parent=59 // pred_check
        %p3620 = pneg %p251
      $region62: #{spade_forward.3} parent=59 // pred_check_branch
        %3622 = sbr.rel (%p3620) target = $region64
      $region63: #{spade_forward.3} parent=59 // pred_region
        %s3623 = smul.u32 8, %s26
        %p3624 = scmp.lt.s32.totalorder %s25, 1
        %s3625 = scalar_select %p3624, %s25, 1
        %p3626 = scmp.lt.s32.totalorder %s3623, 15
        %s3627 = scalar_select %p3626, %s3623, 15
        %s3628 = smul.addr %s3627, 2
        %s3629 = smul.addr %s3625, 32
        %s3630 = sadd.s32 %s3628, %s3629
        %s3631 = smul.addr %s3630, 8
        %s3632 = scalar_lea.vmem %s8, %s3631
      $region64: #{spade_forward.3} parent=59 // pred_fallthru
        _
    $region60: #{spade_forward.3} parent=5 // pred_fallthru
      _
  $region6: #{spade_forward.3} parent=0 // loop_footer
    %s18 = sadd.s32 1, %s14
  $region7: #{spade_forward.3} parent=0 // loop_footer_branch
    %13 = sbr.rel target = $region3
  $region8: #{spade_forward.3} parent=0 // loop_exit
    _

</llo_original>
